<compile_context>
chip_gen: v6e
topology: v6e:2x2x1
jax: 0.10.0
libtpu: 0.0.40
codegen_flags: <defaults>
</compile_context>

<pallas_src>
import jax
import jax.numpy as jnp
from jax import lax
from jax.experimental import pallas as pl
from jax.experimental.pallas import tpu as pltpu

EPS_REEIG = 1e-4  # nn_spd ReEig eigenvalue clamp threshold


def _spdnet_kernel(lam_ref, ublk_ref, wmat_ref, ablk_ref, out_ref):
    """One batch element per grid step: folded ReEig + BiMap + BatchNormSPD.

    lam_ref:  (1, C_in*n, 1)         eigenvalues of the C_in input SPD matrices (f32)
    ublk_ref: (1, C_in*n, C_in*n)    blockdiag(U_0, ..., U_{C_in-1})
    wmat_ref: (C_in*n, C_out*n)      W stacked: row (c, i), col (co, j) = W[co, c, i, j]
    ablk_ref: (C_out*n, C_out*n)     I_{C_out} (x) A,  A = G_w^{1/2} G_mean^{-1/2}
    out_ref:  (1, C_out*n, C_out*n)  full congruence; (co, co) diagonal blocks = Z[co]
    """
    lam = jnp.maximum(lam_ref[0], EPS_REEIG)          # (C_in*n, 1)  ReEig clamp in f32
    Ub = ublk_ref[0]                                  # (C_in*n, C_in*n)
    Wm = wmat_ref[...]                                # (C_in*n, C_out*n)
    Ab = ablk_ref[...]                                # (C_out*n, C_out*n)

    # Precision: validated that DEFAULT (single-pass bf16 MXU) misses the 5e-3
    # reference tolerance after 4 chained matmuls at these magnitudes, so the f32
    # (HIGHEST) path is retained; with only 4 small K=64 matmuls per grid step the
    # extra MXU passes are negligible next to the remaining per-step overhead.
    hp = dict(preferred_element_type=jnp.float32,
              precision=jax.lax.Precision.HIGHEST)

    # ReEig folded into BiMap: V[(c,k),(co,j)] = (U_c^T W[co,c])[k,j].
    V = lax.dot_general(Ub, Wm, (((0,), (0,)), ((), ())), **hp)    # (C_in*n, C_out*n)
    Vl = lam * V                                                   # row-scale by clamped lam

    # BiMap with the channel sum merged into one K = C_in*n contraction:
    # Yf[(co,p),(co',q)] = sum_c (W[co,c]^T X_c W[co',c])[p,q]; diag blocks are Y[co].
    Yf = lax.dot_general(V, Vl, (((0,), (0,)), ((), ())), **hp)    # (C_out*n, C_out*n)

    # BatchNormSPD congruence for all output channels at once: Zf = Ablk Yf Ablk^T,
    # whose (co, co) diagonal blocks are Z[co] = A Y[co] A^T.
    AY = lax.dot_general(Ab, Yf, (((1,), (0,)), ((), ())), **hp)
    Zf = lax.dot_general(AY, Ab, (((1,), (1,)), ((), ())), **hp)

    out_ref[0] = Zf.astype(out_ref.dtype)


def relu_conv_bn_spdnet(x, w, running_mean, bn_weight):
    """x: (N, C_in, n, n) SPD; w: (C_out, C_in, n, n) Stiefel;
    running_mean / bn_weight: (n, n) SPD. Returns (N, C_out, n, n)."""
    N, C_in, n, _ = x.shape
    C_out = w.shape[0]
    cn, con = C_in * n, C_out * n
    f32 = jnp.float32

    # TODO(synk): symmetric eigendecomposition (ReEig eigh, BN sqrt / inv-sqrt) has no
    # Pallas primitive; it stays as plain-JAX glue. Everything else is in-kernel.
    evals, evecs = jnp.linalg.eigh(x)                  # (N, C_in, n), (N, C_in, n, n)

    lm, Um = jnp.linalg.eigh(running_mean)
    g_mean_isqrt = (Um * (1.0 / jnp.sqrt(lm))[None, :]) @ Um.T
    lw, Uw = jnp.linalg.eigh(bn_weight)
    g_w_sqrt = (Uw * jnp.sqrt(lw)[None, :]) @ Uw.T
    a = (g_w_sqrt @ g_mean_isqrt).astype(f32)          # (n, n)

    # --- layout plumbing (no FLOPs): block-diag / lane-packed operands ----------
    # Keep eigenvalues f32 into the kernel (clamp at 1e-4 must not happen in bf16).
    lam = evals.astype(f32).reshape(N, cn, 1)
    # Ublk[b] = blockdiag(U[b,0], ..., U[b,C_in-1])    -> (N, C_in*n, C_in*n)
    ublk = (jnp.eye(C_in, dtype=f32)[None, :, None, :, None] *
            evecs.astype(f32)[:, :, :, None, :]).reshape(N, cn, cn)
    # Wmat[c*n+i, co*n+j] = W[co, c, i, j]             -> (C_in*n, C_out*n)
    wmat = jnp.transpose(w.astype(f32), (1, 2, 0, 3)).reshape(cn, con)
    # Ablk = I_{C_out} (x) A                           -> (C_out*n, C_out*n)
    ablk = jnp.kron(jnp.eye(C_out, dtype=f32), a)

    # Per-step VMEM: ~65 KiB double-buffered — far below even v7x's 64 MiB / 32 MiB
    # scoped default, so no vmem_limit_bytes override is needed at these sizes.
    zfull = pl.pallas_call(
        _spdnet_kernel,
        out_shape=jax.ShapeDtypeStruct((N, con, con), f32),
        grid=(N,),
        in_specs=[
            pl.BlockSpec((1, cn, 1), lambda b: (b, 0, 0)),
            pl.BlockSpec((1, cn, cn), lambda b: (b, 0, 0)),
            pl.BlockSpec((cn, con), lambda b: (0, 0)),
            pl.BlockSpec((con, con), lambda b: (0, 0)),
        ],
        out_specs=pl.BlockSpec((1, con, con), lambda b: (b, 0, 0)),
        compiler_params=pltpu.CompilerParams(
            dimension_semantics=("parallel",)),   # N=2 keeps both v7x TCs busy
    )(lam, ublk, wmat, ablk)

    # Extract the (co, co) diagonal blocks (pure indexing, no FLOPs).
    z = jnp.stack([zfull[:, co * n:(co + 1) * n, co * n:(co + 1) * n]
                   for co in range(C_out)], axis=1)    # (N, C_out, n, n)
    return z.astype(x.dtype)


def init_params(key, C_out, C_in, n, dtype=jnp.float32):
    kw, km, kg = jax.random.split(key, 3)
    # BiMap Stiefel parameter: per-(c_out, c_in) orthogonal n x n matrix.
    raw = jax.random.normal(kw, (C_out, C_in, n, n), dtype=jnp.float32)
    q, _ = jnp.linalg.qr(raw)
    w = q.astype(dtype)

    # BatchNormSPD statistics/weight are identity at fresh PyTorch init (which would
    # make BN a no-op); use deterministic non-trivial SPD matrices so the congruence
    # transforms do real work.
    def spd(k):
        m = jax.random.normal(k, (n, n), dtype=jnp.float32)
        return (m @ m.T / n + jnp.eye(n, dtype=jnp.float32)).astype(dtype)

    return w, spd(km), spd(kg)


def ref_forward(x, w, running_mean, bn_weight):
    """Pure-JAX reference of ReEig -> BiMap -> BatchNormSPD (eval)."""
    lam, U = jnp.linalg.eigh(x)
    lam = jnp.maximum(lam, EPS_REEIG)
    xr = jnp.einsum('bcik,bck,bcjk->bcij', U, lam, U, precision='highest')
    y = jnp.einsum('ocia,bcij,ocjd->boad', w, xr, w, precision='highest')
    lm, Um = jnp.linalg.eigh(running_mean)
    g_m = (Um * (1.0 / jnp.sqrt(lm))[None, :]) @ Um.T
    lw, Uw = jnp.linalg.eigh(bn_weight)
    g_w = (Uw * jnp.sqrt(lw)[None, :]) @ Uw.T
    a = g_w @ g_m
    return jnp.einsum('pa,boad,qd->bopq', a, y, a, precision='highest')


if __name__ == "__main__":
    N, C_in, C_out, n = 2, 4, 4, 16  # batch, in-channels, out-channels, SPD dim

    key = jax.random.PRNGKey(0)
    kx, kp = jax.random.split(key)

    # SPD input; rank-deficient (rank n//2) so the ReEig clamp is exercised.
    m = jax.random.normal(kx, (N, C_in, n, n // 2), dtype=jnp.float32)
    x = jnp.einsum('bcik,bcjk->bcij', m, m)

    w, running_mean, bn_weight = init_params(kp, C_out, C_in, n)

    out = jax.block_until_ready(relu_conv_bn_spdnet(x, w, running_mean, bn_weight))
    ref = jax.block_until_ready(ref_forward(x, w, running_mean, bn_weight))

    assert out.shape == (N, C_out, n, n), out.shape
    assert jnp.all(jnp.isfinite(out))
    assert jnp.allclose(out, ref, rtol=5e-3, atol=5e-3), float(
        jnp.max(jnp.abs(out - ref)))

    print("KERNEL_OK")
</pallas_src>

<mosaic_0001>
module attributes {stable_mosaic.version = 11 : i64} {
  func.func @_spdnet_kernel(%arg0: i32, %arg1: memref<1x64x1xf32, #tpu.memory_space<vmem>>, %arg2: memref<1x64x64xf32, #tpu.memory_space<vmem>>, %arg3: memref<64x64xf32, #tpu.memory_space<vmem>>, %arg4: memref<64x64xf32, #tpu.memory_space<vmem>>, %arg5: memref<1x64x64xf32, #tpu.memory_space<vmem>>) attributes {dimension_semantics = [#tpu.dimension_semantics<parallel>], iteration_bounds = array<i64: 2>, scalar_prefetch = 0 : i64, scratch_operands = 0 : i64, tpu.core_type = #tpu.core_type<tc>, window_params = [{transform_indices = @transform_0, window_bounds = array<i64: 1, 64, 1>}, {transform_indices = @transform_1, window_bounds = array<i64: 1, 64, 64>}, {pipeline_mode = #tpu.pipeline_mode<synchronous>, transform_indices = @transform_2, window_bounds = array<i64: 64, 64>}, {pipeline_mode = #tpu.pipeline_mode<synchronous>, transform_indices = @transform_3, window_bounds = array<i64: 64, 64>}, {transform_indices = @transform_4, window_bounds = array<i64: 1, 64, 64>}]} {
    %c0 = arith.constant 0 : index
    %c0_0 = arith.constant 0 : index
    %c0_1 = arith.constant 0 : index
    %0 = vector.load %arg1[%c0, %c0_0, %c0_1] : memref<1x64x1xf32, #tpu.memory_space<vmem>>, vector<1x64x1xf32>
    %1 = vector.shape_cast %0 : vector<1x64x1xf32> to vector<64x1xf32>
    %cst = arith.constant 9.99999974E-5 : f32
    %2 = vector.broadcast %cst : f32 to vector<64x1xf32>
    %3 = arith.maximumf %1, %2 : vector<64x1xf32>
    %c0_2 = arith.constant 0 : index
    %c0_3 = arith.constant 0 : index
    %c0_4 = arith.constant 0 : index
    %4 = vector.load %arg2[%c0_2, %c0_3, %c0_4] : memref<1x64x64xf32, #tpu.memory_space<vmem>>, vector<1x64x64xf32>
    %5 = vector.shape_cast %4 : vector<1x64x64xf32> to vector<64x64xf32>
    %c0_5 = arith.constant 0 : index
    %c0_6 = arith.constant 0 : index
    %6 = vector.load %arg3[%c0_5, %c0_6] : memref<64x64xf32, #tpu.memory_space<vmem>>, vector<64x64xf32>
    %c0_7 = arith.constant 0 : index
    %c0_8 = arith.constant 0 : index
    %7 = vector.load %arg4[%c0_7, %c0_8] : memref<64x64xf32, #tpu.memory_space<vmem>>, vector<64x64xf32>
    %cst_9 = arith.constant dense<0.000000e+00> : vector<64x64xf32>
    %8 = tpu.matmul %5, %6, %cst_9 {dimension_numbers = #tpu.dot_dimension_numbers<[0], [0], [1], [1], [0, 1, 1, 1], [], []>, precision = #tpu.contract_precision<fp32>} : vector<64x64xf32>, vector<64x64xf32>, vector<64x64xf32> -> vector<64x64xf32>
    %9 = vector.broadcast %3 : vector<64x1xf32> to vector<64x64xf32>
    %10 = arith.mulf %9, %8 : vector<64x64xf32>
    %cst_10 = arith.constant dense<0.000000e+00> : vector<64x64xf32>
    %11 = tpu.matmul %8, %10, %cst_10 {dimension_numbers = #tpu.dot_dimension_numbers<[0], [0], [1], [1], [0, 1, 1, 1], [], []>, precision = #tpu.contract_precision<fp32>} : vector<64x64xf32>, vector<64x64xf32>, vector<64x64xf32> -> vector<64x64xf32>
    %cst_11 = arith.constant dense<0.000000e+00> : vector<64x64xf32>
    %12 = tpu.matmul %7, %11, %cst_11 {dimension_numbers = #tpu.dot_dimension_numbers<[1], [0], [0], [1], [0, 0, 1, 1], [], []>, precision = #tpu.contract_precision<fp32>} : vector<64x64xf32>, vector<64x64xf32>, vector<64x64xf32> -> vector<64x64xf32>
    %cst_12 = arith.constant dense<0.000000e+00> : vector<64x64xf32>
    %13 = tpu.matmul %12, %7, %cst_12 {dimension_numbers = #tpu.dot_dimension_numbers<[1], [1], [0], [0], [0, 0, 1, 0], [], []>, precision = #tpu.contract_precision<fp32>} : vector<64x64xf32>, vector<64x64xf32>, vector<64x64xf32> -> vector<64x64xf32>
    %c0_13 = arith.constant 0 : index
    %c0_14 = arith.constant 0 : index
    %c0_15 = arith.constant 0 : index
    %14 = vector.load %arg5[%c0_13, %c0_14, %c0_15] : memref<1x64x64xf32, #tpu.memory_space<vmem>>, vector<1x64x64xf32>
    %15 = vector.shape_cast %14 : vector<1x64x64xf32> to vector<64x64xf32>
    %16 = vector.shape_cast %13 : vector<64x64xf32> to vector<1x64x64xf32>
    tpu.vector_store %arg5[%c0_13, %c0_14, %c0_15], %16 {strides = array<i32>} : memref<1x64x64xf32, #tpu.memory_space<vmem>>, vector<1x64x64xf32>,
    return
  }
  func.func @transform_0(%arg0: i32) -> (i32, i32, i32) {
    %c0_i32 = arith.constant 0 : i32
    %c0_i32_0 = arith.constant 0 : i32
    %c0_i32_1 = arith.constant 0 : i32
    return %arg0, %c0_i32, %c0_i32_0 : i32, i32, i32
  }
  func.func @transform_1(%arg0: i32) -> (i32, i32, i32) {
    %c0_i32 = arith.constant 0 : i32
    %c0_i32_0 = arith.constant 0 : i32
    %c0_i32_1 = arith.constant 0 : i32
    return %arg0, %c0_i32, %c0_i32_0 : i32, i32, i32
  }
  func.func @transform_2(%arg0: i32) -> (i32, i32) {
    %c0_i32 = arith.constant 0 : i32
    %c0_i32_0 = arith.constant 0 : i32
    %c0_i32_1 = arith.constant 0 : i32
    return %c0_i32, %c0_i32_0 : i32, i32
  }
  func.func @transform_3(%arg0: i32) -> (i32, i32) {
    %c0_i32 = arith.constant 0 : i32
    %c0_i32_0 = arith.constant 0 : i32
    %c0_i32_1 = arith.constant 0 : i32
    return %c0_i32, %c0_i32_0 : i32, i32
  }
  func.func @transform_4(%arg0: i32) -> (i32, i32, i32) {
    %c0_i32 = arith.constant 0 : i32
    %c0_i32_0 = arith.constant 0 : i32
    %c0_i32_1 = arith.constant 0 : i32
    return %arg0, %c0_i32, %c0_i32_0 : i32, i32, i32
  }
}

</mosaic_0001>

<llo_original>
// kernel: tpu_custom_call.1
$region0: #{tpu_custom_call.1}
  #allocation0 [shape = 'u32[]', space=smem, size = 0x4, offset = 0x4, fixed_abs, tag = 'smem constant byte address 0x4 - core index']
  #allocation1 [shape = 'u32[144,128]{1,0:T(1,128)}', space=vmem, size = 0x12000, scoped, tag = 'internal scratch']
  %s0 = inlined_call_operand.vmem [shape: f32[2,64,1], index: 0, kind: input, shape index: {}]
  %s1 = inlined_call_operand.vmem [shape: f32[2,64,64], index: 1, kind: input, shape index: {}]
  %s2 = inlined_call_operand.hbm [shape: f32[64,64], index: 2, kind: input, shape index: {}]
  %s3 = inlined_call_operand.hbm [shape: f32[64,64], index: 3, kind: input, shape index: {}]
  %s4 = inlined_call_operand.hbm [shape: f32[2,64,64], index: 4, kind: output, shape index: {}]
  %s5 = sld [smem:[#allocation0]]
  $region57: #{tpu_custom_call.1} parent=0
    _
  %s7 = ssub.s32 1, %s5
  %s8 = scalar_select 0, %s7, %s5
  $region1: #{tpu_custom_call.1} parent=0
    #allocation2 [shape = 'u8[32768]{0}', space=vmem, size = 0x8000, scoped, tag = 'input window, operand 2, single buffered']
    #allocation3 [shape = 's32[2]{0}', space=sflag, size = 0x8, scoped, tag = 'scoped memory for tpu_custom_call.1']
    #allocation4 [shape = 's32[2]{0}', space=sflag, size = 0x8, scoped, tag = 'scoped memory for tpu_custom_call.1']
    #allocation5 [shape = 'u8[32768]{0}', space=vmem, size = 0x8000, scoped, tag = 'input window, operand 3, single buffered']
    #allocation6 [shape = 's32[1]{0}', space=sflag, size = 0x4, scoped, tag = 'scoped memory for tpu_custom_call.1']
    #allocation7 [shape = 'u8[65536]{0}', space=vmem, size = 0x10000, scoped, tag = 'output window, operand 0']
    %9 = vsyncpa [#allocation3], 0
    %10 = vsyncpa [#allocation6], 0
    %11 = vsyncpa [#allocation4], 0
    %s12 = scalar_lea.sflag [#allocation4], 1
    %13 = vsyncpa %s12, 0
    loop: start=0, step=1, limit=4
    $region2: #{tpu_custom_call.1} parent=1 // loop_pre_header
      _
    $region3: #{tpu_custom_call.1} parent=1 // loop_header
      %s15 = sphi 0, %s19
      %p16 = scmp.ge.s32.totalorder %s15, 4
      %s25 = sphi 0, %s27
      %s28 = sphi 0, %s25
      %s29 = sphi 0, %s28
      %s45 = sphi 0, %s29
      %s51 = sphi 0, %s53
      %s54 = sphi 0, %s51
      %s55 = sphi 0, %s54
      %s71 = sphi 0, %s55
      %s75 = sphi 0, %s75
      %s77 = sphi 0, %s75
      %s78 = sphi 0, %s77
      %s92 = sphi 0, %s78
      %s96 = sphi 0, %s96
      %s98 = sphi 0, %s96
      %s99 = sphi 0, %s98
      %s113 = sphi 0, %s99
      %s119 = sphi 0, %s121
      %s122 = sphi 0, %s119
      %s123 = sphi 0, %s122
      %s139 = sphi 0, %s123
    $region4: #{tpu_custom_call.1} parent=1 // loop_header_branch
      %18 = sbr.rel (%p16) target = $region8
    $region5: #{tpu_custom_call.1} parent=1 // loop_body
      %s20 = ssub.s32 %s15, 1
      %s21 = ssub.s32 %s15, 2
      %s22 = sadd.s32 %s15, 1
      %s23 = ssub.s32 %s15, %s22
      %p24 = scmp.eq.s32.totalorder %s23, 0
      %s26 = sadd.s32 %s25, 1
      %s27 = scalar_select %p24, %s25, %s26
      %p30 = pneg %p24
      %p31 = scmp.eq.s32.totalorder %s15, 1
      %p32 = por %p30, %p31
      %p33 = scmp.ne.s32.totalorder %s25, %s28
      %p34 = scmp.eq.s32.totalorder %s15, 0
      %p35 = por %p33, %p34
      %p36 = scmp.ne.s32.totalorder %s25, %s28
      %p37 = scmp.eq.s32.totalorder %s20, 1
      %p38 = por %p36, %p37
      %p39 = scmp.ne.s32.totalorder %s28, %s29
      %p40 = scmp.eq.s32.totalorder %s20, 0
      %p41 = por %p39, %p40
      %p42 = scmp.ne.s32.totalorder %s28, %s29
      %p43 = scmp.eq.s32.totalorder %s21, 1
      %p44 = por %p42, %p43
      %p46 = scmp.ne.s32.totalorder %s29, %s45
      %p47 = scmp.eq.s32.totalorder %s21, 0
      %p48 = por %p46, %p47
      %s49 = ssub.s32 %s15, %s22
      %p50 = scmp.eq.s32.totalorder %s49, 0
      %s52 = sadd.s32 %s51, 1
      %s53 = scalar_select %p50, %s51, %s52
      %p56 = pneg %p50
      %p57 = scmp.eq.s32.totalorder %s15, 1
      %p58 = por %p56, %p57
      %p59 = scmp.ne.s32.totalorder %s51, %s54
      %p60 = scmp.eq.s32.totalorder %s15, 0
      %p61 = por %p59, %p60
      %p62 = scmp.ne.s32.totalorder %s51, %s54
      %p63 = scmp.eq.s32.totalorder %s20, 1
      %p64 = por %p62, %p63
      %p65 = scmp.ne.s32.totalorder %s54, %s55
      %p66 = scmp.eq.s32.totalorder %s20, 0
      %p67 = por %p65, %p66
      %p68 = scmp.ne.s32.totalorder %s54, %s55
      %p69 = scmp.eq.s32.totalorder %s21, 1
      %p70 = por %p68, %p69
      %p72 = scmp.ne.s32.totalorder %s55, %s71
      %p73 = scmp.eq.s32.totalorder %s21, 0
      %p74 = por %p72, %p73
      %s76 = sadd.s32 %s75, 1
      %p79 = scmp.eq.s32.totalorder %s15, 1
      %p80 = scmp.ne.s32.totalorder %s75, %s77
      %p81 = scmp.eq.s32.totalorder %s15, 0
      %p82 = por %p80, %p81
      %p83 = scmp.ne.s32.totalorder %s75, %s77
      %p84 = scmp.eq.s32.totalorder %s20, 1
      %p85 = por %p83, %p84
      %p86 = scmp.ne.s32.totalorder %s77, %s78
      %p87 = scmp.eq.s32.totalorder %s20, 0
      %p88 = por %p86, %p87
      %p89 = scmp.ne.s32.totalorder %s77, %s78
      %p90 = scmp.eq.s32.totalorder %s21, 1
      %p91 = por %p89, %p90
      %p93 = scmp.ne.s32.totalorder %s78, %s92
      %p94 = scmp.eq.s32.totalorder %s21, 0
      %p95 = por %p93, %p94
      %s97 = sadd.s32 %s96, 1
      %p100 = scmp.eq.s32.totalorder %s15, 1
      %p101 = scmp.ne.s32.totalorder %s96, %s98
      %p102 = scmp.eq.s32.totalorder %s15, 0
      %p103 = por %p101, %p102
      %p104 = scmp.ne.s32.totalorder %s96, %s98
      %p105 = scmp.eq.s32.totalorder %s20, 1
      %p106 = por %p104, %p105
      %p107 = scmp.ne.s32.totalorder %s98, %s99
      %p108 = scmp.eq.s32.totalorder %s20, 0
      %p109 = por %p107, %p108
      %p110 = scmp.ne.s32.totalorder %s98, %s99
      %p111 = scmp.eq.s32.totalorder %s21, 1
      %p112 = por %p110, %p111
      %p114 = scmp.ne.s32.totalorder %s99, %s113
      %p115 = scmp.eq.s32.totalorder %s21, 0
      %p116 = por %p114, %p115
      %s117 = ssub.s32 %s15, %s22
      %p118 = scmp.eq.s32.totalorder %s117, 0
      %s120 = sadd.s32 %s119, 1
      %s121 = scalar_select %p118, %s119, %s120
      %p124 = pneg %p118
      %p125 = scmp.eq.s32.totalorder %s15, 1
      %p126 = por %p124, %p125
      %p127 = scmp.ne.s32.totalorder %s119, %s122
      %p128 = scmp.eq.s32.totalorder %s15, 0
      %p129 = por %p127, %p128
      %p130 = scmp.ne.s32.totalorder %s119, %s122
      %p131 = scmp.eq.s32.totalorder %s20, 1
      %p132 = por %p130, %p131
      %p133 = scmp.ne.s32.totalorder %s122, %s123
      %p134 = scmp.eq.s32.totalorder %s20, 0
      %p135 = por %p133, %p134
      %p136 = scmp.ne.s32.totalorder %s122, %s123
      %p137 = scmp.eq.s32.totalorder %s21, 1
      %p138 = por %p136, %p137
      %p140 = scmp.ne.s32.totalorder %s123, %s139
      %p141 = scmp.eq.s32.totalorder %s21, 0
      %p142 = por %p140, %p141
      %p143 = scmp.le.s32.totalorder 1, %s15
      %p144 = scmp.lt.s32.totalorder %s15, 3
      %p145 = pnand %p143, %p144
      %p146 = pneg %p145
      // Predicated region
      $region9: #{tpu_custom_call.1} parent=5 // pred_check
        _
      $region10: #{tpu_custom_call.1} parent=5 // pred_check_branch
        %148 = sbr.rel (%p145) target = $region12
      $region11: #{tpu_custom_call.1} parent=5 // pred_region
        %s149 = ssub.s32 %s15, 1
        // Predicated region
        $region13: #{tpu_custom_call.1} parent=11 // pred_check
          %p150 = pneg %p88
        $region14: #{tpu_custom_call.1} parent=11 // pred_check_branch
          %152 = sbr.rel (%p150) target = $region16
        $region15: #{tpu_custom_call.1} parent=11 // pred_region
          %s154 = ssub.s32 1024, 1024
          %155 = vsyncadd [#allocation3], %s154
          %s156 = sshll.u32 [#allocation2], 4
          %s157 = int_to_ptr.vmem [resolvable:$true] %s156
          %162 = dma.hbm_to_vmem [thread:$0]  %s2, 1024, %s157, [#allocation3], 128, 128, 8
        $region16: #{tpu_custom_call.1} parent=11 // pred_fallthru
          _
        // Predicated region
        $region17: #{tpu_custom_call.1} parent=11 // pred_check
          %p163 = pneg %p109
        $region18: #{tpu_custom_call.1} parent=11 // pred_check_branch
          %165 = sbr.rel (%p163) target = $region20
        $region19: #{tpu_custom_call.1} parent=11 // pred_region
          %s167 = ssub.s32 1024, 1024
          %168 = vsyncadd [#allocation6], %s167
          %s169 = sshll.u32 [#allocation5], 4
          %s170 = int_to_ptr.vmem [resolvable:$true] %s169
          %175 = dma.hbm_to_vmem [thread:$0]  %s3, 1024, %s170, [#allocation6], 128, 128, 8
        $region20: #{tpu_custom_call.1} parent=11 // pred_fallthru
          _
      $region12: #{tpu_custom_call.1} parent=5 // pred_fallthru
        _
      %p176 = scmp.lt.s32.totalorder %s15, 2
      // Predicated region
      $region21: #{tpu_custom_call.1} parent=5 // pred_check
        %p177 = pneg %p176
      $region22: #{tpu_custom_call.1} parent=5 // pred_check_branch
        %179 = sbr.rel (%p177) target = $region24
      $region23: #{tpu_custom_call.1} parent=5 // pred_region
        // Predicated region
        $region25: #{tpu_custom_call.1} parent=23 // pred_check
          %p180 = pneg %p35
        $region26: #{tpu_custom_call.1} parent=23 // pred_check_branch
          %182 = sbr.rel (%p180) target = $region28
        $region27: #{tpu_custom_call.1} parent=23 // pred_region
          %p183 = scmp.lt.s32.totalorder %s15, 1
          %s184 = scalar_select %p183, %s15, 1
          %s185 = smul.addr %s184, 8
          %s186 = smul.addr %s185, 8
          %s187 = scalar_lea.vmem %s0, %s186
        $region28: #{tpu_custom_call.1} parent=23 // pred_fallthru
          _
        // Predicated region
        $region29: #{tpu_custom_call.1} parent=23 // pred_check
          %p188 = pneg %p61
        $region30: #{tpu_custom_call.1} parent=23 // pred_check_branch
          %190 = sbr.rel (%p188) target = $region32
        $region31: #{tpu_custom_call.1} parent=23 // pred_region
          %p191 = scmp.lt.s32.totalorder %s15, 1
          %s192 = scalar_select %p191, %s15, 1
          %s193 = smul.addr %s192, 8
          %s194 = smul.addr %s193, 8
          %s195 = scalar_lea.vmem %s1, %s194
        $region32: #{tpu_custom_call.1} parent=23 // pred_fallthru
          _
      $region24: #{tpu_custom_call.1} parent=5 // pred_fallthru
        _
      %p196 = scmp.le.s32.totalorder 1, %s15
      %p197 = scmp.lt.s32.totalorder %s15, 3
      %p198 = pnand %p196, %p197
      %p199 = pneg %p198
      // Predicated region
      $region33: #{tpu_custom_call.1} parent=5 // pred_check
        _
      $region34: #{tpu_custom_call.1} parent=5 // pred_check_branch
        %201 = sbr.rel (%p198) target = $region36
      $region35: #{tpu_custom_call.1} parent=5 // pred_region
        %s202 = ssub.s32 %s15, 1
        // Predicated region
        $region37: #{tpu_custom_call.1} parent=35 // pred_check
          %p203 = pneg %p88
        $region38: #{tpu_custom_call.1} parent=35 // pred_check_branch
          %205 = sbr.rel (%p203) target = $region40
        $region39: #{tpu_custom_call.1} parent=35 // pred_region
          %206 = dma.done [#allocation3], 1024
        $region40: #{tpu_custom_call.1} parent=35 // pred_fallthru
          _
        // Predicated region
        $region41: #{tpu_custom_call.1} parent=35 // pred_check
          %p207 = pneg %p109
        $region42: #{tpu_custom_call.1} parent=35 // pred_check_branch
          %209 = sbr.rel (%p207) target = $region44
        $region43: #{tpu_custom_call.1} parent=35 // pred_region
          %210 = dma.done [#allocation6], 1024
        $region44: #{tpu_custom_call.1} parent=35 // pred_fallthru
          _
        %p211 = scmp.lt.s32.totalorder %s20, 1
        %s212 = scalar_select %p211, %s20, 1
        %s213 = smul.addr %s212, 8
        %s214 = smul.addr %s213, 8
        %s215 = scalar_lea.vmem %s0, %s214
        %p216 = pneg %p41
        %p217 = pneg %p38
        %p218 = scmp.lt.s32.totalorder %s20, 1
        %s219 = scalar_select %p218, %s20, 1
        %s220 = smul.addr %s219, 8
        %s221 = smul.addr %s220, 8
        %s222 = scalar_lea.vmem %s1, %s221
        %p223 = pneg %p67
        %p224 = pneg %p64
        %p225 = pneg %p88
        %p226 = pneg %p85
        %p227 = pneg %p109
        %p228 = pneg %p106
        %p229 = pneg %p135
        %p230 = pneg %p132
        %s231 = sand.u32 %s122, 1
        %s232 = scalar_lea.sflag [#allocation4], %s231
        %s233 = sand.u32 %s122, 1
        %s234 = smul.addr %s233, 64
        %s235 = scalar_lea.vmem [#allocation7], %s234
        %p236 = scmp.lt.s32.totalorder %s20, 1
        %s237 = scalar_select %p236, %s20, 1
        %s238 = smul.addr %s237, 8
        %s239 = smul.addr %s238, 8
        %s240 = scalar_lea.vmem %s0, %s239
        %p241 = scmp.lt.s32.totalorder %s20, 1
        %s242 = scalar_select %p241, %s20, 1
        %s243 = smul.addr %s242, 8
        %s244 = smul.addr %s243, 8
        %s245 = scalar_lea.vmem %s1, %s244
        %v246 = vld [vmem:[%s240] sm:$0xff]
        %v247 = vld [vmem:[%s240 + $0x8] sm:$0xff]
        %v248 = vld [vmem:[%s240 + $0x10] sm:$0xff]
        %v249 = vld [vmem:[%s240 + $0x18] sm:$0xff]
        %v250 = vld [vmem:[%s240 + $0x20] sm:$0xff]
        %v251 = vld [vmem:[%s240 + $0x28] sm:$0xff]
        %v252 = vld [vmem:[%s240 + $0x30] sm:$0xff]
        %v253 = vld [vmem:[%s240 + $0x38] sm:$0xff]
        %v254 = vmax.f32 %v246, 0.0001
        %v255 = vmax.f32 %v247, 0.0001
        %v256 = vmax.f32 %v248, 0.0001
        %v257 = vmax.f32 %v249, 0.0001
        %v258 = vmax.f32 %v250, 0.0001
        %v259 = vmax.f32 %v251, 0.0001
        %v260 = vmax.f32 %v252, 0.0001
        %v261 = vmax.f32 %v253, 0.0001
        %v262 = vld [vmem:[%s245] sm:$0xff]
        %v263 = vld [vmem:[%s245 + $0x8] sm:$0xff]
        %v264 = vld [vmem:[%s245 + $0x10] sm:$0xff]
        %v265 = vld [vmem:[%s245 + $0x18] sm:$0xff]
        %v266 = vld [vmem:[%s245 + $0x20] sm:$0xff]
        %v267 = vld [vmem:[%s245 + $0x28] sm:$0xff]
        %v268 = vld [vmem:[%s245 + $0x30] sm:$0xff]
        %v269 = vld [vmem:[%s245 + $0x38] sm:$0xff]
        %v270 = vld [vmem:[#allocation2] sm:$0xff]
        %v271 = vld [vmem:[#allocation2 + $0x8] sm:$0xff]
        %v272 = vld [vmem:[#allocation2 + $0x10] sm:$0xff]
        %v273 = vld [vmem:[#allocation2 + $0x18] sm:$0xff]
        %v274 = vld [vmem:[#allocation2 + $0x20] sm:$0xff]
        %v275 = vld [vmem:[#allocation2 + $0x28] sm:$0xff]
        %v276 = vld [vmem:[#allocation2 + $0x30] sm:$0xff]
        %v277 = vld [vmem:[#allocation2 + $0x38] sm:$0xff]
        %v278 = vld [vmem:[#allocation5] sm:$0xff]
        %v279 = vld [vmem:[#allocation5 + $0x8] sm:$0xff]
        %v280 = vld [vmem:[#allocation5 + $0x10] sm:$0xff]
        %v281 = vld [vmem:[#allocation5 + $0x18] sm:$0xff]
        %v282 = vld [vmem:[#allocation5 + $0x20] sm:$0xff]
        %v283 = vld [vmem:[#allocation5 + $0x28] sm:$0xff]
        %v284 = vld [vmem:[#allocation5 + $0x30] sm:$0xff]
        %v285 = vld [vmem:[#allocation5 + $0x38] sm:$0xff]
        %286 = vxpose.xlu0.b32.start [1/16] %v262, 128
        %287 = vxpose.xlu0.b32.cont [2/16] %v263, 128
        %288 = vxpose.xlu0.b32.cont [3/16] %v264, 128
        %289 = vxpose.xlu0.b32.cont [4/16] %v265, 128
        %290 = vxpose.xlu0.b32.cont [5/16] %v266, 128
        %291 = vxpose.xlu0.b32.cont [6/16] %v267, 128
        %292 = vxpose.xlu0.b32.cont [7/16] %v268, 128
        %293 = vxpose.xlu0.b32.cont [8/16] %v269, 128
        %294 = vxpose.xlu0.b32.cont [9/16] 0.0, 128
        %295 = vxpose.xlu0.b32.cont [10/16] 0.0, 128
        %296 = vxpose.xlu0.b32.cont [11/16] 0.0, 128
        %297 = vxpose.xlu0.b32.cont [12/16] 0.0, 128
        %298 = vxpose.xlu0.b32.cont [13/16] 0.0, 128
        %299 = vxpose.xlu0.b32.cont [14/16] 0.0, 128
        %300 = vxpose.xlu0.b32.cont [15/16] 0.0, 128
        %301 = vxpose.xlu0.b32.end [16/16] 0.0, 128
        %v302 = vpop.trf.xlu0
        %v303 = vpop.trf.xlu0
        %v304 = vpop.trf.xlu0
        %v305 = vpop.trf.xlu0
        %v306 = vpop.trf.xlu0
        %v307 = vpop.trf.xlu0
        %v308 = vpop.trf.xlu0
        %v309 = vpop.trf.xlu0
        %v310 = vpop.trf.xlu0
        %v311 = vpop.trf.xlu0
        %v312 = vpop.trf.xlu0
        %v313 = vpop.trf.xlu0
        %v314 = vpop.trf.xlu0
        %v315 = vpop.trf.xlu0
        %v316 = vpop.trf.xlu0
        %v317 = vpop.trf.xlu0
        %vm318 = vcmask 523264
        %v320 = vsel %vm318, %v302, 0
        %v323 = vsel %vm318, %v303, 0
        %v326 = vsel %vm318, %v304, 0
        %v329 = vsel %vm318, %v305, 0
        %v332 = vsel %vm318, %v306, 0
        %v335 = vsel %vm318, %v307, 0
        %v338 = vsel %vm318, %v308, 0
        %v341 = vsel %vm318, %v309, 0
        %343 = vmatprep.subr.mxu0 0.0
        %344 = vmatpush1.msra.mxu0 0.0
        %345 = vmatprep.subr.mxu0 0.0
        %346 = vmatpush1.msra.mxu0 0.0
        %347 = vmatprep.subr.mxu0 0.0
        %348 = vmatpush1.msra.mxu0 0.0
        %349 = vmatprep.subr.mxu0 0.0
        %350 = vmatpush1.msra.mxu0 0.0
        %351 = vmatprep.subr.mxu0 0.0
        %352 = vmatpush1.msra.mxu0 0.0
        %353 = vmatprep.subr.mxu0 0.0
        %354 = vmatpush1.msra.mxu0 0.0
        %355 = vmatprep.subr.mxu0 0.0
        %356 = vmatpush1.msra.mxu0 0.0
        %357 = vmatprep.subr.mxu0 0.0
        %358 = vmatpush1.msra.mxu0 0.0
        %359 = vmatprep.subr.mxu0 0.0
        %v360 = vand.u32 %v277, 4294901760
        %361 = vmatpush1.msra.mxu0 %v360
        %362 = vmatprep.subr.mxu0 0.0
        %v363 = vand.u32 %v276, 4294901760
        %364 = vmatpush1.msra.mxu0 %v363
        %365 = vmatprep.subr.mxu0 0.0
        %v366 = vand.u32 %v275, 4294901760
        %367 = vmatpush1.msra.mxu0 %v366
        %368 = vmatprep.subr.mxu0 0.0
        %v369 = vand.u32 %v274, 4294901760
        %370 = vmatpush1.msra.mxu0 %v369
        %371 = vmatprep.subr.mxu0 0.0
        %v372 = vand.u32 %v273, 4294901760
        %373 = vmatpush1.msra.mxu0 %v372
        %374 = vmatprep.subr.mxu0 0.0
        %v375 = vand.u32 %v272, 4294901760
        %376 = vmatpush1.msra.mxu0 %v375
        %377 = vmatprep.subr.mxu0 0.0
        %v378 = vand.u32 %v271, 4294901760
        %379 = vmatpush1.msra.mxu0 %v378
        %380 = vmatprep.subr.mxu0 0.0
        %v381 = vand.u32 %v270, 4294901760
        %382 = vmatpush1.msra.mxu0 %v381
        %383 = vmatprep.subr.mxu0 0.0
        %384 = vmatpush2.msra.mxu0 0.0
        %385 = vmatprep.subr.mxu0 0.0
        %386 = vmatpush2.msra.mxu0 0.0
        %387 = vmatprep.subr.mxu0 0.0
        %388 = vmatpush2.msra.mxu0 0.0
        %389 = vmatprep.subr.mxu0 0.0
        %390 = vmatpush2.msra.mxu0 0.0
        %391 = vmatprep.subr.mxu0 0.0
        %392 = vmatpush2.msra.mxu0 0.0
        %393 = vmatprep.subr.mxu0 0.0
        %394 = vmatpush2.msra.mxu0 0.0
        %395 = vmatprep.subr.mxu0 0.0
        %396 = vmatpush2.msra.mxu0 0.0
        %397 = vmatprep.subr.mxu0 0.0
        %398 = vmatpush2.msra.mxu0 0.0
        %399 = vmatprep.subr.mxu0 0.0
        %400 = vmatpush2.msra.mxu0 0.0
        %401 = vmatprep.subr.mxu0 0.0
        %402 = vmatpush2.msra.mxu0 0.0
        %403 = vmatprep.subr.mxu0 0.0
        %404 = vmatpush2.msra.mxu0 0.0
        %405 = vmatprep.subr.mxu0 0.0
        %406 = vmatpush2.msra.mxu0 0.0
        %407 = vmatprep.subr.mxu0 0.0
        %408 = vmatpush2.msra.mxu0 0.0
        %409 = vmatprep.subr.mxu0 0.0
        %410 = vmatpush2.msra.mxu0 0.0
        %411 = vmatprep.subr.mxu0 0.0
        %412 = vmatpush2.msra.mxu0 0.0
        %413 = vmatprep.subr.mxu0 0.0
        %414 = vmatpush2.msra.mxu0 0.0
        %415 = vmatprep.mubr.f32.mxu0 0.0
        %v416 = vand.u32 %v320, 4294901760
        %v417 = vsub.f32 %v320, %v416
        %v418 = vand.u32 %v417, 4294901760
        %v419 = vsub.f32 %v417, %v418
        %v420 = vand.u32 %v419, 4294901760
        %421 = vmatmul.mubr.f32.gmra.mxu0 %v420
        %v422 = vpop.f32.mrf.mxu0
        %v423 = vadd.f32 0.0, %v422
        %v424 = vpop.f32.mrf.mxu0
        %425 = vmatprep.mubr.f32.mxu0 0.0
        %v426 = vand.u32 %v323, 4294901760
        %v427 = vsub.f32 %v323, %v426
        %v428 = vand.u32 %v427, 4294901760
        %v429 = vsub.f32 %v427, %v428
        %v430 = vand.u32 %v429, 4294901760
        %431 = vmatmul.mubr.f32.gmra.mxu0 %v430
        %v432 = vpop.f32.mrf.mxu0
        %v433 = vadd.f32 0.0, %v432
        %v434 = vpop.f32.mrf.mxu0
        %435 = vmatprep.mubr.f32.mxu0 0.0
        %v436 = vand.u32 %v326, 4294901760
        %v437 = vsub.f32 %v326, %v436
        %v438 = vand.u32 %v437, 4294901760
        %v439 = vsub.f32 %v437, %v438
        %v440 = vand.u32 %v439, 4294901760
        %441 = vmatmul.mubr.f32.gmra.mxu0 %v440
        %v442 = vpop.f32.mrf.mxu0
        %v443 = vadd.f32 0.0, %v442
        %v444 = vpop.f32.mrf.mxu0
        %445 = vmatprep.mubr.f32.mxu0 0.0
        %v446 = vand.u32 %v329, 4294901760
        %v447 = vsub.f32 %v329, %v446
        %v448 = vand.u32 %v447, 4294901760
        %v449 = vsub.f32 %v447, %v448
        %v450 = vand.u32 %v449, 4294901760
        %451 = vmatmul.mubr.f32.gmra.mxu0 %v450
        %v452 = vpop.f32.mrf.mxu0
        %v453 = vadd.f32 0.0, %v452
        %v454 = vpop.f32.mrf.mxu0
        %455 = vmatprep.mubr.f32.mxu0 0.0
        %v456 = vand.u32 %v332, 4294901760
        %v457 = vsub.f32 %v332, %v456
        %v458 = vand.u32 %v457, 4294901760
        %v459 = vsub.f32 %v457, %v458
        %v460 = vand.u32 %v459, 4294901760
        %461 = vmatmul.mubr.f32.gmra.mxu0 %v460
        %v462 = vpop.f32.mrf.mxu0
        %v463 = vadd.f32 0.0, %v462
        %v464 = vpop.f32.mrf.mxu0
        %465 = vmatprep.mubr.f32.mxu0 0.0
        %v466 = vand.u32 %v335, 4294901760
        %v467 = vsub.f32 %v335, %v466
        %v468 = vand.u32 %v467, 4294901760
        %v469 = vsub.f32 %v467, %v468
        %v470 = vand.u32 %v469, 4294901760
        %471 = vmatmul.mubr.f32.gmra.mxu0 %v470
        %v472 = vpop.f32.mrf.mxu0
        %v473 = vadd.f32 0.0, %v472
        %v474 = vpop.f32.mrf.mxu0
        %475 = vmatprep.mubr.f32.mxu0 0.0
        %v476 = vand.u32 %v338, 4294901760
        %v477 = vsub.f32 %v338, %v476
        %v478 = vand.u32 %v477, 4294901760
        %v479 = vsub.f32 %v477, %v478
        %v480 = vand.u32 %v479, 4294901760
        %481 = vmatmul.mubr.f32.gmra.mxu0 %v480
        %v482 = vpop.f32.mrf.mxu0
        %v483 = vadd.f32 0.0, %v482
        %v484 = vpop.f32.mrf.mxu0
        %485 = vmatprep.mubr.f32.mxu0 0.0
        %v486 = vand.u32 %v341, 4294901760
        %v487 = vsub.f32 %v341, %v486
        %v488 = vand.u32 %v487, 4294901760
        %v489 = vsub.f32 %v487, %v488
        %v490 = vand.u32 %v489, 4294901760
        %491 = vmatmul.mubr.f32.gmra.mxu0 %v490
        %v492 = vpop.f32.mrf.mxu0
        %v493 = vadd.f32 0.0, %v492
        %v494 = vpop.f32.mrf.mxu0
        %495 = vdwg.mxu0
        %496 = vmatprep.subr.mxu0 0.0
        %497 = vmatpush1.msra.mxu0 0.0
        %498 = vmatprep.subr.mxu0 0.0
        %499 = vmatpush1.msra.mxu0 0.0
        %500 = vmatprep.subr.mxu0 0.0
        %501 = vmatpush1.msra.mxu0 0.0
        %502 = vmatprep.subr.mxu0 0.0
        %503 = vmatpush1.msra.mxu0 0.0
        %504 = vmatprep.subr.mxu0 0.0
        %505 = vmatpush1.msra.mxu0 0.0
        %506 = vmatprep.subr.mxu0 0.0
        %507 = vmatpush1.msra.mxu0 0.0
        %508 = vmatprep.subr.mxu0 0.0
        %509 = vmatpush1.msra.mxu0 0.0
        %510 = vmatprep.subr.mxu0 0.0
        %511 = vmatpush1.msra.mxu0 0.0
        %512 = vmatprep.subr.mxu0 0.0
        %v513 = vand.u32 %v277, 4294901760
        %v514 = vsub.f32 %v277, %v513
        %v515 = vand.u32 %v514, 4294901760
        %v516 = vsub.f32 %v514, %v515
        %v517 = vand.u32 %v516, 4294901760
        %518 = vmatpush1.msra.mxu0 %v517
        %519 = vmatprep.subr.mxu0 0.0
        %v520 = vand.u32 %v276, 4294901760
        %v521 = vsub.f32 %v276, %v520
        %v522 = vand.u32 %v521, 4294901760
        %v523 = vsub.f32 %v521, %v522
        %v524 = vand.u32 %v523, 4294901760
        %525 = vmatpush1.msra.mxu0 %v524
        %526 = vmatprep.subr.mxu0 0.0
        %v527 = vand.u32 %v275, 4294901760
        %v528 = vsub.f32 %v275, %v527
        %v529 = vand.u32 %v528, 4294901760
        %v530 = vsub.f32 %v528, %v529
        %v531 = vand.u32 %v530, 4294901760
        %532 = vmatpush1.msra.mxu0 %v531
        %533 = vmatprep.subr.mxu0 0.0
        %v534 = vand.u32 %v274, 4294901760
        %v535 = vsub.f32 %v274, %v534
        %v536 = vand.u32 %v535, 4294901760
        %v537 = vsub.f32 %v535, %v536
        %v538 = vand.u32 %v537, 4294901760
        %539 = vmatpush1.msra.mxu0 %v538
        %540 = vmatprep.subr.mxu0 0.0
        %v541 = vand.u32 %v273, 4294901760
        %v542 = vsub.f32 %v273, %v541
        %v543 = vand.u32 %v542, 4294901760
        %v544 = vsub.f32 %v542, %v543
        %v545 = vand.u32 %v544, 4294901760
        %546 = vmatpush1.msra.mxu0 %v545
        %547 = vmatprep.subr.mxu0 0.0
        %v548 = vand.u32 %v272, 4294901760
        %v549 = vsub.f32 %v272, %v548
        %v550 = vand.u32 %v549, 4294901760
        %v551 = vsub.f32 %v549, %v550
        %v552 = vand.u32 %v551, 4294901760
        %553 = vmatpush1.msra.mxu0 %v552
        %554 = vmatprep.subr.mxu0 0.0
        %v555 = vand.u32 %v271, 4294901760
        %v556 = vsub.f32 %v271, %v555
        %v557 = vand.u32 %v556, 4294901760
        %v558 = vsub.f32 %v556, %v557
        %v559 = vand.u32 %v558, 4294901760
        %560 = vmatpush1.msra.mxu0 %v559
        %561 = vmatprep.subr.mxu0 0.0
        %v562 = vand.u32 %v270, 4294901760
        %v563 = vsub.f32 %v270, %v562
        %v564 = vand.u32 %v563, 4294901760
        %v565 = vsub.f32 %v563, %v564
        %v566 = vand.u32 %v565, 4294901760
        %567 = vmatpush1.msra.mxu0 %v566
        %568 = vmatprep.subr.mxu0 0.0
        %569 = vmatpush2.msra.mxu0 0.0
        %570 = vmatprep.subr.mxu0 0.0
        %571 = vmatpush2.msra.mxu0 0.0
        %572 = vmatprep.subr.mxu0 0.0
        %573 = vmatpush2.msra.mxu0 0.0
        %574 = vmatprep.subr.mxu0 0.0
        %575 = vmatpush2.msra.mxu0 0.0
        %576 = vmatprep.subr.mxu0 0.0
        %577 = vmatpush2.msra.mxu0 0.0
        %578 = vmatprep.subr.mxu0 0.0
        %579 = vmatpush2.msra.mxu0 0.0
        %580 = vmatprep.subr.mxu0 0.0
        %581 = vmatpush2.msra.mxu0 0.0
        %582 = vmatprep.subr.mxu0 0.0
        %583 = vmatpush2.msra.mxu0 0.0
        %584 = vmatprep.subr.mxu0 0.0
        %585 = vmatpush2.msra.mxu0 0.0
        %586 = vmatprep.subr.mxu0 0.0
        %587 = vmatpush2.msra.mxu0 0.0
        %588 = vmatprep.subr.mxu0 0.0
        %589 = vmatpush2.msra.mxu0 0.0
        %590 = vmatprep.subr.mxu0 0.0
        %591 = vmatpush2.msra.mxu0 0.0
        %592 = vmatprep.subr.mxu0 0.0
        %593 = vmatpush2.msra.mxu0 0.0
        %594 = vmatprep.subr.mxu0 0.0
        %595 = vmatpush2.msra.mxu0 0.0
        %596 = vmatprep.subr.mxu0 0.0
        %597 = vmatpush2.msra.mxu0 0.0
        %598 = vmatprep.subr.mxu0 0.0
        %599 = vmatpush2.msra.mxu0 0.0
        %600 = vmatprep.mubr.f32.mxu0 0.0
        %v601 = vand.u32 %v320, 4294901760
        %602 = vmatmul.mubr.f32.gmra.mxu0 %v601
        %v603 = vpop.f32.mrf.mxu0
        %v604 = vadd.f32 %v423, %v603
        %v605 = vpop.f32.mrf.mxu0
        %606 = vmatprep.mubr.f32.mxu0 0.0
        %v607 = vand.u32 %v323, 4294901760
        %608 = vmatmul.mubr.f32.gmra.mxu0 %v607
        %v609 = vpop.f32.mrf.mxu0
        %v610 = vadd.f32 %v433, %v609
        %v611 = vpop.f32.mrf.mxu0
        %612 = vmatprep.mubr.f32.mxu0 0.0
        %v613 = vand.u32 %v326, 4294901760
        %614 = vmatmul.mubr.f32.gmra.mxu0 %v613
        %v615 = vpop.f32.mrf.mxu0
        %v616 = vadd.f32 %v443, %v615
        %v617 = vpop.f32.mrf.mxu0
        %618 = vmatprep.mubr.f32.mxu0 0.0
        %v619 = vand.u32 %v329, 4294901760
        %620 = vmatmul.mubr.f32.gmra.mxu0 %v619
        %v621 = vpop.f32.mrf.mxu0
        %v622 = vadd.f32 %v453, %v621
        %v623 = vpop.f32.mrf.mxu0
        %624 = vmatprep.mubr.f32.mxu0 0.0
        %v625 = vand.u32 %v332, 4294901760
        %626 = vmatmul.mubr.f32.gmra.mxu0 %v625
        %v627 = vpop.f32.mrf.mxu0
        %v628 = vadd.f32 %v463, %v627
        %v629 = vpop.f32.mrf.mxu0
        %630 = vmatprep.mubr.f32.mxu0 0.0
        %v631 = vand.u32 %v335, 4294901760
        %632 = vmatmul.mubr.f32.gmra.mxu0 %v631
        %v633 = vpop.f32.mrf.mxu0
        %v634 = vadd.f32 %v473, %v633
        %v635 = vpop.f32.mrf.mxu0
        %636 = vmatprep.mubr.f32.mxu0 0.0
        %v637 = vand.u32 %v338, 4294901760
        %638 = vmatmul.mubr.f32.gmra.mxu0 %v637
        %v639 = vpop.f32.mrf.mxu0
        %v640 = vadd.f32 %v483, %v639
        %v641 = vpop.f32.mrf.mxu0
        %642 = vmatprep.mubr.f32.mxu0 0.0
        %v643 = vand.u32 %v341, 4294901760
        %644 = vmatmul.mubr.f32.gmra.mxu0 %v643
        %v645 = vpop.f32.mrf.mxu0
        %v646 = vadd.f32 %v493, %v645
        %v647 = vpop.f32.mrf.mxu0
        %648 = vdwg.mxu0
        %649 = vmatprep.subr.mxu0 0.0
        %650 = vmatpush1.msra.mxu0 0.0
        %651 = vmatprep.subr.mxu0 0.0
        %652 = vmatpush1.msra.mxu0 0.0
        %653 = vmatprep.subr.mxu0 0.0
        %654 = vmatpush1.msra.mxu0 0.0
        %655 = vmatprep.subr.mxu0 0.0
        %656 = vmatpush1.msra.mxu0 0.0
        %657 = vmatprep.subr.mxu0 0.0
        %658 = vmatpush1.msra.mxu0 0.0
        %659 = vmatprep.subr.mxu0 0.0
        %660 = vmatpush1.msra.mxu0 0.0
        %661 = vmatprep.subr.mxu0 0.0
        %662 = vmatpush1.msra.mxu0 0.0
        %663 = vmatprep.subr.mxu0 0.0
        %664 = vmatpush1.msra.mxu0 0.0
        %665 = vmatprep.subr.mxu0 0.0
        %v666 = vand.u32 %v277, 4294901760
        %v667 = vsub.f32 %v277, %v666
        %668 = vmatpush1.msra.mxu0 %v667
        %669 = vmatprep.subr.mxu0 0.0
        %v670 = vand.u32 %v276, 4294901760
        %v671 = vsub.f32 %v276, %v670
        %672 = vmatpush1.msra.mxu0 %v671
        %673 = vmatprep.subr.mxu0 0.0
        %v674 = vand.u32 %v275, 4294901760
        %v675 = vsub.f32 %v275, %v674
        %676 = vmatpush1.msra.mxu0 %v675
        %677 = vmatprep.subr.mxu0 0.0
        %v678 = vand.u32 %v274, 4294901760
        %v679 = vsub.f32 %v274, %v678
        %680 = vmatpush1.msra.mxu0 %v679
        %681 = vmatprep.subr.mxu0 0.0
        %v682 = vand.u32 %v273, 4294901760
        %v683 = vsub.f32 %v273, %v682
        %684 = vmatpush1.msra.mxu0 %v683
        %685 = vmatprep.subr.mxu0 0.0
        %v686 = vand.u32 %v272, 4294901760
        %v687 = vsub.f32 %v272, %v686
        %688 = vmatpush1.msra.mxu0 %v687
        %689 = vmatprep.subr.mxu0 0.0
        %v690 = vand.u32 %v271, 4294901760
        %v691 = vsub.f32 %v271, %v690
        %692 = vmatpush1.msra.mxu0 %v691
        %693 = vmatprep.subr.mxu0 0.0
        %v694 = vand.u32 %v270, 4294901760
        %v695 = vsub.f32 %v270, %v694
        %696 = vmatpush1.msra.mxu0 %v695
        %697 = vmatprep.subr.mxu0 0.0
        %698 = vmatpush2.msra.mxu0 0.0
        %699 = vmatprep.subr.mxu0 0.0
        %700 = vmatpush2.msra.mxu0 0.0
        %701 = vmatprep.subr.mxu0 0.0
        %702 = vmatpush2.msra.mxu0 0.0
        %703 = vmatprep.subr.mxu0 0.0
        %704 = vmatpush2.msra.mxu0 0.0
        %705 = vmatprep.subr.mxu0 0.0
        %706 = vmatpush2.msra.mxu0 0.0
        %707 = vmatprep.subr.mxu0 0.0
        %708 = vmatpush2.msra.mxu0 0.0
        %709 = vmatprep.subr.mxu0 0.0
        %710 = vmatpush2.msra.mxu0 0.0
        %711 = vmatprep.subr.mxu0 0.0
        %712 = vmatpush2.msra.mxu0 0.0
        %713 = vmatprep.subr.mxu0 0.0
        %714 = vmatpush2.msra.mxu0 0.0
        %715 = vmatprep.subr.mxu0 0.0
        %716 = vmatpush2.msra.mxu0 0.0
        %717 = vmatprep.subr.mxu0 0.0
        %718 = vmatpush2.msra.mxu0 0.0
        %719 = vmatprep.subr.mxu0 0.0
        %720 = vmatpush2.msra.mxu0 0.0
        %721 = vmatprep.subr.mxu0 0.0
        %722 = vmatpush2.msra.mxu0 0.0
        %723 = vmatprep.subr.mxu0 0.0
        %724 = vmatpush2.msra.mxu0 0.0
        %725 = vmatprep.subr.mxu0 0.0
        %726 = vmatpush2.msra.mxu0 0.0
        %727 = vmatprep.subr.mxu0 0.0
        %728 = vmatpush2.msra.mxu0 0.0
        %729 = vmatprep.mubr.f32.mxu0 0.0
        %v730 = vand.u32 %v320, 4294901760
        %v731 = vsub.f32 %v320, %v730
        %732 = vmatmul.mubr.f32.gmra.mxu0 %v731
        %v733 = vpop.f32.mrf.mxu0
        %v734 = vadd.f32 %v604, %v733
        %v735 = vpop.f32.mrf.mxu0
        %736 = vmatprep.mubr.f32.mxu0 0.0
        %v737 = vand.u32 %v323, 4294901760
        %v738 = vsub.f32 %v323, %v737
        %739 = vmatmul.mubr.f32.gmra.mxu0 %v738
        %v740 = vpop.f32.mrf.mxu0
        %v741 = vadd.f32 %v610, %v740
        %v742 = vpop.f32.mrf.mxu0
        %743 = vmatprep.mubr.f32.mxu0 0.0
        %v744 = vand.u32 %v326, 4294901760
        %v745 = vsub.f32 %v326, %v744
        %746 = vmatmul.mubr.f32.gmra.mxu0 %v745
        %v747 = vpop.f32.mrf.mxu0
        %v748 = vadd.f32 %v616, %v747
        %v749 = vpop.f32.mrf.mxu0
        %750 = vmatprep.mubr.f32.mxu0 0.0
        %v751 = vand.u32 %v329, 4294901760
        %v752 = vsub.f32 %v329, %v751
        %753 = vmatmul.mubr.f32.gmra.mxu0 %v752
        %v754 = vpop.f32.mrf.mxu0
        %v755 = vadd.f32 %v622, %v754
        %v756 = vpop.f32.mrf.mxu0
        %757 = vmatprep.mubr.f32.mxu0 0.0
        %v758 = vand.u32 %v332, 4294901760
        %v759 = vsub.f32 %v332, %v758
        %760 = vmatmul.mubr.f32.gmra.mxu0 %v759
        %v761 = vpop.f32.mrf.mxu0
        %v762 = vadd.f32 %v628, %v761
        %v763 = vpop.f32.mrf.mxu0
        %764 = vmatprep.mubr.f32.mxu0 0.0
        %v765 = vand.u32 %v335, 4294901760
        %v766 = vsub.f32 %v335, %v765
        %767 = vmatmul.mubr.f32.gmra.mxu0 %v766
        %v768 = vpop.f32.mrf.mxu0
        %v769 = vadd.f32 %v634, %v768
        %v770 = vpop.f32.mrf.mxu0
        %771 = vmatprep.mubr.f32.mxu0 0.0
        %v772 = vand.u32 %v338, 4294901760
        %v773 = vsub.f32 %v338, %v772
        %774 = vmatmul.mubr.f32.gmra.mxu0 %v773
        %v775 = vpop.f32.mrf.mxu0
        %v776 = vadd.f32 %v640, %v775
        %v777 = vpop.f32.mrf.mxu0
        %778 = vmatprep.mubr.f32.mxu0 0.0
        %v779 = vand.u32 %v341, 4294901760
        %v780 = vsub.f32 %v341, %v779
        %781 = vmatmul.mubr.f32.gmra.mxu0 %v780
        %v782 = vpop.f32.mrf.mxu0
        %v783 = vadd.f32 %v646, %v782
        %v784 = vpop.f32.mrf.mxu0
        %785 = vdwg.mxu0
        %786 = vmatprep.subr.mxu0 0.0
        %787 = vmatpush1.msra.mxu0 0.0
        %788 = vmatprep.subr.mxu0 0.0
        %789 = vmatpush1.msra.mxu0 0.0
        %790 = vmatprep.subr.mxu0 0.0
        %791 = vmatpush1.msra.mxu0 0.0
        %792 = vmatprep.subr.mxu0 0.0
        %793 = vmatpush1.msra.mxu0 0.0
        %794 = vmatprep.subr.mxu0 0.0
        %795 = vmatpush1.msra.mxu0 0.0
        %796 = vmatprep.subr.mxu0 0.0
        %797 = vmatpush1.msra.mxu0 0.0
        %798 = vmatprep.subr.mxu0 0.0
        %799 = vmatpush1.msra.mxu0 0.0
        %800 = vmatprep.subr.mxu0 0.0
        %801 = vmatpush1.msra.mxu0 0.0
        %802 = vmatprep.subr.mxu0 0.0
        %v803 = vand.u32 %v277, 4294901760
        %804 = vmatpush1.msra.mxu0 %v803
        %805 = vmatprep.subr.mxu0 0.0
        %v806 = vand.u32 %v276, 4294901760
        %807 = vmatpush1.msra.mxu0 %v806
        %808 = vmatprep.subr.mxu0 0.0
        %v809 = vand.u32 %v275, 4294901760
        %810 = vmatpush1.msra.mxu0 %v809
        %811 = vmatprep.subr.mxu0 0.0
        %v812 = vand.u32 %v274, 4294901760
        %813 = vmatpush1.msra.mxu0 %v812
        %814 = vmatprep.subr.mxu0 0.0
        %v815 = vand.u32 %v273, 4294901760
        %816 = vmatpush1.msra.mxu0 %v815
        %817 = vmatprep.subr.mxu0 0.0
        %v818 = vand.u32 %v272, 4294901760
        %819 = vmatpush1.msra.mxu0 %v818
        %820 = vmatprep.subr.mxu0 0.0
        %v821 = vand.u32 %v271, 4294901760
        %822 = vmatpush1.msra.mxu0 %v821
        %823 = vmatprep.subr.mxu0 0.0
        %v824 = vand.u32 %v270, 4294901760
        %825 = vmatpush1.msra.mxu0 %v824
        %826 = vmatprep.subr.mxu0 0.0
        %827 = vmatpush2.msra.mxu0 0.0
        %828 = vmatprep.subr.mxu0 0.0
        %829 = vmatpush2.msra.mxu0 0.0
        %830 = vmatprep.subr.mxu0 0.0
        %831 = vmatpush2.msra.mxu0 0.0
        %832 = vmatprep.subr.mxu0 0.0
        %833 = vmatpush2.msra.mxu0 0.0
        %834 = vmatprep.subr.mxu0 0.0
        %835 = vmatpush2.msra.mxu0 0.0
        %836 = vmatprep.subr.mxu0 0.0
        %837 = vmatpush2.msra.mxu0 0.0
        %838 = vmatprep.subr.mxu0 0.0
        %839 = vmatpush2.msra.mxu0 0.0
        %840 = vmatprep.subr.mxu0 0.0
        %841 = vmatpush2.msra.mxu0 0.0
        %842 = vmatprep.subr.mxu0 0.0
        %843 = vmatpush2.msra.mxu0 0.0
        %844 = vmatprep.subr.mxu0 0.0
        %845 = vmatpush2.msra.mxu0 0.0
        %846 = vmatprep.subr.mxu0 0.0
        %847 = vmatpush2.msra.mxu0 0.0
        %848 = vmatprep.subr.mxu0 0.0
        %849 = vmatpush2.msra.mxu0 0.0
        %850 = vmatprep.subr.mxu0 0.0
        %851 = vmatpush2.msra.mxu0 0.0
        %852 = vmatprep.subr.mxu0 0.0
        %853 = vmatpush2.msra.mxu0 0.0
        %854 = vmatprep.subr.mxu0 0.0
        %855 = vmatpush2.msra.mxu0 0.0
        %856 = vmatprep.subr.mxu0 0.0
        %857 = vmatpush2.msra.mxu0 0.0
        %858 = vmatprep.mubr.f32.mxu0 0.0
        %v859 = vand.u32 %v320, 4294901760
        %v860 = vsub.f32 %v320, %v859
        %v861 = vand.u32 %v860, 4294901760
        %862 = vmatmul.mubr.f32.gmra.mxu0 %v861
        %v863 = vpop.f32.mrf.mxu0
        %v864 = vadd.f32 %v734, %v863
        %v865 = vpop.f32.mrf.mxu0
        %866 = vmatprep.mubr.f32.mxu0 0.0
        %v867 = vand.u32 %v323, 4294901760
        %v868 = vsub.f32 %v323, %v867
        %v869 = vand.u32 %v868, 4294901760
        %870 = vmatmul.mubr.f32.gmra.mxu0 %v869
        %v871 = vpop.f32.mrf.mxu0
        %v872 = vadd.f32 %v741, %v871
        %v873 = vpop.f32.mrf.mxu0
        %874 = vmatprep.mubr.f32.mxu0 0.0
        %v875 = vand.u32 %v326, 4294901760
        %v876 = vsub.f32 %v326, %v875
        %v877 = vand.u32 %v876, 4294901760
        %878 = vmatmul.mubr.f32.gmra.mxu0 %v877
        %v879 = vpop.f32.mrf.mxu0
        %v880 = vadd.f32 %v748, %v879
        %v881 = vpop.f32.mrf.mxu0
        %882 = vmatprep.mubr.f32.mxu0 0.0
        %v883 = vand.u32 %v329, 4294901760
        %v884 = vsub.f32 %v329, %v883
        %v885 = vand.u32 %v884, 4294901760
        %886 = vmatmul.mubr.f32.gmra.mxu0 %v885
        %v887 = vpop.f32.mrf.mxu0
        %v888 = vadd.f32 %v755, %v887
        %v889 = vpop.f32.mrf.mxu0
        %890 = vmatprep.mubr.f32.mxu0 0.0
        %v891 = vand.u32 %v332, 4294901760
        %v892 = vsub.f32 %v332, %v891
        %v893 = vand.u32 %v892, 4294901760
        %894 = vmatmul.mubr.f32.gmra.mxu0 %v893
        %v895 = vpop.f32.mrf.mxu0
        %v896 = vadd.f32 %v762, %v895
        %v897 = vpop.f32.mrf.mxu0
        %898 = vmatprep.mubr.f32.mxu0 0.0
        %v899 = vand.u32 %v335, 4294901760
        %v900 = vsub.f32 %v335, %v899
        %v901 = vand.u32 %v900, 4294901760
        %902 = vmatmul.mubr.f32.gmra.mxu0 %v901
        %v903 = vpop.f32.mrf.mxu0
        %v904 = vadd.f32 %v769, %v903
        %v905 = vpop.f32.mrf.mxu0
        %906 = vmatprep.mubr.f32.mxu0 0.0
        %v907 = vand.u32 %v338, 4294901760
        %v908 = vsub.f32 %v338, %v907
        %v909 = vand.u32 %v908, 4294901760
        %910 = vmatmul.mubr.f32.gmra.mxu0 %v909
        %v911 = vpop.f32.mrf.mxu0
        %v912 = vadd.f32 %v776, %v911
        %v913 = vpop.f32.mrf.mxu0
        %914 = vmatprep.mubr.f32.mxu0 0.0
        %v915 = vand.u32 %v341, 4294901760
        %v916 = vsub.f32 %v341, %v915
        %v917 = vand.u32 %v916, 4294901760
        %918 = vmatmul.mubr.f32.gmra.mxu0 %v917
        %v919 = vpop.f32.mrf.mxu0
        %v920 = vadd.f32 %v783, %v919
        %v921 = vpop.f32.mrf.mxu0
        %922 = vdwg.mxu0
        %923 = vmatprep.subr.mxu0 0.0
        %924 = vmatpush1.msra.mxu0 0.0
        %925 = vmatprep.subr.mxu0 0.0
        %926 = vmatpush1.msra.mxu0 0.0
        %927 = vmatprep.subr.mxu0 0.0
        %928 = vmatpush1.msra.mxu0 0.0
        %929 = vmatprep.subr.mxu0 0.0
        %930 = vmatpush1.msra.mxu0 0.0
        %931 = vmatprep.subr.mxu0 0.0
        %932 = vmatpush1.msra.mxu0 0.0
        %933 = vmatprep.subr.mxu0 0.0
        %934 = vmatpush1.msra.mxu0 0.0
        %935 = vmatprep.subr.mxu0 0.0
        %936 = vmatpush1.msra.mxu0 0.0
        %937 = vmatprep.subr.mxu0 0.0
        %938 = vmatpush1.msra.mxu0 0.0
        %939 = vmatprep.subr.mxu0 0.0
        %v940 = vand.u32 %v277, 4294901760
        %v941 = vsub.f32 %v277, %v940
        %v942 = vand.u32 %v941, 4294901760
        %943 = vmatpush1.msra.mxu0 %v942
        %944 = vmatprep.subr.mxu0 0.0
        %v945 = vand.u32 %v276, 4294901760
        %v946 = vsub.f32 %v276, %v945
        %v947 = vand.u32 %v946, 4294901760
        %948 = vmatpush1.msra.mxu0 %v947
        %949 = vmatprep.subr.mxu0 0.0
        %v950 = vand.u32 %v275, 4294901760
        %v951 = vsub.f32 %v275, %v950
        %v952 = vand.u32 %v951, 4294901760
        %953 = vmatpush1.msra.mxu0 %v952
        %954 = vmatprep.subr.mxu0 0.0
        %v955 = vand.u32 %v274, 4294901760
        %v956 = vsub.f32 %v274, %v955
        %v957 = vand.u32 %v956, 4294901760
        %958 = vmatpush1.msra.mxu0 %v957
        %959 = vmatprep.subr.mxu0 0.0
        %v960 = vand.u32 %v273, 4294901760
        %v961 = vsub.f32 %v273, %v960
        %v962 = vand.u32 %v961, 4294901760
        %963 = vmatpush1.msra.mxu0 %v962
        %964 = vmatprep.subr.mxu0 0.0
        %v965 = vand.u32 %v272, 4294901760
        %v966 = vsub.f32 %v272, %v965
        %v967 = vand.u32 %v966, 4294901760
        %968 = vmatpush1.msra.mxu0 %v967
        %969 = vmatprep.subr.mxu0 0.0
        %v970 = vand.u32 %v271, 4294901760
        %v971 = vsub.f32 %v271, %v970
        %v972 = vand.u32 %v971, 4294901760
        %973 = vmatpush1.msra.mxu0 %v972
        %974 = vmatprep.subr.mxu0 0.0
        %v975 = vand.u32 %v270, 4294901760
        %v976 = vsub.f32 %v270, %v975
        %v977 = vand.u32 %v976, 4294901760
        %978 = vmatpush1.msra.mxu0 %v977
        %979 = vmatprep.subr.mxu0 0.0
        %980 = vmatpush2.msra.mxu0 0.0
        %981 = vmatprep.subr.mxu0 0.0
        %982 = vmatpush2.msra.mxu0 0.0
        %983 = vmatprep.subr.mxu0 0.0
        %984 = vmatpush2.msra.mxu0 0.0
        %985 = vmatprep.subr.mxu0 0.0
        %986 = vmatpush2.msra.mxu0 0.0
        %987 = vmatprep.subr.mxu0 0.0
        %988 = vmatpush2.msra.mxu0 0.0
        %989 = vmatprep.subr.mxu0 0.0
        %990 = vmatpush2.msra.mxu0 0.0
        %991 = vmatprep.subr.mxu0 0.0
        %992 = vmatpush2.msra.mxu0 0.0
        %993 = vmatprep.subr.mxu0 0.0
        %994 = vmatpush2.msra.mxu0 0.0
        %995 = vmatprep.subr.mxu0 0.0
        %996 = vmatpush2.msra.mxu0 0.0
        %997 = vmatprep.subr.mxu0 0.0
        %998 = vmatpush2.msra.mxu0 0.0
        %999 = vmatprep.subr.mxu0 0.0
        %1000 = vmatpush2.msra.mxu0 0.0
        %1001 = vmatprep.subr.mxu0 0.0
        %1002 = vmatpush2.msra.mxu0 0.0
        %1003 = vmatprep.subr.mxu0 0.0
        %1004 = vmatpush2.msra.mxu0 0.0
        %1005 = vmatprep.subr.mxu0 0.0
        %1006 = vmatpush2.msra.mxu0 0.0
        %1007 = vmatprep.subr.mxu0 0.0
        %1008 = vmatpush2.msra.mxu0 0.0
        %1009 = vmatprep.subr.mxu0 0.0
        %1010 = vmatpush2.msra.mxu0 0.0
        %1011 = vmatprep.mubr.f32.mxu0 0.0
        %v1012 = vand.u32 %v320, 4294901760
        %1013 = vmatmul.mubr.f32.gmra.mxu0 %v1012
        %v1014 = vpop.f32.mrf.mxu0
        %v1015 = vadd.f32 %v864, %v1014
        %v1016 = vpop.f32.mrf.mxu0
        %1017 = vmatprep.mubr.f32.mxu0 0.0
        %v1018 = vand.u32 %v323, 4294901760
        %1019 = vmatmul.mubr.f32.gmra.mxu0 %v1018
        %v1020 = vpop.f32.mrf.mxu0
        %v1021 = vadd.f32 %v872, %v1020
        %v1022 = vpop.f32.mrf.mxu0
        %1023 = vmatprep.mubr.f32.mxu0 0.0
        %v1024 = vand.u32 %v326, 4294901760
        %1025 = vmatmul.mubr.f32.gmra.mxu0 %v1024
        %v1026 = vpop.f32.mrf.mxu0
        %v1027 = vadd.f32 %v880, %v1026
        %v1028 = vpop.f32.mrf.mxu0
        %1029 = vmatprep.mubr.f32.mxu0 0.0
        %v1030 = vand.u32 %v329, 4294901760
        %1031 = vmatmul.mubr.f32.gmra.mxu0 %v1030
        %v1032 = vpop.f32.mrf.mxu0
        %v1033 = vadd.f32 %v888, %v1032
        %v1034 = vpop.f32.mrf.mxu0
        %1035 = vmatprep.mubr.f32.mxu0 0.0
        %v1036 = vand.u32 %v332, 4294901760
        %1037 = vmatmul.mubr.f32.gmra.mxu0 %v1036
        %v1038 = vpop.f32.mrf.mxu0
        %v1039 = vadd.f32 %v896, %v1038
        %v1040 = vpop.f32.mrf.mxu0
        %1041 = vmatprep.mubr.f32.mxu0 0.0
        %v1042 = vand.u32 %v335, 4294901760
        %1043 = vmatmul.mubr.f32.gmra.mxu0 %v1042
        %v1044 = vpop.f32.mrf.mxu0
        %v1045 = vadd.f32 %v904, %v1044
        %v1046 = vpop.f32.mrf.mxu0
        %1047 = vmatprep.mubr.f32.mxu0 0.0
        %v1048 = vand.u32 %v338, 4294901760
        %1049 = vmatmul.mubr.f32.gmra.mxu0 %v1048
        %v1050 = vpop.f32.mrf.mxu0
        %v1051 = vadd.f32 %v912, %v1050
        %v1052 = vpop.f32.mrf.mxu0
        %1053 = vmatprep.mubr.f32.mxu0 0.0
        %v1054 = vand.u32 %v341, 4294901760
        %1055 = vmatmul.mubr.f32.gmra.mxu0 %v1054
        %v1056 = vpop.f32.mrf.mxu0
        %v1057 = vadd.f32 %v920, %v1056
        %v1058 = vpop.f32.mrf.mxu0
        %1059 = vdwg.mxu0
        %1060 = vmatprep.subr.mxu0 0.0
        %1061 = vmatpush1.msra.mxu0 0.0
        %1062 = vmatprep.subr.mxu0 0.0
        %1063 = vmatpush1.msra.mxu0 0.0
        %1064 = vmatprep.subr.mxu0 0.0
        %1065 = vmatpush1.msra.mxu0 0.0
        %1066 = vmatprep.subr.mxu0 0.0
        %1067 = vmatpush1.msra.mxu0 0.0
        %1068 = vmatprep.subr.mxu0 0.0
        %1069 = vmatpush1.msra.mxu0 0.0
        %1070 = vmatprep.subr.mxu0 0.0
        %1071 = vmatpush1.msra.mxu0 0.0
        %1072 = vmatprep.subr.mxu0 0.0
        %1073 = vmatpush1.msra.mxu0 0.0
        %1074 = vmatprep.subr.mxu0 0.0
        %1075 = vmatpush1.msra.mxu0 0.0
        %1076 = vmatprep.subr.mxu0 0.0
        %v1077 = vand.u32 %v277, 4294901760
        %1078 = vmatpush1.msra.mxu0 %v1077
        %1079 = vmatprep.subr.mxu0 0.0
        %v1080 = vand.u32 %v276, 4294901760
        %1081 = vmatpush1.msra.mxu0 %v1080
        %1082 = vmatprep.subr.mxu0 0.0
        %v1083 = vand.u32 %v275, 4294901760
        %1084 = vmatpush1.msra.mxu0 %v1083
        %1085 = vmatprep.subr.mxu0 0.0
        %v1086 = vand.u32 %v274, 4294901760
        %1087 = vmatpush1.msra.mxu0 %v1086
        %1088 = vmatprep.subr.mxu0 0.0
        %v1089 = vand.u32 %v273, 4294901760
        %1090 = vmatpush1.msra.mxu0 %v1089
        %1091 = vmatprep.subr.mxu0 0.0
        %v1092 = vand.u32 %v272, 4294901760
        %1093 = vmatpush1.msra.mxu0 %v1092
        %1094 = vmatprep.subr.mxu0 0.0
        %v1095 = vand.u32 %v271, 4294901760
        %1096 = vmatpush1.msra.mxu0 %v1095
        %1097 = vmatprep.subr.mxu0 0.0
        %v1098 = vand.u32 %v270, 4294901760
        %1099 = vmatpush1.msra.mxu0 %v1098
        %1100 = vmatprep.subr.mxu0 0.0
        %1101 = vmatpush2.msra.mxu0 0.0
        %1102 = vmatprep.subr.mxu0 0.0
        %1103 = vmatpush2.msra.mxu0 0.0
        %1104 = vmatprep.subr.mxu0 0.0
        %1105 = vmatpush2.msra.mxu0 0.0
        %1106 = vmatprep.subr.mxu0 0.0
        %1107 = vmatpush2.msra.mxu0 0.0
        %1108 = vmatprep.subr.mxu0 0.0
        %1109 = vmatpush2.msra.mxu0 0.0
        %1110 = vmatprep.subr.mxu0 0.0
        %1111 = vmatpush2.msra.mxu0 0.0
        %1112 = vmatprep.subr.mxu0 0.0
        %1113 = vmatpush2.msra.mxu0 0.0
        %1114 = vmatprep.subr.mxu0 0.0
        %1115 = vmatpush2.msra.mxu0 0.0
        %1116 = vmatprep.subr.mxu0 0.0
        %1117 = vmatpush2.msra.mxu0 0.0
        %1118 = vmatprep.subr.mxu0 0.0
        %1119 = vmatpush2.msra.mxu0 0.0
        %1120 = vmatprep.subr.mxu0 0.0
        %1121 = vmatpush2.msra.mxu0 0.0
        %1122 = vmatprep.subr.mxu0 0.0
        %1123 = vmatpush2.msra.mxu0 0.0
        %1124 = vmatprep.subr.mxu0 0.0
        %1125 = vmatpush2.msra.mxu0 0.0
        %1126 = vmatprep.subr.mxu0 0.0
        %1127 = vmatpush2.msra.mxu0 0.0
        %1128 = vmatprep.subr.mxu0 0.0
        %1129 = vmatpush2.msra.mxu0 0.0
        %1130 = vmatprep.subr.mxu0 0.0
        %1131 = vmatpush2.msra.mxu0 0.0
        %1132 = vmatprep.mubr.f32.mxu0 0.0
        %v1133 = vand.u32 %v320, 4294901760
        %1134 = vmatmul.mubr.f32.gmra.mxu0 %v1133
        %v1135 = vpop.f32.mrf.mxu0
        %v1136 = vadd.f32 %v1015, %v1135
        %v1137 = vpop.f32.mrf.mxu0
        %1138 = vmatprep.mubr.f32.mxu0 0.0
        %v1139 = vand.u32 %v323, 4294901760
        %1140 = vmatmul.mubr.f32.gmra.mxu0 %v1139
        %v1141 = vpop.f32.mrf.mxu0
        %v1142 = vadd.f32 %v1021, %v1141
        %v1143 = vpop.f32.mrf.mxu0
        %1144 = vmatprep.mubr.f32.mxu0 0.0
        %v1145 = vand.u32 %v326, 4294901760
        %1146 = vmatmul.mubr.f32.gmra.mxu0 %v1145
        %v1147 = vpop.f32.mrf.mxu0
        %v1148 = vadd.f32 %v1027, %v1147
        %v1149 = vpop.f32.mrf.mxu0
        %1150 = vmatprep.mubr.f32.mxu0 0.0
        %v1151 = vand.u32 %v329, 4294901760
        %1152 = vmatmul.mubr.f32.gmra.mxu0 %v1151
        %v1153 = vpop.f32.mrf.mxu0
        %v1154 = vadd.f32 %v1033, %v1153
        %v1155 = vpop.f32.mrf.mxu0
        %1156 = vmatprep.mubr.f32.mxu0 0.0
        %v1157 = vand.u32 %v332, 4294901760
        %1158 = vmatmul.mubr.f32.gmra.mxu0 %v1157
        %v1159 = vpop.f32.mrf.mxu0
        %v1160 = vadd.f32 %v1039, %v1159
        %v1161 = vpop.f32.mrf.mxu0
        %1162 = vmatprep.mubr.f32.mxu0 0.0
        %v1163 = vand.u32 %v335, 4294901760
        %1164 = vmatmul.mubr.f32.gmra.mxu0 %v1163
        %v1165 = vpop.f32.mrf.mxu0
        %v1166 = vadd.f32 %v1045, %v1165
        %v1167 = vpop.f32.mrf.mxu0
        %1168 = vmatprep.mubr.f32.mxu0 0.0
        %v1169 = vand.u32 %v338, 4294901760
        %1170 = vmatmul.mubr.f32.gmra.mxu0 %v1169
        %v1171 = vpop.f32.mrf.mxu0
        %v1172 = vadd.f32 %v1051, %v1171
        %v1173 = vpop.f32.mrf.mxu0
        %1174 = vmatprep.mubr.f32.mxu0 0.0
        %v1175 = vand.u32 %v341, 4294901760
        %1176 = vmatmul.mubr.f32.gmra.mxu0 %v1175
        %v1177 = vpop.f32.mrf.mxu0
        %v1178 = vadd.f32 %v1057, %v1177
        %v1179 = vpop.f32.mrf.mxu0
        %1180 = vdwg.mxu0
        %1182 = vset.pattern.permute.xlu0 0
        %1183 = vperm.xlu0 %1182, %v254
        %v1184 = vpop.permute.xlu0 %1183
        %1187 = vset.pattern.permute.xlu0 0
        %1188 = vperm.xlu0 %1187, %v255
        %v1189 = vpop.permute.xlu0 %1188
        %1192 = vset.pattern.permute.xlu0 0
        %1193 = vperm.xlu0 %1192, %v256
        %v1194 = vpop.permute.xlu0 %1193
        %1197 = vset.pattern.permute.xlu0 0
        %1198 = vperm.xlu0 %1197, %v257
        %v1199 = vpop.permute.xlu0 %1198
        %1202 = vset.pattern.permute.xlu0 0
        %1203 = vperm.xlu0 %1202, %v258
        %v1204 = vpop.permute.xlu0 %1203
        %1207 = vset.pattern.permute.xlu0 0
        %1208 = vperm.xlu0 %1207, %v259
        %v1209 = vpop.permute.xlu0 %1208
        %1212 = vset.pattern.permute.xlu0 0
        %1213 = vperm.xlu0 %1212, %v260
        %v1214 = vpop.permute.xlu0 %1213
        %1217 = vset.pattern.permute.xlu0 0
        %1218 = vperm.xlu0 %1217, %v261
        %v1219 = vpop.permute.xlu0 %1218
        %v1221 = vmul.f32 %v1184, %v1136
        %v1222 = vmul.f32 %v1189, %v1142
        %v1223 = vmul.f32 %v1194, %v1148
        %v1224 = vmul.f32 %v1199, %v1154
        %v1225 = vmul.f32 %v1204, %v1160
        %v1226 = vmul.f32 %v1209, %v1166
        %v1227 = vmul.f32 %v1214, %v1172
        %v1228 = vmul.f32 %v1219, %v1178
        %1229 = vxpose.xlu0.b32.start [1/16] %v1136, 128
        %1230 = vxpose.xlu0.b32.cont [2/16] %v1142, 128
        %1231 = vxpose.xlu0.b32.cont [3/16] %v1148, 128
        %1232 = vxpose.xlu0.b32.cont [4/16] %v1154, 128
        %1233 = vxpose.xlu0.b32.cont [5/16] %v1160, 128
        %1234 = vxpose.xlu0.b32.cont [6/16] %v1166, 128
        %1235 = vxpose.xlu0.b32.cont [7/16] %v1172, 128
        %1236 = vxpose.xlu0.b32.cont [8/16] %v1178, 128
        %1237 = vxpose.xlu0.b32.cont [9/16] 0.0, 128
        %1238 = vxpose.xlu0.b32.cont [10/16] 0.0, 128
        %1239 = vxpose.xlu0.b32.cont [11/16] 0.0, 128
        %1240 = vxpose.xlu0.b32.cont [12/16] 0.0, 128
        %1241 = vxpose.xlu0.b32.cont [13/16] 0.0, 128
        %1242 = vxpose.xlu0.b32.cont [14/16] 0.0, 128
        %1243 = vxpose.xlu0.b32.cont [15/16] 0.0, 128
        %1244 = vxpose.xlu0.b32.end [16/16] 0.0, 128
        %v1245 = vpop.trf.xlu0
        %v1246 = vpop.trf.xlu0
        %v1247 = vpop.trf.xlu0
        %v1248 = vpop.trf.xlu0
        %v1249 = vpop.trf.xlu0
        %v1250 = vpop.trf.xlu0
        %v1251 = vpop.trf.xlu0
        %v1252 = vpop.trf.xlu0
        %v1253 = vpop.trf.xlu0
        %v1254 = vpop.trf.xlu0
        %v1255 = vpop.trf.xlu0
        %v1256 = vpop.trf.xlu0
        %v1257 = vpop.trf.xlu0
        %v1258 = vpop.trf.xlu0
        %v1259 = vpop.trf.xlu0
        %v1260 = vpop.trf.xlu0
        %v1262 = vsel %vm318, %v1245, 0
        %v1265 = vsel %vm318, %v1246, 0
        %v1268 = vsel %vm318, %v1247, 0
        %v1271 = vsel %vm318, %v1248, 0
        %v1274 = vsel %vm318, %v1249, 0
        %v1277 = vsel %vm318, %v1250, 0
        %v1280 = vsel %vm318, %v1251, 0
        %v1283 = vsel %vm318, %v1252, 0
        %1285 = vmatprep.subr.mxu0 0.0
        %1286 = vmatpush1.msra.mxu0 0.0
        %1287 = vmatprep.subr.mxu0 0.0
        %1288 = vmatpush1.msra.mxu0 0.0
        %1289 = vmatprep.subr.mxu0 0.0
        %1290 = vmatpush1.msra.mxu0 0.0
        %1291 = vmatprep.subr.mxu0 0.0
        %1292 = vmatpush1.msra.mxu0 0.0
        %1293 = vmatprep.subr.mxu0 0.0
        %1294 = vmatpush1.msra.mxu0 0.0
        %1295 = vmatprep.subr.mxu0 0.0
        %1296 = vmatpush1.msra.mxu0 0.0
        %1297 = vmatprep.subr.mxu0 0.0
        %1298 = vmatpush1.msra.mxu0 0.0
        %1299 = vmatprep.subr.mxu0 0.0
        %1300 = vmatpush1.msra.mxu0 0.0
        %1301 = vmatprep.subr.mxu0 0.0
        %v1302 = vand.u32 %v1228, 4294901760
        %1303 = vmatpush1.msra.mxu0 %v1302
        %1304 = vmatprep.subr.mxu0 0.0
        %v1305 = vand.u32 %v1227, 4294901760
        %1306 = vmatpush1.msra.mxu0 %v1305
        %1307 = vmatprep.subr.mxu0 0.0
        %v1308 = vand.u32 %v1226, 4294901760
        %1309 = vmatpush1.msra.mxu0 %v1308
        %1310 = vmatprep.subr.mxu0 0.0
        %v1311 = vand.u32 %v1225, 4294901760
        %1312 = vmatpush1.msra.mxu0 %v1311
        %1313 = vmatprep.subr.mxu0 0.0
        %v1314 = vand.u32 %v1224, 4294901760
        %1315 = vmatpush1.msra.mxu0 %v1314
        %1316 = vmatprep.subr.mxu0 0.0
        %v1317 = vand.u32 %v1223, 4294901760
        %1318 = vmatpush1.msra.mxu0 %v1317
        %1319 = vmatprep.subr.mxu0 0.0
        %v1320 = vand.u32 %v1222, 4294901760
        %1321 = vmatpush1.msra.mxu0 %v1320
        %1322 = vmatprep.subr.mxu0 0.0
        %v1323 = vand.u32 %v1221, 4294901760
        %1324 = vmatpush1.msra.mxu0 %v1323
        %1325 = vmatprep.subr.mxu0 0.0
        %1326 = vmatpush2.msra.mxu0 0.0
        %1327 = vmatprep.subr.mxu0 0.0
        %1328 = vmatpush2.msra.mxu0 0.0
        %1329 = vmatprep.subr.mxu0 0.0
        %1330 = vmatpush2.msra.mxu0 0.0
        %1331 = vmatprep.subr.mxu0 0.0
        %1332 = vmatpush2.msra.mxu0 0.0
        %1333 = vmatprep.subr.mxu0 0.0
        %1334 = vmatpush2.msra.mxu0 0.0
        %1335 = vmatprep.subr.mxu0 0.0
        %1336 = vmatpush2.msra.mxu0 0.0
        %1337 = vmatprep.subr.mxu0 0.0
        %1338 = vmatpush2.msra.mxu0 0.0
        %1339 = vmatprep.subr.mxu0 0.0
        %1340 = vmatpush2.msra.mxu0 0.0
        %1341 = vmatprep.subr.mxu0 0.0
        %1342 = vmatpush2.msra.mxu0 0.0
        %1343 = vmatprep.subr.mxu0 0.0
        %1344 = vmatpush2.msra.mxu0 0.0
        %1345 = vmatprep.subr.mxu0 0.0
        %1346 = vmatpush2.msra.mxu0 0.0
        %1347 = vmatprep.subr.mxu0 0.0
        %1348 = vmatpush2.msra.mxu0 0.0
        %1349 = vmatprep.subr.mxu0 0.0
        %1350 = vmatpush2.msra.mxu0 0.0
        %1351 = vmatprep.subr.mxu0 0.0
        %1352 = vmatpush2.msra.mxu0 0.0
        %1353 = vmatprep.subr.mxu0 0.0
        %1354 = vmatpush2.msra.mxu0 0.0
        %1355 = vmatprep.subr.mxu0 0.0
        %1356 = vmatpush2.msra.mxu0 0.0
        %1357 = vmatprep.mubr.f32.mxu0 0.0
        %v1358 = vand.u32 %v1262, 4294901760
        %v1359 = vsub.f32 %v1262, %v1358
        %v1360 = vand.u32 %v1359, 4294901760
        %v1361 = vsub.f32 %v1359, %v1360
        %v1362 = vand.u32 %v1361, 4294901760
        %1363 = vmatmul.mubr.f32.gmra.mxu0 %v1362
        %v1364 = vpop.f32.mrf.mxu0
        %v1365 = vadd.f32 0.0, %v1364
        %v1366 = vpop.f32.mrf.mxu0
        %1367 = vmatprep.mubr.f32.mxu0 0.0
        %v1368 = vand.u32 %v1265, 4294901760
        %v1369 = vsub.f32 %v1265, %v1368
        %v1370 = vand.u32 %v1369, 4294901760
        %v1371 = vsub.f32 %v1369, %v1370
        %v1372 = vand.u32 %v1371, 4294901760
        %1373 = vmatmul.mubr.f32.gmra.mxu0 %v1372
        %v1374 = vpop.f32.mrf.mxu0
        %v1375 = vadd.f32 0.0, %v1374
        %v1376 = vpop.f32.mrf.mxu0
        %1377 = vmatprep.mubr.f32.mxu0 0.0
        %v1378 = vand.u32 %v1268, 4294901760
        %v1379 = vsub.f32 %v1268, %v1378
        %v1380 = vand.u32 %v1379, 4294901760
        %v1381 = vsub.f32 %v1379, %v1380
        %v1382 = vand.u32 %v1381, 4294901760
        %1383 = vmatmul.mubr.f32.gmra.mxu0 %v1382
        %v1384 = vpop.f32.mrf.mxu0
        %v1385 = vadd.f32 0.0, %v1384
        %v1386 = vpop.f32.mrf.mxu0
        %1387 = vmatprep.mubr.f32.mxu0 0.0
        %v1388 = vand.u32 %v1271, 4294901760
        %v1389 = vsub.f32 %v1271, %v1388
        %v1390 = vand.u32 %v1389, 4294901760
        %v1391 = vsub.f32 %v1389, %v1390
        %v1392 = vand.u32 %v1391, 4294901760
        %1393 = vmatmul.mubr.f32.gmra.mxu0 %v1392
        %v1394 = vpop.f32.mrf.mxu0
        %v1395 = vadd.f32 0.0, %v1394
        %v1396 = vpop.f32.mrf.mxu0
        %1397 = vmatprep.mubr.f32.mxu0 0.0
        %v1398 = vand.u32 %v1274, 4294901760
        %v1399 = vsub.f32 %v1274, %v1398
        %v1400 = vand.u32 %v1399, 4294901760
        %v1401 = vsub.f32 %v1399, %v1400
        %v1402 = vand.u32 %v1401, 4294901760
        %1403 = vmatmul.mubr.f32.gmra.mxu0 %v1402
        %v1404 = vpop.f32.mrf.mxu0
        %v1405 = vadd.f32 0.0, %v1404
        %v1406 = vpop.f32.mrf.mxu0
        %1407 = vmatprep.mubr.f32.mxu0 0.0
        %v1408 = vand.u32 %v1277, 4294901760
        %v1409 = vsub.f32 %v1277, %v1408
        %v1410 = vand.u32 %v1409, 4294901760
        %v1411 = vsub.f32 %v1409, %v1410
        %v1412 = vand.u32 %v1411, 4294901760
        %1413 = vmatmul.mubr.f32.gmra.mxu0 %v1412
        %v1414 = vpop.f32.mrf.mxu0
        %v1415 = vadd.f32 0.0, %v1414
        %v1416 = vpop.f32.mrf.mxu0
        %1417 = vmatprep.mubr.f32.mxu0 0.0
        %v1418 = vand.u32 %v1280, 4294901760
        %v1419 = vsub.f32 %v1280, %v1418
        %v1420 = vand.u32 %v1419, 4294901760
        %v1421 = vsub.f32 %v1419, %v1420
        %v1422 = vand.u32 %v1421, 4294901760
        %1423 = vmatmul.mubr.f32.gmra.mxu0 %v1422
        %v1424 = vpop.f32.mrf.mxu0
        %v1425 = vadd.f32 0.0, %v1424
        %v1426 = vpop.f32.mrf.mxu0
        %1427 = vmatprep.mubr.f32.mxu0 0.0
        %v1428 = vand.u32 %v1283, 4294901760
        %v1429 = vsub.f32 %v1283, %v1428
        %v1430 = vand.u32 %v1429, 4294901760
        %v1431 = vsub.f32 %v1429, %v1430
        %v1432 = vand.u32 %v1431, 4294901760
        %1433 = vmatmul.mubr.f32.gmra.mxu0 %v1432
        %v1434 = vpop.f32.mrf.mxu0
        %v1435 = vadd.f32 0.0, %v1434
        %v1436 = vpop.f32.mrf.mxu0
        %1437 = vdwg.mxu0
        %1438 = vmatprep.subr.mxu0 0.0
        %1439 = vmatpush1.msra.mxu0 0.0
        %1440 = vmatprep.subr.mxu0 0.0
        %1441 = vmatpush1.msra.mxu0 0.0
        %1442 = vmatprep.subr.mxu0 0.0
        %1443 = vmatpush1.msra.mxu0 0.0
        %1444 = vmatprep.subr.mxu0 0.0
        %1445 = vmatpush1.msra.mxu0 0.0
        %1446 = vmatprep.subr.mxu0 0.0
        %1447 = vmatpush1.msra.mxu0 0.0
        %1448 = vmatprep.subr.mxu0 0.0
        %1449 = vmatpush1.msra.mxu0 0.0
        %1450 = vmatprep.subr.mxu0 0.0
        %1451 = vmatpush1.msra.mxu0 0.0
        %1452 = vmatprep.subr.mxu0 0.0
        %1453 = vmatpush1.msra.mxu0 0.0
        %1454 = vmatprep.subr.mxu0 0.0
        %v1455 = vand.u32 %v1228, 4294901760
        %v1456 = vsub.f32 %v1228, %v1455
        %v1457 = vand.u32 %v1456, 4294901760
        %v1458 = vsub.f32 %v1456, %v1457
        %v1459 = vand.u32 %v1458, 4294901760
        %1460 = vmatpush1.msra.mxu0 %v1459
        %1461 = vmatprep.subr.mxu0 0.0
        %v1462 = vand.u32 %v1227, 4294901760
        %v1463 = vsub.f32 %v1227, %v1462
        %v1464 = vand.u32 %v1463, 4294901760
        %v1465 = vsub.f32 %v1463, %v1464
        %v1466 = vand.u32 %v1465, 4294901760
        %1467 = vmatpush1.msra.mxu0 %v1466
        %1468 = vmatprep.subr.mxu0 0.0
        %v1469 = vand.u32 %v1226, 4294901760
        %v1470 = vsub.f32 %v1226, %v1469
        %v1471 = vand.u32 %v1470, 4294901760
        %v1472 = vsub.f32 %v1470, %v1471
        %v1473 = vand.u32 %v1472, 4294901760
        %1474 = vmatpush1.msra.mxu0 %v1473
        %1475 = vmatprep.subr.mxu0 0.0
        %v1476 = vand.u32 %v1225, 4294901760
        %v1477 = vsub.f32 %v1225, %v1476
        %v1478 = vand.u32 %v1477, 4294901760
        %v1479 = vsub.f32 %v1477, %v1478
        %v1480 = vand.u32 %v1479, 4294901760
        %1481 = vmatpush1.msra.mxu0 %v1480
        %1482 = vmatprep.subr.mxu0 0.0
        %v1483 = vand.u32 %v1224, 4294901760
        %v1484 = vsub.f32 %v1224, %v1483
        %v1485 = vand.u32 %v1484, 4294901760
        %v1486 = vsub.f32 %v1484, %v1485
        %v1487 = vand.u32 %v1486, 4294901760
        %1488 = vmatpush1.msra.mxu0 %v1487
        %1489 = vmatprep.subr.mxu0 0.0
        %v1490 = vand.u32 %v1223, 4294901760
        %v1491 = vsub.f32 %v1223, %v1490
        %v1492 = vand.u32 %v1491, 4294901760
        %v1493 = vsub.f32 %v1491, %v1492
        %v1494 = vand.u32 %v1493, 4294901760
        %1495 = vmatpush1.msra.mxu0 %v1494
        %1496 = vmatprep.subr.mxu0 0.0
        %v1497 = vand.u32 %v1222, 4294901760
        %v1498 = vsub.f32 %v1222, %v1497
        %v1499 = vand.u32 %v1498, 4294901760
        %v1500 = vsub.f32 %v1498, %v1499
        %v1501 = vand.u32 %v1500, 4294901760
        %1502 = vmatpush1.msra.mxu0 %v1501
        %1503 = vmatprep.subr.mxu0 0.0
        %v1504 = vand.u32 %v1221, 4294901760
        %v1505 = vsub.f32 %v1221, %v1504
        %v1506 = vand.u32 %v1505, 4294901760
        %v1507 = vsub.f32 %v1505, %v1506
        %v1508 = vand.u32 %v1507, 4294901760
        %1509 = vmatpush1.msra.mxu0 %v1508
        %1510 = vmatprep.subr.mxu0 0.0
        %1511 = vmatpush2.msra.mxu0 0.0
        %1512 = vmatprep.subr.mxu0 0.0
        %1513 = vmatpush2.msra.mxu0 0.0
        %1514 = vmatprep.subr.mxu0 0.0
        %1515 = vmatpush2.msra.mxu0 0.0
        %1516 = vmatprep.subr.mxu0 0.0
        %1517 = vmatpush2.msra.mxu0 0.0
        %1518 = vmatprep.subr.mxu0 0.0
        %1519 = vmatpush2.msra.mxu0 0.0
        %1520 = vmatprep.subr.mxu0 0.0
        %1521 = vmatpush2.msra.mxu0 0.0
        %1522 = vmatprep.subr.mxu0 0.0
        %1523 = vmatpush2.msra.mxu0 0.0
        %1524 = vmatprep.subr.mxu0 0.0
        %1525 = vmatpush2.msra.mxu0 0.0
        %1526 = vmatprep.subr.mxu0 0.0
        %1527 = vmatpush2.msra.mxu0 0.0
        %1528 = vmatprep.subr.mxu0 0.0
        %1529 = vmatpush2.msra.mxu0 0.0
        %1530 = vmatprep.subr.mxu0 0.0
        %1531 = vmatpush2.msra.mxu0 0.0
        %1532 = vmatprep.subr.mxu0 0.0
        %1533 = vmatpush2.msra.mxu0 0.0
        %1534 = vmatprep.subr.mxu0 0.0
        %1535 = vmatpush2.msra.mxu0 0.0
        %1536 = vmatprep.subr.mxu0 0.0
        %1537 = vmatpush2.msra.mxu0 0.0
        %1538 = vmatprep.subr.mxu0 0.0
        %1539 = vmatpush2.msra.mxu0 0.0
        %1540 = vmatprep.subr.mxu0 0.0
        %1541 = vmatpush2.msra.mxu0 0.0
        %1542 = vmatprep.mubr.f32.mxu0 0.0
        %v1543 = vand.u32 %v1262, 4294901760
        %1544 = vmatmul.mubr.f32.gmra.mxu0 %v1543
        %v1545 = vpop.f32.mrf.mxu0
        %v1546 = vadd.f32 %v1365, %v1545
        %v1547 = vpop.f32.mrf.mxu0
        %1548 = vmatprep.mubr.f32.mxu0 0.0
        %v1549 = vand.u32 %v1265, 4294901760
        %1550 = vmatmul.mubr.f32.gmra.mxu0 %v1549
        %v1551 = vpop.f32.mrf.mxu0
        %v1552 = vadd.f32 %v1375, %v1551
        %v1553 = vpop.f32.mrf.mxu0
        %1554 = vmatprep.mubr.f32.mxu0 0.0
        %v1555 = vand.u32 %v1268, 4294901760
        %1556 = vmatmul.mubr.f32.gmra.mxu0 %v1555
        %v1557 = vpop.f32.mrf.mxu0
        %v1558 = vadd.f32 %v1385, %v1557
        %v1559 = vpop.f32.mrf.mxu0
        %1560 = vmatprep.mubr.f32.mxu0 0.0
        %v1561 = vand.u32 %v1271, 4294901760
        %1562 = vmatmul.mubr.f32.gmra.mxu0 %v1561
        %v1563 = vpop.f32.mrf.mxu0
        %v1564 = vadd.f32 %v1395, %v1563
        %v1565 = vpop.f32.mrf.mxu0
        %1566 = vmatprep.mubr.f32.mxu0 0.0
        %v1567 = vand.u32 %v1274, 4294901760
        %1568 = vmatmul.mubr.f32.gmra.mxu0 %v1567
        %v1569 = vpop.f32.mrf.mxu0
        %v1570 = vadd.f32 %v1405, %v1569
        %v1571 = vpop.f32.mrf.mxu0
        %1572 = vmatprep.mubr.f32.mxu0 0.0
        %v1573 = vand.u32 %v1277, 4294901760
        %1574 = vmatmul.mubr.f32.gmra.mxu0 %v1573
        %v1575 = vpop.f32.mrf.mxu0
        %v1576 = vadd.f32 %v1415, %v1575
        %v1577 = vpop.f32.mrf.mxu0
        %1578 = vmatprep.mubr.f32.mxu0 0.0
        %v1579 = vand.u32 %v1280, 4294901760
        %1580 = vmatmul.mubr.f32.gmra.mxu0 %v1579
        %v1581 = vpop.f32.mrf.mxu0
        %v1582 = vadd.f32 %v1425, %v1581
        %v1583 = vpop.f32.mrf.mxu0
        %1584 = vmatprep.mubr.f32.mxu0 0.0
        %v1585 = vand.u32 %v1283, 4294901760
        %1586 = vmatmul.mubr.f32.gmra.mxu0 %v1585
        %v1587 = vpop.f32.mrf.mxu0
        %v1588 = vadd.f32 %v1435, %v1587
        %v1589 = vpop.f32.mrf.mxu0
        %1590 = vdwg.mxu0
        %1591 = vmatprep.subr.mxu0 0.0
        %1592 = vmatpush1.msra.mxu0 0.0
        %1593 = vmatprep.subr.mxu0 0.0
        %1594 = vmatpush1.msra.mxu0 0.0
        %1595 = vmatprep.subr.mxu0 0.0
        %1596 = vmatpush1.msra.mxu0 0.0
        %1597 = vmatprep.subr.mxu0 0.0
        %1598 = vmatpush1.msra.mxu0 0.0
        %1599 = vmatprep.subr.mxu0 0.0
        %1600 = vmatpush1.msra.mxu0 0.0
        %1601 = vmatprep.subr.mxu0 0.0
        %1602 = vmatpush1.msra.mxu0 0.0
        %1603 = vmatprep.subr.mxu0 0.0
        %1604 = vmatpush1.msra.mxu0 0.0
        %1605 = vmatprep.subr.mxu0 0.0
        %1606 = vmatpush1.msra.mxu0 0.0
        %1607 = vmatprep.subr.mxu0 0.0
        %v1608 = vand.u32 %v1228, 4294901760
        %v1609 = vsub.f32 %v1228, %v1608
        %1610 = vmatpush1.msra.mxu0 %v1609
        %1611 = vmatprep.subr.mxu0 0.0
        %v1612 = vand.u32 %v1227, 4294901760
        %v1613 = vsub.f32 %v1227, %v1612
        %1614 = vmatpush1.msra.mxu0 %v1613
        %1615 = vmatprep.subr.mxu0 0.0
        %v1616 = vand.u32 %v1226, 4294901760
        %v1617 = vsub.f32 %v1226, %v1616
        %1618 = vmatpush1.msra.mxu0 %v1617
        %1619 = vmatprep.subr.mxu0 0.0
        %v1620 = vand.u32 %v1225, 4294901760
        %v1621 = vsub.f32 %v1225, %v1620
        %1622 = vmatpush1.msra.mxu0 %v1621
        %1623 = vmatprep.subr.mxu0 0.0
        %v1624 = vand.u32 %v1224, 4294901760
        %v1625 = vsub.f32 %v1224, %v1624
        %1626 = vmatpush1.msra.mxu0 %v1625
        %1627 = vmatprep.subr.mxu0 0.0
        %v1628 = vand.u32 %v1223, 4294901760
        %v1629 = vsub.f32 %v1223, %v1628
        %1630 = vmatpush1.msra.mxu0 %v1629
        %1631 = vmatprep.subr.mxu0 0.0
        %v1632 = vand.u32 %v1222, 4294901760
        %v1633 = vsub.f32 %v1222, %v1632
        %1634 = vmatpush1.msra.mxu0 %v1633
        %1635 = vmatprep.subr.mxu0 0.0
        %v1636 = vand.u32 %v1221, 4294901760
        %v1637 = vsub.f32 %v1221, %v1636
        %1638 = vmatpush1.msra.mxu0 %v1637
        %1639 = vmatprep.subr.mxu0 0.0
        %1640 = vmatpush2.msra.mxu0 0.0
        %1641 = vmatprep.subr.mxu0 0.0
        %1642 = vmatpush2.msra.mxu0 0.0
        %1643 = vmatprep.subr.mxu0 0.0
        %1644 = vmatpush2.msra.mxu0 0.0
        %1645 = vmatprep.subr.mxu0 0.0
        %1646 = vmatpush2.msra.mxu0 0.0
        %1647 = vmatprep.subr.mxu0 0.0
        %1648 = vmatpush2.msra.mxu0 0.0
        %1649 = vmatprep.subr.mxu0 0.0
        %1650 = vmatpush2.msra.mxu0 0.0
        %1651 = vmatprep.subr.mxu0 0.0
        %1652 = vmatpush2.msra.mxu0 0.0
        %1653 = vmatprep.subr.mxu0 0.0
        %1654 = vmatpush2.msra.mxu0 0.0
        %1655 = vmatprep.subr.mxu0 0.0
        %1656 = vmatpush2.msra.mxu0 0.0
        %1657 = vmatprep.subr.mxu0 0.0
        %1658 = vmatpush2.msra.mxu0 0.0
        %1659 = vmatprep.subr.mxu0 0.0
        %1660 = vmatpush2.msra.mxu0 0.0
        %1661 = vmatprep.subr.mxu0 0.0
        %1662 = vmatpush2.msra.mxu0 0.0
        %1663 = vmatprep.subr.mxu0 0.0
        %1664 = vmatpush2.msra.mxu0 0.0
        %1665 = vmatprep.subr.mxu0 0.0
        %1666 = vmatpush2.msra.mxu0 0.0
        %1667 = vmatprep.subr.mxu0 0.0
        %1668 = vmatpush2.msra.mxu0 0.0
        %1669 = vmatprep.subr.mxu0 0.0
        %1670 = vmatpush2.msra.mxu0 0.0
        %1671 = vmatprep.mubr.f32.mxu0 0.0
        %v1672 = vand.u32 %v1262, 4294901760
        %v1673 = vsub.f32 %v1262, %v1672
        %1674 = vmatmul.mubr.f32.gmra.mxu0 %v1673
        %v1675 = vpop.f32.mrf.mxu0
        %v1676 = vadd.f32 %v1546, %v1675
        %v1677 = vpop.f32.mrf.mxu0
        %1678 = vmatprep.mubr.f32.mxu0 0.0
        %v1679 = vand.u32 %v1265, 4294901760
        %v1680 = vsub.f32 %v1265, %v1679
        %1681 = vmatmul.mubr.f32.gmra.mxu0 %v1680
        %v1682 = vpop.f32.mrf.mxu0
        %v1683 = vadd.f32 %v1552, %v1682
        %v1684 = vpop.f32.mrf.mxu0
        %1685 = vmatprep.mubr.f32.mxu0 0.0
        %v1686 = vand.u32 %v1268, 4294901760
        %v1687 = vsub.f32 %v1268, %v1686
        %1688 = vmatmul.mubr.f32.gmra.mxu0 %v1687
        %v1689 = vpop.f32.mrf.mxu0
        %v1690 = vadd.f32 %v1558, %v1689
        %v1691 = vpop.f32.mrf.mxu0
        %1692 = vmatprep.mubr.f32.mxu0 0.0
        %v1693 = vand.u32 %v1271, 4294901760
        %v1694 = vsub.f32 %v1271, %v1693
        %1695 = vmatmul.mubr.f32.gmra.mxu0 %v1694
        %v1696 = vpop.f32.mrf.mxu0
        %v1697 = vadd.f32 %v1564, %v1696
        %v1698 = vpop.f32.mrf.mxu0
        %1699 = vmatprep.mubr.f32.mxu0 0.0
        %v1700 = vand.u32 %v1274, 4294901760
        %v1701 = vsub.f32 %v1274, %v1700
        %1702 = vmatmul.mubr.f32.gmra.mxu0 %v1701
        %v1703 = vpop.f32.mrf.mxu0
        %v1704 = vadd.f32 %v1570, %v1703
        %v1705 = vpop.f32.mrf.mxu0
        %1706 = vmatprep.mubr.f32.mxu0 0.0
        %v1707 = vand.u32 %v1277, 4294901760
        %v1708 = vsub.f32 %v1277, %v1707
        %1709 = vmatmul.mubr.f32.gmra.mxu0 %v1708
        %v1710 = vpop.f32.mrf.mxu0
        %v1711 = vadd.f32 %v1576, %v1710
        %v1712 = vpop.f32.mrf.mxu0
        %1713 = vmatprep.mubr.f32.mxu0 0.0
        %v1714 = vand.u32 %v1280, 4294901760
        %v1715 = vsub.f32 %v1280, %v1714
        %1716 = vmatmul.mubr.f32.gmra.mxu0 %v1715
        %v1717 = vpop.f32.mrf.mxu0
        %v1718 = vadd.f32 %v1582, %v1717
        %v1719 = vpop.f32.mrf.mxu0
        %1720 = vmatprep.mubr.f32.mxu0 0.0
        %v1721 = vand.u32 %v1283, 4294901760
        %v1722 = vsub.f32 %v1283, %v1721
        %1723 = vmatmul.mubr.f32.gmra.mxu0 %v1722
        %v1724 = vpop.f32.mrf.mxu0
        %v1725 = vadd.f32 %v1588, %v1724
        %v1726 = vpop.f32.mrf.mxu0
        %1727 = vdwg.mxu0
        %1728 = vmatprep.subr.mxu0 0.0
        %1729 = vmatpush1.msra.mxu0 0.0
        %1730 = vmatprep.subr.mxu0 0.0
        %1731 = vmatpush1.msra.mxu0 0.0
        %1732 = vmatprep.subr.mxu0 0.0
        %1733 = vmatpush1.msra.mxu0 0.0
        %1734 = vmatprep.subr.mxu0 0.0
        %1735 = vmatpush1.msra.mxu0 0.0
        %1736 = vmatprep.subr.mxu0 0.0
        %1737 = vmatpush1.msra.mxu0 0.0
        %1738 = vmatprep.subr.mxu0 0.0
        %1739 = vmatpush1.msra.mxu0 0.0
        %1740 = vmatprep.subr.mxu0 0.0
        %1741 = vmatpush1.msra.mxu0 0.0
        %1742 = vmatprep.subr.mxu0 0.0
        %1743 = vmatpush1.msra.mxu0 0.0
        %1744 = vmatprep.subr.mxu0 0.0
        %v1745 = vand.u32 %v1228, 4294901760
        %1746 = vmatpush1.msra.mxu0 %v1745
        %1747 = vmatprep.subr.mxu0 0.0
        %v1748 = vand.u32 %v1227, 4294901760
        %1749 = vmatpush1.msra.mxu0 %v1748
        %1750 = vmatprep.subr.mxu0 0.0
        %v1751 = vand.u32 %v1226, 4294901760
        %1752 = vmatpush1.msra.mxu0 %v1751
        %1753 = vmatprep.subr.mxu0 0.0
        %v1754 = vand.u32 %v1225, 4294901760
        %1755 = vmatpush1.msra.mxu0 %v1754
        %1756 = vmatprep.subr.mxu0 0.0
        %v1757 = vand.u32 %v1224, 4294901760
        %1758 = vmatpush1.msra.mxu0 %v1757
        %1759 = vmatprep.subr.mxu0 0.0
        %v1760 = vand.u32 %v1223, 4294901760
        %1761 = vmatpush1.msra.mxu0 %v1760
        %1762 = vmatprep.subr.mxu0 0.0
        %v1763 = vand.u32 %v1222, 4294901760
        %1764 = vmatpush1.msra.mxu0 %v1763
        %1765 = vmatprep.subr.mxu0 0.0
        %v1766 = vand.u32 %v1221, 4294901760
        %1767 = vmatpush1.msra.mxu0 %v1766
        %1768 = vmatprep.subr.mxu0 0.0
        %1769 = vmatpush2.msra.mxu0 0.0
        %1770 = vmatprep.subr.mxu0 0.0
        %1771 = vmatpush2.msra.mxu0 0.0
        %1772 = vmatprep.subr.mxu0 0.0
        %1773 = vmatpush2.msra.mxu0 0.0
        %1774 = vmatprep.subr.mxu0 0.0
        %1775 = vmatpush2.msra.mxu0 0.0
        %1776 = vmatprep.subr.mxu0 0.0
        %1777 = vmatpush2.msra.mxu0 0.0
        %1778 = vmatprep.subr.mxu0 0.0
        %1779 = vmatpush2.msra.mxu0 0.0
        %1780 = vmatprep.subr.mxu0 0.0
        %1781 = vmatpush2.msra.mxu0 0.0
        %1782 = vmatprep.subr.mxu0 0.0
        %1783 = vmatpush2.msra.mxu0 0.0
        %1784 = vmatprep.subr.mxu0 0.0
        %1785 = vmatpush2.msra.mxu0 0.0
        %1786 = vmatprep.subr.mxu0 0.0
        %1787 = vmatpush2.msra.mxu0 0.0
        %1788 = vmatprep.subr.mxu0 0.0
        %1789 = vmatpush2.msra.mxu0 0.0
        %1790 = vmatprep.subr.mxu0 0.0
        %1791 = vmatpush2.msra.mxu0 0.0
        %1792 = vmatprep.subr.mxu0 0.0
        %1793 = vmatpush2.msra.mxu0 0.0
        %1794 = vmatprep.subr.mxu0 0.0
        %1795 = vmatpush2.msra.mxu0 0.0
        %1796 = vmatprep.subr.mxu0 0.0
        %1797 = vmatpush2.msra.mxu0 0.0
        %1798 = vmatprep.subr.mxu0 0.0
        %1799 = vmatpush2.msra.mxu0 0.0
        %1800 = vmatprep.mubr.f32.mxu0 0.0
        %v1801 = vand.u32 %v1262, 4294901760
        %v1802 = vsub.f32 %v1262, %v1801
        %v1803 = vand.u32 %v1802, 4294901760
        %1804 = vmatmul.mubr.f32.gmra.mxu0 %v1803
        %v1805 = vpop.f32.mrf.mxu0
        %v1806 = vadd.f32 %v1676, %v1805
        %v1807 = vpop.f32.mrf.mxu0
        %1808 = vmatprep.mubr.f32.mxu0 0.0
        %v1809 = vand.u32 %v1265, 4294901760
        %v1810 = vsub.f32 %v1265, %v1809
        %v1811 = vand.u32 %v1810, 4294901760
        %1812 = vmatmul.mubr.f32.gmra.mxu0 %v1811
        %v1813 = vpop.f32.mrf.mxu0
        %v1814 = vadd.f32 %v1683, %v1813
        %v1815 = vpop.f32.mrf.mxu0
        %1816 = vmatprep.mubr.f32.mxu0 0.0
        %v1817 = vand.u32 %v1268, 4294901760
        %v1818 = vsub.f32 %v1268, %v1817
        %v1819 = vand.u32 %v1818, 4294901760
        %1820 = vmatmul.mubr.f32.gmra.mxu0 %v1819
        %v1821 = vpop.f32.mrf.mxu0
        %v1822 = vadd.f32 %v1690, %v1821
        %v1823 = vpop.f32.mrf.mxu0
        %1824 = vmatprep.mubr.f32.mxu0 0.0
        %v1825 = vand.u32 %v1271, 4294901760
        %v1826 = vsub.f32 %v1271, %v1825
        %v1827 = vand.u32 %v1826, 4294901760
        %1828 = vmatmul.mubr.f32.gmra.mxu0 %v1827
        %v1829 = vpop.f32.mrf.mxu0
        %v1830 = vadd.f32 %v1697, %v1829
        %v1831 = vpop.f32.mrf.mxu0
        %1832 = vmatprep.mubr.f32.mxu0 0.0
        %v1833 = vand.u32 %v1274, 4294901760
        %v1834 = vsub.f32 %v1274, %v1833
        %v1835 = vand.u32 %v1834, 4294901760
        %1836 = vmatmul.mubr.f32.gmra.mxu0 %v1835
        %v1837 = vpop.f32.mrf.mxu0
        %v1838 = vadd.f32 %v1704, %v1837
        %v1839 = vpop.f32.mrf.mxu0
        %1840 = vmatprep.mubr.f32.mxu0 0.0
        %v1841 = vand.u32 %v1277, 4294901760
        %v1842 = vsub.f32 %v1277, %v1841
        %v1843 = vand.u32 %v1842, 4294901760
        %1844 = vmatmul.mubr.f32.gmra.mxu0 %v1843
        %v1845 = vpop.f32.mrf.mxu0
        %v1846 = vadd.f32 %v1711, %v1845
        %v1847 = vpop.f32.mrf.mxu0
        %1848 = vmatprep.mubr.f32.mxu0 0.0
        %v1849 = vand.u32 %v1280, 4294901760
        %v1850 = vsub.f32 %v1280, %v1849
        %v1851 = vand.u32 %v1850, 4294901760
        %1852 = vmatmul.mubr.f32.gmra.mxu0 %v1851
        %v1853 = vpop.f32.mrf.mxu0
        %v1854 = vadd.f32 %v1718, %v1853
        %v1855 = vpop.f32.mrf.mxu0
        %1856 = vmatprep.mubr.f32.mxu0 0.0
        %v1857 = vand.u32 %v1283, 4294901760
        %v1858 = vsub.f32 %v1283, %v1857
        %v1859 = vand.u32 %v1858, 4294901760
        %1860 = vmatmul.mubr.f32.gmra.mxu0 %v1859
        %v1861 = vpop.f32.mrf.mxu0
        %v1862 = vadd.f32 %v1725, %v1861
        %v1863 = vpop.f32.mrf.mxu0
        %1864 = vdwg.mxu0
        %1865 = vmatprep.subr.mxu0 0.0
        %1866 = vmatpush1.msra.mxu0 0.0
        %1867 = vmatprep.subr.mxu0 0.0
        %1868 = vmatpush1.msra.mxu0 0.0
        %1869 = vmatprep.subr.mxu0 0.0
        %1870 = vmatpush1.msra.mxu0 0.0
        %1871 = vmatprep.subr.mxu0 0.0
        %1872 = vmatpush1.msra.mxu0 0.0
        %1873 = vmatprep.subr.mxu0 0.0
        %1874 = vmatpush1.msra.mxu0 0.0
        %1875 = vmatprep.subr.mxu0 0.0
        %1876 = vmatpush1.msra.mxu0 0.0
        %1877 = vmatprep.subr.mxu0 0.0
        %1878 = vmatpush1.msra.mxu0 0.0
        %1879 = vmatprep.subr.mxu0 0.0
        %1880 = vmatpush1.msra.mxu0 0.0
        %1881 = vmatprep.subr.mxu0 0.0
        %v1882 = vand.u32 %v1228, 4294901760
        %v1883 = vsub.f32 %v1228, %v1882
        %v1884 = vand.u32 %v1883, 4294901760
        %1885 = vmatpush1.msra.mxu0 %v1884
        %1886 = vmatprep.subr.mxu0 0.0
        %v1887 = vand.u32 %v1227, 4294901760
        %v1888 = vsub.f32 %v1227, %v1887
        %v1889 = vand.u32 %v1888, 4294901760
        %1890 = vmatpush1.msra.mxu0 %v1889
        %1891 = vmatprep.subr.mxu0 0.0
        %v1892 = vand.u32 %v1226, 4294901760
        %v1893 = vsub.f32 %v1226, %v1892
        %v1894 = vand.u32 %v1893, 4294901760
        %1895 = vmatpush1.msra.mxu0 %v1894
        %1896 = vmatprep.subr.mxu0 0.0
        %v1897 = vand.u32 %v1225, 4294901760
        %v1898 = vsub.f32 %v1225, %v1897
        %v1899 = vand.u32 %v1898, 4294901760
        %1900 = vmatpush1.msra.mxu0 %v1899
        %1901 = vmatprep.subr.mxu0 0.0
        %v1902 = vand.u32 %v1224, 4294901760
        %v1903 = vsub.f32 %v1224, %v1902
        %v1904 = vand.u32 %v1903, 4294901760
        %1905 = vmatpush1.msra.mxu0 %v1904
        %1906 = vmatprep.subr.mxu0 0.0
        %v1907 = vand.u32 %v1223, 4294901760
        %v1908 = vsub.f32 %v1223, %v1907
        %v1909 = vand.u32 %v1908, 4294901760
        %1910 = vmatpush1.msra.mxu0 %v1909
        %1911 = vmatprep.subr.mxu0 0.0
        %v1912 = vand.u32 %v1222, 4294901760
        %v1913 = vsub.f32 %v1222, %v1912
        %v1914 = vand.u32 %v1913, 4294901760
        %1915 = vmatpush1.msra.mxu0 %v1914
        %1916 = vmatprep.subr.mxu0 0.0
        %v1917 = vand.u32 %v1221, 4294901760
        %v1918 = vsub.f32 %v1221, %v1917
        %v1919 = vand.u32 %v1918, 4294901760
        %1920 = vmatpush1.msra.mxu0 %v1919
        %1921 = vmatprep.subr.mxu0 0.0
        %1922 = vmatpush2.msra.mxu0 0.0
        %1923 = vmatprep.subr.mxu0 0.0
        %1924 = vmatpush2.msra.mxu0 0.0
        %1925 = vmatprep.subr.mxu0 0.0
        %1926 = vmatpush2.msra.mxu0 0.0
        %1927 = vmatprep.subr.mxu0 0.0
        %1928 = vmatpush2.msra.mxu0 0.0
        %1929 = vmatprep.subr.mxu0 0.0
        %1930 = vmatpush2.msra.mxu0 0.0
        %1931 = vmatprep.subr.mxu0 0.0
        %1932 = vmatpush2.msra.mxu0 0.0
        %1933 = vmatprep.subr.mxu0 0.0
        %1934 = vmatpush2.msra.mxu0 0.0
        %1935 = vmatprep.subr.mxu0 0.0
        %1936 = vmatpush2.msra.mxu0 0.0
        %1937 = vmatprep.subr.mxu0 0.0
        %1938 = vmatpush2.msra.mxu0 0.0
        %1939 = vmatprep.subr.mxu0 0.0
        %1940 = vmatpush2.msra.mxu0 0.0
        %1941 = vmatprep.subr.mxu0 0.0
        %1942 = vmatpush2.msra.mxu0 0.0
        %1943 = vmatprep.subr.mxu0 0.0
        %1944 = vmatpush2.msra.mxu0 0.0
        %1945 = vmatprep.subr.mxu0 0.0
        %1946 = vmatpush2.msra.mxu0 0.0
        %1947 = vmatprep.subr.mxu0 0.0
        %1948 = vmatpush2.msra.mxu0 0.0
        %1949 = vmatprep.subr.mxu0 0.0
        %1950 = vmatpush2.msra.mxu0 0.0
        %1951 = vmatprep.subr.mxu0 0.0
        %1952 = vmatpush2.msra.mxu0 0.0
        %1953 = vmatprep.mubr.f32.mxu0 0.0
        %v1954 = vand.u32 %v1262, 4294901760
        %1955 = vmatmul.mubr.f32.gmra.mxu0 %v1954
        %v1956 = vpop.f32.mrf.mxu0
        %v1957 = vadd.f32 %v1806, %v1956
        %v1958 = vpop.f32.mrf.mxu0
        %1959 = vmatprep.mubr.f32.mxu0 0.0
        %v1960 = vand.u32 %v1265, 4294901760
        %1961 = vmatmul.mubr.f32.gmra.mxu0 %v1960
        %v1962 = vpop.f32.mrf.mxu0
        %v1963 = vadd.f32 %v1814, %v1962
        %v1964 = vpop.f32.mrf.mxu0
        %1965 = vmatprep.mubr.f32.mxu0 0.0
        %v1966 = vand.u32 %v1268, 4294901760
        %1967 = vmatmul.mubr.f32.gmra.mxu0 %v1966
        %v1968 = vpop.f32.mrf.mxu0
        %v1969 = vadd.f32 %v1822, %v1968
        %v1970 = vpop.f32.mrf.mxu0
        %1971 = vmatprep.mubr.f32.mxu0 0.0
        %v1972 = vand.u32 %v1271, 4294901760
        %1973 = vmatmul.mubr.f32.gmra.mxu0 %v1972
        %v1974 = vpop.f32.mrf.mxu0
        %v1975 = vadd.f32 %v1830, %v1974
        %v1976 = vpop.f32.mrf.mxu0
        %1977 = vmatprep.mubr.f32.mxu0 0.0
        %v1978 = vand.u32 %v1274, 4294901760
        %1979 = vmatmul.mubr.f32.gmra.mxu0 %v1978
        %v1980 = vpop.f32.mrf.mxu0
        %v1981 = vadd.f32 %v1838, %v1980
        %v1982 = vpop.f32.mrf.mxu0
        %1983 = vmatprep.mubr.f32.mxu0 0.0
        %v1984 = vand.u32 %v1277, 4294901760
        %1985 = vmatmul.mubr.f32.gmra.mxu0 %v1984
        %v1986 = vpop.f32.mrf.mxu0
        %v1987 = vadd.f32 %v1846, %v1986
        %v1988 = vpop.f32.mrf.mxu0
        %1989 = vmatprep.mubr.f32.mxu0 0.0
        %v1990 = vand.u32 %v1280, 4294901760
        %1991 = vmatmul.mubr.f32.gmra.mxu0 %v1990
        %v1992 = vpop.f32.mrf.mxu0
        %v1993 = vadd.f32 %v1854, %v1992
        %v1994 = vpop.f32.mrf.mxu0
        %1995 = vmatprep.mubr.f32.mxu0 0.0
        %v1996 = vand.u32 %v1283, 4294901760
        %1997 = vmatmul.mubr.f32.gmra.mxu0 %v1996
        %v1998 = vpop.f32.mrf.mxu0
        %v1999 = vadd.f32 %v1862, %v1998
        %v2000 = vpop.f32.mrf.mxu0
        %2001 = vdwg.mxu0
        %2002 = vmatprep.subr.mxu0 0.0
        %2003 = vmatpush1.msra.mxu0 0.0
        %2004 = vmatprep.subr.mxu0 0.0
        %2005 = vmatpush1.msra.mxu0 0.0
        %2006 = vmatprep.subr.mxu0 0.0
        %2007 = vmatpush1.msra.mxu0 0.0
        %2008 = vmatprep.subr.mxu0 0.0
        %2009 = vmatpush1.msra.mxu0 0.0
        %2010 = vmatprep.subr.mxu0 0.0
        %2011 = vmatpush1.msra.mxu0 0.0
        %2012 = vmatprep.subr.mxu0 0.0
        %2013 = vmatpush1.msra.mxu0 0.0
        %2014 = vmatprep.subr.mxu0 0.0
        %2015 = vmatpush1.msra.mxu0 0.0
        %2016 = vmatprep.subr.mxu0 0.0
        %2017 = vmatpush1.msra.mxu0 0.0
        %2018 = vmatprep.subr.mxu0 0.0
        %v2019 = vand.u32 %v1228, 4294901760
        %2020 = vmatpush1.msra.mxu0 %v2019
        %2021 = vmatprep.subr.mxu0 0.0
        %v2022 = vand.u32 %v1227, 4294901760
        %2023 = vmatpush1.msra.mxu0 %v2022
        %2024 = vmatprep.subr.mxu0 0.0
        %v2025 = vand.u32 %v1226, 4294901760
        %2026 = vmatpush1.msra.mxu0 %v2025
        %2027 = vmatprep.subr.mxu0 0.0
        %v2028 = vand.u32 %v1225, 4294901760
        %2029 = vmatpush1.msra.mxu0 %v2028
        %2030 = vmatprep.subr.mxu0 0.0
        %v2031 = vand.u32 %v1224, 4294901760
        %2032 = vmatpush1.msra.mxu0 %v2031
        %2033 = vmatprep.subr.mxu0 0.0
        %v2034 = vand.u32 %v1223, 4294901760
        %2035 = vmatpush1.msra.mxu0 %v2034
        %2036 = vmatprep.subr.mxu0 0.0
        %v2037 = vand.u32 %v1222, 4294901760
        %2038 = vmatpush1.msra.mxu0 %v2037
        %2039 = vmatprep.subr.mxu0 0.0
        %v2040 = vand.u32 %v1221, 4294901760
        %2041 = vmatpush1.msra.mxu0 %v2040
        %2042 = vmatprep.subr.mxu0 0.0
        %2043 = vmatpush2.msra.mxu0 0.0
        %2044 = vmatprep.subr.mxu0 0.0
        %2045 = vmatpush2.msra.mxu0 0.0
        %2046 = vmatprep.subr.mxu0 0.0
        %2047 = vmatpush2.msra.mxu0 0.0
        %2048 = vmatprep.subr.mxu0 0.0
        %2049 = vmatpush2.msra.mxu0 0.0
        %2050 = vmatprep.subr.mxu0 0.0
        %2051 = vmatpush2.msra.mxu0 0.0
        %2052 = vmatprep.subr.mxu0 0.0
        %2053 = vmatpush2.msra.mxu0 0.0
        %2054 = vmatprep.subr.mxu0 0.0
        %2055 = vmatpush2.msra.mxu0 0.0
        %2056 = vmatprep.subr.mxu0 0.0
        %2057 = vmatpush2.msra.mxu0 0.0
        %2058 = vmatprep.subr.mxu0 0.0
        %2059 = vmatpush2.msra.mxu0 0.0
        %2060 = vmatprep.subr.mxu0 0.0
        %2061 = vmatpush2.msra.mxu0 0.0
        %2062 = vmatprep.subr.mxu0 0.0
        %2063 = vmatpush2.msra.mxu0 0.0
        %2064 = vmatprep.subr.mxu0 0.0
        %2065 = vmatpush2.msra.mxu0 0.0
        %2066 = vmatprep.subr.mxu0 0.0
        %2067 = vmatpush2.msra.mxu0 0.0
        %2068 = vmatprep.subr.mxu0 0.0
        %2069 = vmatpush2.msra.mxu0 0.0
        %2070 = vmatprep.subr.mxu0 0.0
        %2071 = vmatpush2.msra.mxu0 0.0
        %2072 = vmatprep.subr.mxu0 0.0
        %2073 = vmatpush2.msra.mxu0 0.0
        %2074 = vmatprep.mubr.f32.mxu0 0.0
        %v2075 = vand.u32 %v1262, 4294901760
        %2076 = vmatmul.mubr.f32.gmra.mxu0 %v2075
        %v2077 = vpop.f32.mrf.mxu0
        %v2078 = vadd.f32 %v1957, %v2077
        %v2079 = vpop.f32.mrf.mxu0
        %2080 = vmatprep.mubr.f32.mxu0 0.0
        %v2081 = vand.u32 %v1265, 4294901760
        %2082 = vmatmul.mubr.f32.gmra.mxu0 %v2081
        %v2083 = vpop.f32.mrf.mxu0
        %v2084 = vadd.f32 %v1963, %v2083
        %v2085 = vpop.f32.mrf.mxu0
        %2086 = vmatprep.mubr.f32.mxu0 0.0
        %v2087 = vand.u32 %v1268, 4294901760
        %2088 = vmatmul.mubr.f32.gmra.mxu0 %v2087
        %v2089 = vpop.f32.mrf.mxu0
        %v2090 = vadd.f32 %v1969, %v2089
        %v2091 = vpop.f32.mrf.mxu0
        %2092 = vmatprep.mubr.f32.mxu0 0.0
        %v2093 = vand.u32 %v1271, 4294901760
        %2094 = vmatmul.mubr.f32.gmra.mxu0 %v2093
        %v2095 = vpop.f32.mrf.mxu0
        %v2096 = vadd.f32 %v1975, %v2095
        %v2097 = vpop.f32.mrf.mxu0
        %2098 = vmatprep.mubr.f32.mxu0 0.0
        %v2099 = vand.u32 %v1274, 4294901760
        %2100 = vmatmul.mubr.f32.gmra.mxu0 %v2099
        %v2101 = vpop.f32.mrf.mxu0
        %v2102 = vadd.f32 %v1981, %v2101
        %v2103 = vpop.f32.mrf.mxu0
        %2104 = vmatprep.mubr.f32.mxu0 0.0
        %v2105 = vand.u32 %v1277, 4294901760
        %2106 = vmatmul.mubr.f32.gmra.mxu0 %v2105
        %v2107 = vpop.f32.mrf.mxu0
        %v2108 = vadd.f32 %v1987, %v2107
        %v2109 = vpop.f32.mrf.mxu0
        %2110 = vmatprep.mubr.f32.mxu0 0.0
        %v2111 = vand.u32 %v1280, 4294901760
        %2112 = vmatmul.mubr.f32.gmra.mxu0 %v2111
        %v2113 = vpop.f32.mrf.mxu0
        %v2114 = vadd.f32 %v1993, %v2113
        %v2115 = vpop.f32.mrf.mxu0
        %2116 = vmatprep.mubr.f32.mxu0 0.0
        %v2117 = vand.u32 %v1283, 4294901760
        %2118 = vmatmul.mubr.f32.gmra.mxu0 %v2117
        %v2119 = vpop.f32.mrf.mxu0
        %v2120 = vadd.f32 %v1999, %v2119
        %v2121 = vpop.f32.mrf.mxu0
        %2122 = vdwg.mxu0
        %v2124 = vsel %vm318, %v278, 0
        %v2127 = vsel %vm318, %v279, 0
        %v2130 = vsel %vm318, %v280, 0
        %v2133 = vsel %vm318, %v281, 0
        %v2136 = vsel %vm318, %v282, 0
        %v2139 = vsel %vm318, %v283, 0
        %v2142 = vsel %vm318, %v284, 0
        %v2145 = vsel %vm318, %v285, 0
        %2147 = vmatprep.subr.mxu0 0.0
        %2148 = vmatpush1.msra.mxu0 0.0
        %2149 = vmatprep.subr.mxu0 0.0
        %2150 = vmatpush1.msra.mxu0 0.0
        %2151 = vmatprep.subr.mxu0 0.0
        %2152 = vmatpush1.msra.mxu0 0.0
        %2153 = vmatprep.subr.mxu0 0.0
        %2154 = vmatpush1.msra.mxu0 0.0
        %2155 = vmatprep.subr.mxu0 0.0
        %2156 = vmatpush1.msra.mxu0 0.0
        %2157 = vmatprep.subr.mxu0 0.0
        %2158 = vmatpush1.msra.mxu0 0.0
        %2159 = vmatprep.subr.mxu0 0.0
        %2160 = vmatpush1.msra.mxu0 0.0
        %2161 = vmatprep.subr.mxu0 0.0
        %2162 = vmatpush1.msra.mxu0 0.0
        %2163 = vmatprep.subr.mxu0 0.0
        %v2164 = vand.u32 %v2120, 4294901760
        %2165 = vmatpush1.msra.mxu0 %v2164
        %2166 = vmatprep.subr.mxu0 0.0
        %v2167 = vand.u32 %v2114, 4294901760
        %2168 = vmatpush1.msra.mxu0 %v2167
        %2169 = vmatprep.subr.mxu0 0.0
        %v2170 = vand.u32 %v2108, 4294901760
        %2171 = vmatpush1.msra.mxu0 %v2170
        %2172 = vmatprep.subr.mxu0 0.0
        %v2173 = vand.u32 %v2102, 4294901760
        %2174 = vmatpush1.msra.mxu0 %v2173
        %2175 = vmatprep.subr.mxu0 0.0
        %v2176 = vand.u32 %v2096, 4294901760
        %2177 = vmatpush1.msra.mxu0 %v2176
        %2178 = vmatprep.subr.mxu0 0.0
        %v2179 = vand.u32 %v2090, 4294901760
        %2180 = vmatpush1.msra.mxu0 %v2179
        %2181 = vmatprep.subr.mxu0 0.0
        %v2182 = vand.u32 %v2084, 4294901760
        %2183 = vmatpush1.msra.mxu0 %v2182
        %2184 = vmatprep.subr.mxu0 0.0
        %v2185 = vand.u32 %v2078, 4294901760
        %2186 = vmatpush1.msra.mxu0 %v2185
        %2187 = vmatprep.subr.mxu0 0.0
        %2188 = vmatpush2.msra.mxu0 0.0
        %2189 = vmatprep.subr.mxu0 0.0
        %2190 = vmatpush2.msra.mxu0 0.0
        %2191 = vmatprep.subr.mxu0 0.0
        %2192 = vmatpush2.msra.mxu0 0.0
        %2193 = vmatprep.subr.mxu0 0.0
        %2194 = vmatpush2.msra.mxu0 0.0
        %2195 = vmatprep.subr.mxu0 0.0
        %2196 = vmatpush2.msra.mxu0 0.0
        %2197 = vmatprep.subr.mxu0 0.0
        %2198 = vmatpush2.msra.mxu0 0.0
        %2199 = vmatprep.subr.mxu0 0.0
        %2200 = vmatpush2.msra.mxu0 0.0
        %2201 = vmatprep.subr.mxu0 0.0
        %2202 = vmatpush2.msra.mxu0 0.0
        %2203 = vmatprep.subr.mxu0 0.0
        %2204 = vmatpush2.msra.mxu0 0.0
        %2205 = vmatprep.subr.mxu0 0.0
        %2206 = vmatpush2.msra.mxu0 0.0
        %2207 = vmatprep.subr.mxu0 0.0
        %2208 = vmatpush2.msra.mxu0 0.0
        %2209 = vmatprep.subr.mxu0 0.0
        %2210 = vmatpush2.msra.mxu0 0.0
        %2211 = vmatprep.subr.mxu0 0.0
        %2212 = vmatpush2.msra.mxu0 0.0
        %2213 = vmatprep.subr.mxu0 0.0
        %2214 = vmatpush2.msra.mxu0 0.0
        %2215 = vmatprep.subr.mxu0 0.0
        %2216 = vmatpush2.msra.mxu0 0.0
        %2217 = vmatprep.subr.mxu0 0.0
        %2218 = vmatpush2.msra.mxu0 0.0
        %2219 = vmatprep.mubr.f32.mxu0 0.0
        %v2220 = vand.u32 %v2124, 4294901760
        %v2221 = vsub.f32 %v2124, %v2220
        %v2222 = vand.u32 %v2221, 4294901760
        %v2223 = vsub.f32 %v2221, %v2222
        %v2224 = vand.u32 %v2223, 4294901760
        %2225 = vmatmul.mubr.f32.gmra.mxu0 %v2224
        %v2226 = vpop.f32.mrf.mxu0
        %v2227 = vadd.f32 0.0, %v2226
        %v2228 = vpop.f32.mrf.mxu0
        %2229 = vmatprep.mubr.f32.mxu0 0.0
        %v2230 = vand.u32 %v2127, 4294901760
        %v2231 = vsub.f32 %v2127, %v2230
        %v2232 = vand.u32 %v2231, 4294901760
        %v2233 = vsub.f32 %v2231, %v2232
        %v2234 = vand.u32 %v2233, 4294901760
        %2235 = vmatmul.mubr.f32.gmra.mxu0 %v2234
        %v2236 = vpop.f32.mrf.mxu0
        %v2237 = vadd.f32 0.0, %v2236
        %v2238 = vpop.f32.mrf.mxu0
        %2239 = vmatprep.mubr.f32.mxu0 0.0
        %v2240 = vand.u32 %v2130, 4294901760
        %v2241 = vsub.f32 %v2130, %v2240
        %v2242 = vand.u32 %v2241, 4294901760
        %v2243 = vsub.f32 %v2241, %v2242
        %v2244 = vand.u32 %v2243, 4294901760
        %2245 = vmatmul.mubr.f32.gmra.mxu0 %v2244
        %v2246 = vpop.f32.mrf.mxu0
        %v2247 = vadd.f32 0.0, %v2246
        %v2248 = vpop.f32.mrf.mxu0
        %2249 = vmatprep.mubr.f32.mxu0 0.0
        %v2250 = vand.u32 %v2133, 4294901760
        %v2251 = vsub.f32 %v2133, %v2250
        %v2252 = vand.u32 %v2251, 4294901760
        %v2253 = vsub.f32 %v2251, %v2252
        %v2254 = vand.u32 %v2253, 4294901760
        %2255 = vmatmul.mubr.f32.gmra.mxu0 %v2254
        %v2256 = vpop.f32.mrf.mxu0
        %v2257 = vadd.f32 0.0, %v2256
        %v2258 = vpop.f32.mrf.mxu0
        %2259 = vmatprep.mubr.f32.mxu0 0.0
        %v2260 = vand.u32 %v2136, 4294901760
        %v2261 = vsub.f32 %v2136, %v2260
        %v2262 = vand.u32 %v2261, 4294901760
        %v2263 = vsub.f32 %v2261, %v2262
        %v2264 = vand.u32 %v2263, 4294901760
        %2265 = vmatmul.mubr.f32.gmra.mxu0 %v2264
        %v2266 = vpop.f32.mrf.mxu0
        %v2267 = vadd.f32 0.0, %v2266
        %v2268 = vpop.f32.mrf.mxu0
        %2269 = vmatprep.mubr.f32.mxu0 0.0
        %v2270 = vand.u32 %v2139, 4294901760
        %v2271 = vsub.f32 %v2139, %v2270
        %v2272 = vand.u32 %v2271, 4294901760
        %v2273 = vsub.f32 %v2271, %v2272
        %v2274 = vand.u32 %v2273, 4294901760
        %2275 = vmatmul.mubr.f32.gmra.mxu0 %v2274
        %v2276 = vpop.f32.mrf.mxu0
        %v2277 = vadd.f32 0.0, %v2276
        %v2278 = vpop.f32.mrf.mxu0
        %2279 = vmatprep.mubr.f32.mxu0 0.0
        %v2280 = vand.u32 %v2142, 4294901760
        %v2281 = vsub.f32 %v2142, %v2280
        %v2282 = vand.u32 %v2281, 4294901760
        %v2283 = vsub.f32 %v2281, %v2282
        %v2284 = vand.u32 %v2283, 4294901760
        %2285 = vmatmul.mubr.f32.gmra.mxu0 %v2284
        %v2286 = vpop.f32.mrf.mxu0
        %v2287 = vadd.f32 0.0, %v2286
        %v2288 = vpop.f32.mrf.mxu0
        %2289 = vmatprep.mubr.f32.mxu0 0.0
        %v2290 = vand.u32 %v2145, 4294901760
        %v2291 = vsub.f32 %v2145, %v2290
        %v2292 = vand.u32 %v2291, 4294901760
        %v2293 = vsub.f32 %v2291, %v2292
        %v2294 = vand.u32 %v2293, 4294901760
        %2295 = vmatmul.mubr.f32.gmra.mxu0 %v2294
        %v2296 = vpop.f32.mrf.mxu0
        %v2297 = vadd.f32 0.0, %v2296
        %v2298 = vpop.f32.mrf.mxu0
        %2299 = vdwg.mxu0
        %2300 = vmatprep.subr.mxu0 0.0
        %2301 = vmatpush1.msra.mxu0 0.0
        %2302 = vmatprep.subr.mxu0 0.0
        %2303 = vmatpush1.msra.mxu0 0.0
        %2304 = vmatprep.subr.mxu0 0.0
        %2305 = vmatpush1.msra.mxu0 0.0
        %2306 = vmatprep.subr.mxu0 0.0
        %2307 = vmatpush1.msra.mxu0 0.0
        %2308 = vmatprep.subr.mxu0 0.0
        %2309 = vmatpush1.msra.mxu0 0.0
        %2310 = vmatprep.subr.mxu0 0.0
        %2311 = vmatpush1.msra.mxu0 0.0
        %2312 = vmatprep.subr.mxu0 0.0
        %2313 = vmatpush1.msra.mxu0 0.0
        %2314 = vmatprep.subr.mxu0 0.0
        %2315 = vmatpush1.msra.mxu0 0.0
        %2316 = vmatprep.subr.mxu0 0.0
        %v2317 = vand.u32 %v2120, 4294901760
        %v2318 = vsub.f32 %v2120, %v2317
        %v2319 = vand.u32 %v2318, 4294901760
        %v2320 = vsub.f32 %v2318, %v2319
        %v2321 = vand.u32 %v2320, 4294901760
        %2322 = vmatpush1.msra.mxu0 %v2321
        %2323 = vmatprep.subr.mxu0 0.0
        %v2324 = vand.u32 %v2114, 4294901760
        %v2325 = vsub.f32 %v2114, %v2324
        %v2326 = vand.u32 %v2325, 4294901760
        %v2327 = vsub.f32 %v2325, %v2326
        %v2328 = vand.u32 %v2327, 4294901760
        %2329 = vmatpush1.msra.mxu0 %v2328
        %2330 = vmatprep.subr.mxu0 0.0
        %v2331 = vand.u32 %v2108, 4294901760
        %v2332 = vsub.f32 %v2108, %v2331
        %v2333 = vand.u32 %v2332, 4294901760
        %v2334 = vsub.f32 %v2332, %v2333
        %v2335 = vand.u32 %v2334, 4294901760
        %2336 = vmatpush1.msra.mxu0 %v2335
        %2337 = vmatprep.subr.mxu0 0.0
        %v2338 = vand.u32 %v2102, 4294901760
        %v2339 = vsub.f32 %v2102, %v2338
        %v2340 = vand.u32 %v2339, 4294901760
        %v2341 = vsub.f32 %v2339, %v2340
        %v2342 = vand.u32 %v2341, 4294901760
        %2343 = vmatpush1.msra.mxu0 %v2342
        %2344 = vmatprep.subr.mxu0 0.0
        %v2345 = vand.u32 %v2096, 4294901760
        %v2346 = vsub.f32 %v2096, %v2345
        %v2347 = vand.u32 %v2346, 4294901760
        %v2348 = vsub.f32 %v2346, %v2347
        %v2349 = vand.u32 %v2348, 4294901760
        %2350 = vmatpush1.msra.mxu0 %v2349
        %2351 = vmatprep.subr.mxu0 0.0
        %v2352 = vand.u32 %v2090, 4294901760
        %v2353 = vsub.f32 %v2090, %v2352
        %v2354 = vand.u32 %v2353, 4294901760
        %v2355 = vsub.f32 %v2353, %v2354
        %v2356 = vand.u32 %v2355, 4294901760
        %2357 = vmatpush1.msra.mxu0 %v2356
        %2358 = vmatprep.subr.mxu0 0.0
        %v2359 = vand.u32 %v2084, 4294901760
        %v2360 = vsub.f32 %v2084, %v2359
        %v2361 = vand.u32 %v2360, 4294901760
        %v2362 = vsub.f32 %v2360, %v2361
        %v2363 = vand.u32 %v2362, 4294901760
        %2364 = vmatpush1.msra.mxu0 %v2363
        %2365 = vmatprep.subr.mxu0 0.0
        %v2366 = vand.u32 %v2078, 4294901760
        %v2367 = vsub.f32 %v2078, %v2366
        %v2368 = vand.u32 %v2367, 4294901760
        %v2369 = vsub.f32 %v2367, %v2368
        %v2370 = vand.u32 %v2369, 4294901760
        %2371 = vmatpush1.msra.mxu0 %v2370
        %2372 = vmatprep.subr.mxu0 0.0
        %2373 = vmatpush2.msra.mxu0 0.0
        %2374 = vmatprep.subr.mxu0 0.0
        %2375 = vmatpush2.msra.mxu0 0.0
        %2376 = vmatprep.subr.mxu0 0.0
        %2377 = vmatpush2.msra.mxu0 0.0
        %2378 = vmatprep.subr.mxu0 0.0
        %2379 = vmatpush2.msra.mxu0 0.0
        %2380 = vmatprep.subr.mxu0 0.0
        %2381 = vmatpush2.msra.mxu0 0.0
        %2382 = vmatprep.subr.mxu0 0.0
        %2383 = vmatpush2.msra.mxu0 0.0
        %2384 = vmatprep.subr.mxu0 0.0
        %2385 = vmatpush2.msra.mxu0 0.0
        %2386 = vmatprep.subr.mxu0 0.0
        %2387 = vmatpush2.msra.mxu0 0.0
        %2388 = vmatprep.subr.mxu0 0.0
        %2389 = vmatpush2.msra.mxu0 0.0
        %2390 = vmatprep.subr.mxu0 0.0
        %2391 = vmatpush2.msra.mxu0 0.0
        %2392 = vmatprep.subr.mxu0 0.0
        %2393 = vmatpush2.msra.mxu0 0.0
        %2394 = vmatprep.subr.mxu0 0.0
        %2395 = vmatpush2.msra.mxu0 0.0
        %2396 = vmatprep.subr.mxu0 0.0
        %2397 = vmatpush2.msra.mxu0 0.0
        %2398 = vmatprep.subr.mxu0 0.0
        %2399 = vmatpush2.msra.mxu0 0.0
        %2400 = vmatprep.subr.mxu0 0.0
        %2401 = vmatpush2.msra.mxu0 0.0
        %2402 = vmatprep.subr.mxu0 0.0
        %2403 = vmatpush2.msra.mxu0 0.0
        %2404 = vmatprep.mubr.f32.mxu0 0.0
        %v2405 = vand.u32 %v2124, 4294901760
        %2406 = vmatmul.mubr.f32.gmra.mxu0 %v2405
        %v2407 = vpop.f32.mrf.mxu0
        %v2408 = vadd.f32 %v2227, %v2407
        %v2409 = vpop.f32.mrf.mxu0
        %2410 = vmatprep.mubr.f32.mxu0 0.0
        %v2411 = vand.u32 %v2127, 4294901760
        %2412 = vmatmul.mubr.f32.gmra.mxu0 %v2411
        %v2413 = vpop.f32.mrf.mxu0
        %v2414 = vadd.f32 %v2237, %v2413
        %v2415 = vpop.f32.mrf.mxu0
        %2416 = vmatprep.mubr.f32.mxu0 0.0
        %v2417 = vand.u32 %v2130, 4294901760
        %2418 = vmatmul.mubr.f32.gmra.mxu0 %v2417
        %v2419 = vpop.f32.mrf.mxu0
        %v2420 = vadd.f32 %v2247, %v2419
        %v2421 = vpop.f32.mrf.mxu0
        %2422 = vmatprep.mubr.f32.mxu0 0.0
        %v2423 = vand.u32 %v2133, 4294901760
        %2424 = vmatmul.mubr.f32.gmra.mxu0 %v2423
        %v2425 = vpop.f32.mrf.mxu0
        %v2426 = vadd.f32 %v2257, %v2425
        %v2427 = vpop.f32.mrf.mxu0
        %2428 = vmatprep.mubr.f32.mxu0 0.0
        %v2429 = vand.u32 %v2136, 4294901760
        %2430 = vmatmul.mubr.f32.gmra.mxu0 %v2429
        %v2431 = vpop.f32.mrf.mxu0
        %v2432 = vadd.f32 %v2267, %v2431
        %v2433 = vpop.f32.mrf.mxu0
        %2434 = vmatprep.mubr.f32.mxu0 0.0
        %v2435 = vand.u32 %v2139, 4294901760
        %2436 = vmatmul.mubr.f32.gmra.mxu0 %v2435
        %v2437 = vpop.f32.mrf.mxu0
        %v2438 = vadd.f32 %v2277, %v2437
        %v2439 = vpop.f32.mrf.mxu0
        %2440 = vmatprep.mubr.f32.mxu0 0.0
        %v2441 = vand.u32 %v2142, 4294901760
        %2442 = vmatmul.mubr.f32.gmra.mxu0 %v2441
        %v2443 = vpop.f32.mrf.mxu0
        %v2444 = vadd.f32 %v2287, %v2443
        %v2445 = vpop.f32.mrf.mxu0
        %2446 = vmatprep.mubr.f32.mxu0 0.0
        %v2447 = vand.u32 %v2145, 4294901760
        %2448 = vmatmul.mubr.f32.gmra.mxu0 %v2447
        %v2449 = vpop.f32.mrf.mxu0
        %v2450 = vadd.f32 %v2297, %v2449
        %v2451 = vpop.f32.mrf.mxu0
        %2452 = vdwg.mxu0
        %2453 = vmatprep.subr.mxu0 0.0
        %2454 = vmatpush1.msra.mxu0 0.0
        %2455 = vmatprep.subr.mxu0 0.0
        %2456 = vmatpush1.msra.mxu0 0.0
        %2457 = vmatprep.subr.mxu0 0.0
        %2458 = vmatpush1.msra.mxu0 0.0
        %2459 = vmatprep.subr.mxu0 0.0
        %2460 = vmatpush1.msra.mxu0 0.0
        %2461 = vmatprep.subr.mxu0 0.0
        %2462 = vmatpush1.msra.mxu0 0.0
        %2463 = vmatprep.subr.mxu0 0.0
        %2464 = vmatpush1.msra.mxu0 0.0
        %2465 = vmatprep.subr.mxu0 0.0
        %2466 = vmatpush1.msra.mxu0 0.0
        %2467 = vmatprep.subr.mxu0 0.0
        %2468 = vmatpush1.msra.mxu0 0.0
        %2469 = vmatprep.subr.mxu0 0.0
        %v2470 = vand.u32 %v2120, 4294901760
        %v2471 = vsub.f32 %v2120, %v2470
        %2472 = vmatpush1.msra.mxu0 %v2471
        %2473 = vmatprep.subr.mxu0 0.0
        %v2474 = vand.u32 %v2114, 4294901760
        %v2475 = vsub.f32 %v2114, %v2474
        %2476 = vmatpush1.msra.mxu0 %v2475
        %2477 = vmatprep.subr.mxu0 0.0
        %v2478 = vand.u32 %v2108, 4294901760
        %v2479 = vsub.f32 %v2108, %v2478
        %2480 = vmatpush1.msra.mxu0 %v2479
        %2481 = vmatprep.subr.mxu0 0.0
        %v2482 = vand.u32 %v2102, 4294901760
        %v2483 = vsub.f32 %v2102, %v2482
        %2484 = vmatpush1.msra.mxu0 %v2483
        %2485 = vmatprep.subr.mxu0 0.0
        %v2486 = vand.u32 %v2096, 4294901760
        %v2487 = vsub.f32 %v2096, %v2486
        %2488 = vmatpush1.msra.mxu0 %v2487
        %2489 = vmatprep.subr.mxu0 0.0
        %v2490 = vand.u32 %v2090, 4294901760
        %v2491 = vsub.f32 %v2090, %v2490
        %2492 = vmatpush1.msra.mxu0 %v2491
        %2493 = vmatprep.subr.mxu0 0.0
        %v2494 = vand.u32 %v2084, 4294901760
        %v2495 = vsub.f32 %v2084, %v2494
        %2496 = vmatpush1.msra.mxu0 %v2495
        %2497 = vmatprep.subr.mxu0 0.0
        %v2498 = vand.u32 %v2078, 4294901760
        %v2499 = vsub.f32 %v2078, %v2498
        %2500 = vmatpush1.msra.mxu0 %v2499
        %2501 = vmatprep.subr.mxu0 0.0
        %2502 = vmatpush2.msra.mxu0 0.0
        %2503 = vmatprep.subr.mxu0 0.0
        %2504 = vmatpush2.msra.mxu0 0.0
        %2505 = vmatprep.subr.mxu0 0.0
        %2506 = vmatpush2.msra.mxu0 0.0
        %2507 = vmatprep.subr.mxu0 0.0
        %2508 = vmatpush2.msra.mxu0 0.0
        %2509 = vmatprep.subr.mxu0 0.0
        %2510 = vmatpush2.msra.mxu0 0.0
        %2511 = vmatprep.subr.mxu0 0.0
        %2512 = vmatpush2.msra.mxu0 0.0
        %2513 = vmatprep.subr.mxu0 0.0
        %2514 = vmatpush2.msra.mxu0 0.0
        %2515 = vmatprep.subr.mxu0 0.0
        %2516 = vmatpush2.msra.mxu0 0.0
        %2517 = vmatprep.subr.mxu0 0.0
        %2518 = vmatpush2.msra.mxu0 0.0
        %2519 = vmatprep.subr.mxu0 0.0
        %2520 = vmatpush2.msra.mxu0 0.0
        %2521 = vmatprep.subr.mxu0 0.0
        %2522 = vmatpush2.msra.mxu0 0.0
        %2523 = vmatprep.subr.mxu0 0.0
        %2524 = vmatpush2.msra.mxu0 0.0
        %2525 = vmatprep.subr.mxu0 0.0
        %2526 = vmatpush2.msra.mxu0 0.0
        %2527 = vmatprep.subr.mxu0 0.0
        %2528 = vmatpush2.msra.mxu0 0.0
        %2529 = vmatprep.subr.mxu0 0.0
        %2530 = vmatpush2.msra.mxu0 0.0
        %2531 = vmatprep.subr.mxu0 0.0
        %2532 = vmatpush2.msra.mxu0 0.0
        %2533 = vmatprep.mubr.f32.mxu0 0.0
        %v2534 = vand.u32 %v2124, 4294901760
        %v2535 = vsub.f32 %v2124, %v2534
        %2536 = vmatmul.mubr.f32.gmra.mxu0 %v2535
        %v2537 = vpop.f32.mrf.mxu0
        %v2538 = vadd.f32 %v2408, %v2537
        %v2539 = vpop.f32.mrf.mxu0
        %2540 = vmatprep.mubr.f32.mxu0 0.0
        %v2541 = vand.u32 %v2127, 4294901760
        %v2542 = vsub.f32 %v2127, %v2541
        %2543 = vmatmul.mubr.f32.gmra.mxu0 %v2542
        %v2544 = vpop.f32.mrf.mxu0
        %v2545 = vadd.f32 %v2414, %v2544
        %v2546 = vpop.f32.mrf.mxu0
        %2547 = vmatprep.mubr.f32.mxu0 0.0
        %v2548 = vand.u32 %v2130, 4294901760
        %v2549 = vsub.f32 %v2130, %v2548
        %2550 = vmatmul.mubr.f32.gmra.mxu0 %v2549
        %v2551 = vpop.f32.mrf.mxu0
        %v2552 = vadd.f32 %v2420, %v2551
        %v2553 = vpop.f32.mrf.mxu0
        %2554 = vmatprep.mubr.f32.mxu0 0.0
        %v2555 = vand.u32 %v2133, 4294901760
        %v2556 = vsub.f32 %v2133, %v2555
        %2557 = vmatmul.mubr.f32.gmra.mxu0 %v2556
        %v2558 = vpop.f32.mrf.mxu0
        %v2559 = vadd.f32 %v2426, %v2558
        %v2560 = vpop.f32.mrf.mxu0
        %2561 = vmatprep.mubr.f32.mxu0 0.0
        %v2562 = vand.u32 %v2136, 4294901760
        %v2563 = vsub.f32 %v2136, %v2562
        %2564 = vmatmul.mubr.f32.gmra.mxu0 %v2563
        %v2565 = vpop.f32.mrf.mxu0
        %v2566 = vadd.f32 %v2432, %v2565
        %v2567 = vpop.f32.mrf.mxu0
        %2568 = vmatprep.mubr.f32.mxu0 0.0
        %v2569 = vand.u32 %v2139, 4294901760
        %v2570 = vsub.f32 %v2139, %v2569
        %2571 = vmatmul.mubr.f32.gmra.mxu0 %v2570
        %v2572 = vpop.f32.mrf.mxu0
        %v2573 = vadd.f32 %v2438, %v2572
        %v2574 = vpop.f32.mrf.mxu0
        %2575 = vmatprep.mubr.f32.mxu0 0.0
        %v2576 = vand.u32 %v2142, 4294901760
        %v2577 = vsub.f32 %v2142, %v2576
        %2578 = vmatmul.mubr.f32.gmra.mxu0 %v2577
        %v2579 = vpop.f32.mrf.mxu0
        %v2580 = vadd.f32 %v2444, %v2579
        %v2581 = vpop.f32.mrf.mxu0
        %2582 = vmatprep.mubr.f32.mxu0 0.0
        %v2583 = vand.u32 %v2145, 4294901760
        %v2584 = vsub.f32 %v2145, %v2583
        %2585 = vmatmul.mubr.f32.gmra.mxu0 %v2584
        %v2586 = vpop.f32.mrf.mxu0
        %v2587 = vadd.f32 %v2450, %v2586
        %v2588 = vpop.f32.mrf.mxu0
        %2589 = vdwg.mxu0
        %2590 = vmatprep.subr.mxu0 0.0
        %2591 = vmatpush1.msra.mxu0 0.0
        %2592 = vmatprep.subr.mxu0 0.0
        %2593 = vmatpush1.msra.mxu0 0.0
        %2594 = vmatprep.subr.mxu0 0.0
        %2595 = vmatpush1.msra.mxu0 0.0
        %2596 = vmatprep.subr.mxu0 0.0
        %2597 = vmatpush1.msra.mxu0 0.0
        %2598 = vmatprep.subr.mxu0 0.0
        %2599 = vmatpush1.msra.mxu0 0.0
        %2600 = vmatprep.subr.mxu0 0.0
        %2601 = vmatpush1.msra.mxu0 0.0
        %2602 = vmatprep.subr.mxu0 0.0
        %2603 = vmatpush1.msra.mxu0 0.0
        %2604 = vmatprep.subr.mxu0 0.0
        %2605 = vmatpush1.msra.mxu0 0.0
        %2606 = vmatprep.subr.mxu0 0.0
        %v2607 = vand.u32 %v2120, 4294901760
        %2608 = vmatpush1.msra.mxu0 %v2607
        %2609 = vmatprep.subr.mxu0 0.0
        %v2610 = vand.u32 %v2114, 4294901760
        %2611 = vmatpush1.msra.mxu0 %v2610
        %2612 = vmatprep.subr.mxu0 0.0
        %v2613 = vand.u32 %v2108, 4294901760
        %2614 = vmatpush1.msra.mxu0 %v2613
        %2615 = vmatprep.subr.mxu0 0.0
        %v2616 = vand.u32 %v2102, 4294901760
        %2617 = vmatpush1.msra.mxu0 %v2616
        %2618 = vmatprep.subr.mxu0 0.0
        %v2619 = vand.u32 %v2096, 4294901760
        %2620 = vmatpush1.msra.mxu0 %v2619
        %2621 = vmatprep.subr.mxu0 0.0
        %v2622 = vand.u32 %v2090, 4294901760
        %2623 = vmatpush1.msra.mxu0 %v2622
        %2624 = vmatprep.subr.mxu0 0.0
        %v2625 = vand.u32 %v2084, 4294901760
        %2626 = vmatpush1.msra.mxu0 %v2625
        %2627 = vmatprep.subr.mxu0 0.0
        %v2628 = vand.u32 %v2078, 4294901760
        %2629 = vmatpush1.msra.mxu0 %v2628
        %2630 = vmatprep.subr.mxu0 0.0
        %2631 = vmatpush2.msra.mxu0 0.0
        %2632 = vmatprep.subr.mxu0 0.0
        %2633 = vmatpush2.msra.mxu0 0.0
        %2634 = vmatprep.subr.mxu0 0.0
        %2635 = vmatpush2.msra.mxu0 0.0
        %2636 = vmatprep.subr.mxu0 0.0
        %2637 = vmatpush2.msra.mxu0 0.0
        %2638 = vmatprep.subr.mxu0 0.0
        %2639 = vmatpush2.msra.mxu0 0.0
        %2640 = vmatprep.subr.mxu0 0.0
        %2641 = vmatpush2.msra.mxu0 0.0
        %2642 = vmatprep.subr.mxu0 0.0
        %2643 = vmatpush2.msra.mxu0 0.0
        %2644 = vmatprep.subr.mxu0 0.0
        %2645 = vmatpush2.msra.mxu0 0.0
        %2646 = vmatprep.subr.mxu0 0.0
        %2647 = vmatpush2.msra.mxu0 0.0
        %2648 = vmatprep.subr.mxu0 0.0
        %2649 = vmatpush2.msra.mxu0 0.0
        %2650 = vmatprep.subr.mxu0 0.0
        %2651 = vmatpush2.msra.mxu0 0.0
        %2652 = vmatprep.subr.mxu0 0.0
        %2653 = vmatpush2.msra.mxu0 0.0
        %2654 = vmatprep.subr.mxu0 0.0
        %2655 = vmatpush2.msra.mxu0 0.0
        %2656 = vmatprep.subr.mxu0 0.0
        %2657 = vmatpush2.msra.mxu0 0.0
        %2658 = vmatprep.subr.mxu0 0.0
        %2659 = vmatpush2.msra.mxu0 0.0
        %2660 = vmatprep.subr.mxu0 0.0
        %2661 = vmatpush2.msra.mxu0 0.0
        %2662 = vmatprep.mubr.f32.mxu0 0.0
        %v2663 = vand.u32 %v2124, 4294901760
        %v2664 = vsub.f32 %v2124, %v2663
        %v2665 = vand.u32 %v2664, 4294901760
        %2666 = vmatmul.mubr.f32.gmra.mxu0 %v2665
        %v2667 = vpop.f32.mrf.mxu0
        %v2668 = vadd.f32 %v2538, %v2667
        %v2669 = vpop.f32.mrf.mxu0
        %2670 = vmatprep.mubr.f32.mxu0 0.0
        %v2671 = vand.u32 %v2127, 4294901760
        %v2672 = vsub.f32 %v2127, %v2671
        %v2673 = vand.u32 %v2672, 4294901760
        %2674 = vmatmul.mubr.f32.gmra.mxu0 %v2673
        %v2675 = vpop.f32.mrf.mxu0
        %v2676 = vadd.f32 %v2545, %v2675
        %v2677 = vpop.f32.mrf.mxu0
        %2678 = vmatprep.mubr.f32.mxu0 0.0
        %v2679 = vand.u32 %v2130, 4294901760
        %v2680 = vsub.f32 %v2130, %v2679
        %v2681 = vand.u32 %v2680, 4294901760
        %2682 = vmatmul.mubr.f32.gmra.mxu0 %v2681
        %v2683 = vpop.f32.mrf.mxu0
        %v2684 = vadd.f32 %v2552, %v2683
        %v2685 = vpop.f32.mrf.mxu0
        %2686 = vmatprep.mubr.f32.mxu0 0.0
        %v2687 = vand.u32 %v2133, 4294901760
        %v2688 = vsub.f32 %v2133, %v2687
        %v2689 = vand.u32 %v2688, 4294901760
        %2690 = vmatmul.mubr.f32.gmra.mxu0 %v2689
        %v2691 = vpop.f32.mrf.mxu0
        %v2692 = vadd.f32 %v2559, %v2691
        %v2693 = vpop.f32.mrf.mxu0
        %2694 = vmatprep.mubr.f32.mxu0 0.0
        %v2695 = vand.u32 %v2136, 4294901760
        %v2696 = vsub.f32 %v2136, %v2695
        %v2697 = vand.u32 %v2696, 4294901760
        %2698 = vmatmul.mubr.f32.gmra.mxu0 %v2697
        %v2699 = vpop.f32.mrf.mxu0
        %v2700 = vadd.f32 %v2566, %v2699
        %v2701 = vpop.f32.mrf.mxu0
        %2702 = vmatprep.mubr.f32.mxu0 0.0
        %v2703 = vand.u32 %v2139, 4294901760
        %v2704 = vsub.f32 %v2139, %v2703
        %v2705 = vand.u32 %v2704, 4294901760
        %2706 = vmatmul.mubr.f32.gmra.mxu0 %v2705
        %v2707 = vpop.f32.mrf.mxu0
        %v2708 = vadd.f32 %v2573, %v2707
        %v2709 = vpop.f32.mrf.mxu0
        %2710 = vmatprep.mubr.f32.mxu0 0.0
        %v2711 = vand.u32 %v2142, 4294901760
        %v2712 = vsub.f32 %v2142, %v2711
        %v2713 = vand.u32 %v2712, 4294901760
        %2714 = vmatmul.mubr.f32.gmra.mxu0 %v2713
        %v2715 = vpop.f32.mrf.mxu0
        %v2716 = vadd.f32 %v2580, %v2715
        %v2717 = vpop.f32.mrf.mxu0
        %2718 = vmatprep.mubr.f32.mxu0 0.0
        %v2719 = vand.u32 %v2145, 4294901760
        %v2720 = vsub.f32 %v2145, %v2719
        %v2721 = vand.u32 %v2720, 4294901760
        %2722 = vmatmul.mubr.f32.gmra.mxu0 %v2721
        %v2723 = vpop.f32.mrf.mxu0
        %v2724 = vadd.f32 %v2587, %v2723
        %v2725 = vpop.f32.mrf.mxu0
        %2726 = vdwg.mxu0
        %2727 = vmatprep.subr.mxu0 0.0
        %2728 = vmatpush1.msra.mxu0 0.0
        %2729 = vmatprep.subr.mxu0 0.0
        %2730 = vmatpush1.msra.mxu0 0.0
        %2731 = vmatprep.subr.mxu0 0.0
        %2732 = vmatpush1.msra.mxu0 0.0
        %2733 = vmatprep.subr.mxu0 0.0
        %2734 = vmatpush1.msra.mxu0 0.0
        %2735 = vmatprep.subr.mxu0 0.0
        %2736 = vmatpush1.msra.mxu0 0.0
        %2737 = vmatprep.subr.mxu0 0.0
        %2738 = vmatpush1.msra.mxu0 0.0
        %2739 = vmatprep.subr.mxu0 0.0
        %2740 = vmatpush1.msra.mxu0 0.0
        %2741 = vmatprep.subr.mxu0 0.0
        %2742 = vmatpush1.msra.mxu0 0.0
        %2743 = vmatprep.subr.mxu0 0.0
        %v2744 = vand.u32 %v2120, 4294901760
        %v2745 = vsub.f32 %v2120, %v2744
        %v2746 = vand.u32 %v2745, 4294901760
        %2747 = vmatpush1.msra.mxu0 %v2746
        %2748 = vmatprep.subr.mxu0 0.0
        %v2749 = vand.u32 %v2114, 4294901760
        %v2750 = vsub.f32 %v2114, %v2749
        %v2751 = vand.u32 %v2750, 4294901760
        %2752 = vmatpush1.msra.mxu0 %v2751
        %2753 = vmatprep.subr.mxu0 0.0
        %v2754 = vand.u32 %v2108, 4294901760
        %v2755 = vsub.f32 %v2108, %v2754
        %v2756 = vand.u32 %v2755, 4294901760
        %2757 = vmatpush1.msra.mxu0 %v2756
        %2758 = vmatprep.subr.mxu0 0.0
        %v2759 = vand.u32 %v2102, 4294901760
        %v2760 = vsub.f32 %v2102, %v2759
        %v2761 = vand.u32 %v2760, 4294901760
        %2762 = vmatpush1.msra.mxu0 %v2761
        %2763 = vmatprep.subr.mxu0 0.0
        %v2764 = vand.u32 %v2096, 4294901760
        %v2765 = vsub.f32 %v2096, %v2764
        %v2766 = vand.u32 %v2765, 4294901760
        %2767 = vmatpush1.msra.mxu0 %v2766
        %2768 = vmatprep.subr.mxu0 0.0
        %v2769 = vand.u32 %v2090, 4294901760
        %v2770 = vsub.f32 %v2090, %v2769
        %v2771 = vand.u32 %v2770, 4294901760
        %2772 = vmatpush1.msra.mxu0 %v2771
        %2773 = vmatprep.subr.mxu0 0.0
        %v2774 = vand.u32 %v2084, 4294901760
        %v2775 = vsub.f32 %v2084, %v2774
        %v2776 = vand.u32 %v2775, 4294901760
        %2777 = vmatpush1.msra.mxu0 %v2776
        %2778 = vmatprep.subr.mxu0 0.0
        %v2779 = vand.u32 %v2078, 4294901760
        %v2780 = vsub.f32 %v2078, %v2779
        %v2781 = vand.u32 %v2780, 4294901760
        %2782 = vmatpush1.msra.mxu0 %v2781
        %2783 = vmatprep.subr.mxu0 0.0
        %2784 = vmatpush2.msra.mxu0 0.0
        %2785 = vmatprep.subr.mxu0 0.0
        %2786 = vmatpush2.msra.mxu0 0.0
        %2787 = vmatprep.subr.mxu0 0.0
        %2788 = vmatpush2.msra.mxu0 0.0
        %2789 = vmatprep.subr.mxu0 0.0
        %2790 = vmatpush2.msra.mxu0 0.0
        %2791 = vmatprep.subr.mxu0 0.0
        %2792 = vmatpush2.msra.mxu0 0.0
        %2793 = vmatprep.subr.mxu0 0.0
        %2794 = vmatpush2.msra.mxu0 0.0
        %2795 = vmatprep.subr.mxu0 0.0
        %2796 = vmatpush2.msra.mxu0 0.0
        %2797 = vmatprep.subr.mxu0 0.0
        %2798 = vmatpush2.msra.mxu0 0.0
        %2799 = vmatprep.subr.mxu0 0.0
        %2800 = vmatpush2.msra.mxu0 0.0
        %2801 = vmatprep.subr.mxu0 0.0
        %2802 = vmatpush2.msra.mxu0 0.0
        %2803 = vmatprep.subr.mxu0 0.0
        %2804 = vmatpush2.msra.mxu0 0.0
        %2805 = vmatprep.subr.mxu0 0.0
        %2806 = vmatpush2.msra.mxu0 0.0
        %2807 = vmatprep.subr.mxu0 0.0
        %2808 = vmatpush2.msra.mxu0 0.0
        %2809 = vmatprep.subr.mxu0 0.0
        %2810 = vmatpush2.msra.mxu0 0.0
        %2811 = vmatprep.subr.mxu0 0.0
        %2812 = vmatpush2.msra.mxu0 0.0
        %2813 = vmatprep.subr.mxu0 0.0
        %2814 = vmatpush2.msra.mxu0 0.0
        %2815 = vmatprep.mubr.f32.mxu0 0.0
        %v2816 = vand.u32 %v2124, 4294901760
        %2817 = vmatmul.mubr.f32.gmra.mxu0 %v2816
        %v2818 = vpop.f32.mrf.mxu0
        %v2819 = vadd.f32 %v2668, %v2818
        %v2820 = vpop.f32.mrf.mxu0
        %2821 = vmatprep.mubr.f32.mxu0 0.0
        %v2822 = vand.u32 %v2127, 4294901760
        %2823 = vmatmul.mubr.f32.gmra.mxu0 %v2822
        %v2824 = vpop.f32.mrf.mxu0
        %v2825 = vadd.f32 %v2676, %v2824
        %v2826 = vpop.f32.mrf.mxu0
        %2827 = vmatprep.mubr.f32.mxu0 0.0
        %v2828 = vand.u32 %v2130, 4294901760
        %2829 = vmatmul.mubr.f32.gmra.mxu0 %v2828
        %v2830 = vpop.f32.mrf.mxu0
        %v2831 = vadd.f32 %v2684, %v2830
        %v2832 = vpop.f32.mrf.mxu0
        %2833 = vmatprep.mubr.f32.mxu0 0.0
        %v2834 = vand.u32 %v2133, 4294901760
        %2835 = vmatmul.mubr.f32.gmra.mxu0 %v2834
        %v2836 = vpop.f32.mrf.mxu0
        %v2837 = vadd.f32 %v2692, %v2836
        %v2838 = vpop.f32.mrf.mxu0
        %2839 = vmatprep.mubr.f32.mxu0 0.0
        %v2840 = vand.u32 %v2136, 4294901760
        %2841 = vmatmul.mubr.f32.gmra.mxu0 %v2840
        %v2842 = vpop.f32.mrf.mxu0
        %v2843 = vadd.f32 %v2700, %v2842
        %v2844 = vpop.f32.mrf.mxu0
        %2845 = vmatprep.mubr.f32.mxu0 0.0
        %v2846 = vand.u32 %v2139, 4294901760
        %2847 = vmatmul.mubr.f32.gmra.mxu0 %v2846
        %v2848 = vpop.f32.mrf.mxu0
        %v2849 = vadd.f32 %v2708, %v2848
        %v2850 = vpop.f32.mrf.mxu0
        %2851 = vmatprep.mubr.f32.mxu0 0.0
        %v2852 = vand.u32 %v2142, 4294901760
        %2853 = vmatmul.mubr.f32.gmra.mxu0 %v2852
        %v2854 = vpop.f32.mrf.mxu0
        %v2855 = vadd.f32 %v2716, %v2854
        %v2856 = vpop.f32.mrf.mxu0
        %2857 = vmatprep.mubr.f32.mxu0 0.0
        %v2858 = vand.u32 %v2145, 4294901760
        %2859 = vmatmul.mubr.f32.gmra.mxu0 %v2858
        %v2860 = vpop.f32.mrf.mxu0
        %v2861 = vadd.f32 %v2724, %v2860
        %v2862 = vpop.f32.mrf.mxu0
        %2863 = vdwg.mxu0
        %2864 = vmatprep.subr.mxu0 0.0
        %2865 = vmatpush1.msra.mxu0 0.0
        %2866 = vmatprep.subr.mxu0 0.0
        %2867 = vmatpush1.msra.mxu0 0.0
        %2868 = vmatprep.subr.mxu0 0.0
        %2869 = vmatpush1.msra.mxu0 0.0
        %2870 = vmatprep.subr.mxu0 0.0
        %2871 = vmatpush1.msra.mxu0 0.0
        %2872 = vmatprep.subr.mxu0 0.0
        %2873 = vmatpush1.msra.mxu0 0.0
        %2874 = vmatprep.subr.mxu0 0.0
        %2875 = vmatpush1.msra.mxu0 0.0
        %2876 = vmatprep.subr.mxu0 0.0
        %2877 = vmatpush1.msra.mxu0 0.0
        %2878 = vmatprep.subr.mxu0 0.0
        %2879 = vmatpush1.msra.mxu0 0.0
        %2880 = vmatprep.subr.mxu0 0.0
        %v2881 = vand.u32 %v2120, 4294901760
        %2882 = vmatpush1.msra.mxu0 %v2881
        %2883 = vmatprep.subr.mxu0 0.0
        %v2884 = vand.u32 %v2114, 4294901760
        %2885 = vmatpush1.msra.mxu0 %v2884
        %2886 = vmatprep.subr.mxu0 0.0
        %v2887 = vand.u32 %v2108, 4294901760
        %2888 = vmatpush1.msra.mxu0 %v2887
        %2889 = vmatprep.subr.mxu0 0.0
        %v2890 = vand.u32 %v2102, 4294901760
        %2891 = vmatpush1.msra.mxu0 %v2890
        %2892 = vmatprep.subr.mxu0 0.0
        %v2893 = vand.u32 %v2096, 4294901760
        %2894 = vmatpush1.msra.mxu0 %v2893
        %2895 = vmatprep.subr.mxu0 0.0
        %v2896 = vand.u32 %v2090, 4294901760
        %2897 = vmatpush1.msra.mxu0 %v2896
        %2898 = vmatprep.subr.mxu0 0.0
        %v2899 = vand.u32 %v2084, 4294901760
        %2900 = vmatpush1.msra.mxu0 %v2899
        %2901 = vmatprep.subr.mxu0 0.0
        %v2902 = vand.u32 %v2078, 4294901760
        %2903 = vmatpush1.msra.mxu0 %v2902
        %2904 = vmatprep.subr.mxu0 0.0
        %2905 = vmatpush2.msra.mxu0 0.0
        %2906 = vmatprep.subr.mxu0 0.0
        %2907 = vmatpush2.msra.mxu0 0.0
        %2908 = vmatprep.subr.mxu0 0.0
        %2909 = vmatpush2.msra.mxu0 0.0
        %2910 = vmatprep.subr.mxu0 0.0
        %2911 = vmatpush2.msra.mxu0 0.0
        %2912 = vmatprep.subr.mxu0 0.0
        %2913 = vmatpush2.msra.mxu0 0.0
        %2914 = vmatprep.subr.mxu0 0.0
        %2915 = vmatpush2.msra.mxu0 0.0
        %2916 = vmatprep.subr.mxu0 0.0
        %2917 = vmatpush2.msra.mxu0 0.0
        %2918 = vmatprep.subr.mxu0 0.0
        %2919 = vmatpush2.msra.mxu0 0.0
        %2920 = vmatprep.subr.mxu0 0.0
        %2921 = vmatpush2.msra.mxu0 0.0
        %2922 = vmatprep.subr.mxu0 0.0
        %2923 = vmatpush2.msra.mxu0 0.0
        %2924 = vmatprep.subr.mxu0 0.0
        %2925 = vmatpush2.msra.mxu0 0.0
        %2926 = vmatprep.subr.mxu0 0.0
        %2927 = vmatpush2.msra.mxu0 0.0
        %2928 = vmatprep.subr.mxu0 0.0
        %2929 = vmatpush2.msra.mxu0 0.0
        %2930 = vmatprep.subr.mxu0 0.0
        %2931 = vmatpush2.msra.mxu0 0.0
        %2932 = vmatprep.subr.mxu0 0.0
        %2933 = vmatpush2.msra.mxu0 0.0
        %2934 = vmatprep.subr.mxu0 0.0
        %2935 = vmatpush2.msra.mxu0 0.0
        %2936 = vmatprep.mubr.f32.mxu0 0.0
        %v2937 = vand.u32 %v2124, 4294901760
        %2938 = vmatmul.mubr.f32.gmra.mxu0 %v2937
        %v2939 = vpop.f32.mrf.mxu0
        %v2940 = vadd.f32 %v2819, %v2939
        %v2941 = vpop.f32.mrf.mxu0
        %2942 = vmatprep.mubr.f32.mxu0 0.0
        %v2943 = vand.u32 %v2127, 4294901760
        %2944 = vmatmul.mubr.f32.gmra.mxu0 %v2943
        %v2945 = vpop.f32.mrf.mxu0
        %v2946 = vadd.f32 %v2825, %v2945
        %v2947 = vpop.f32.mrf.mxu0
        %2948 = vmatprep.mubr.f32.mxu0 0.0
        %v2949 = vand.u32 %v2130, 4294901760
        %2950 = vmatmul.mubr.f32.gmra.mxu0 %v2949
        %v2951 = vpop.f32.mrf.mxu0
        %v2952 = vadd.f32 %v2831, %v2951
        %v2953 = vpop.f32.mrf.mxu0
        %2954 = vmatprep.mubr.f32.mxu0 0.0
        %v2955 = vand.u32 %v2133, 4294901760
        %2956 = vmatmul.mubr.f32.gmra.mxu0 %v2955
        %v2957 = vpop.f32.mrf.mxu0
        %v2958 = vadd.f32 %v2837, %v2957
        %v2959 = vpop.f32.mrf.mxu0
        %2960 = vmatprep.mubr.f32.mxu0 0.0
        %v2961 = vand.u32 %v2136, 4294901760
        %2962 = vmatmul.mubr.f32.gmra.mxu0 %v2961
        %v2963 = vpop.f32.mrf.mxu0
        %v2964 = vadd.f32 %v2843, %v2963
        %v2965 = vpop.f32.mrf.mxu0
        %2966 = vmatprep.mubr.f32.mxu0 0.0
        %v2967 = vand.u32 %v2139, 4294901760
        %2968 = vmatmul.mubr.f32.gmra.mxu0 %v2967
        %v2969 = vpop.f32.mrf.mxu0
        %v2970 = vadd.f32 %v2849, %v2969
        %v2971 = vpop.f32.mrf.mxu0
        %2972 = vmatprep.mubr.f32.mxu0 0.0
        %v2973 = vand.u32 %v2142, 4294901760
        %2974 = vmatmul.mubr.f32.gmra.mxu0 %v2973
        %v2975 = vpop.f32.mrf.mxu0
        %v2976 = vadd.f32 %v2855, %v2975
        %v2977 = vpop.f32.mrf.mxu0
        %2978 = vmatprep.mubr.f32.mxu0 0.0
        %v2979 = vand.u32 %v2145, 4294901760
        %2980 = vmatmul.mubr.f32.gmra.mxu0 %v2979
        %v2981 = vpop.f32.mrf.mxu0
        %v2982 = vadd.f32 %v2861, %v2981
        %v2983 = vpop.f32.mrf.mxu0
        %2984 = vdwg.mxu0
        %v2986 = vsel %vm318, %v2940, 0
        %v2989 = vsel %vm318, %v2946, 0
        %v2992 = vsel %vm318, %v2952, 0
        %v2995 = vsel %vm318, %v2958, 0
        %v2998 = vsel %vm318, %v2964, 0
        %v3001 = vsel %vm318, %v2970, 0
        %v3004 = vsel %vm318, %v2976, 0
        %v3007 = vsel %vm318, %v2982, 0
        %3009 = vmatprep.subr.mxu0 0.0
        %3010 = vmatpush1.xpose.msra.mxu0 0.0
        %3011 = vmatprep.subr.mxu0 0.0
        %3012 = vmatpush1.xpose.msra.mxu0 0.0
        %3013 = vmatprep.subr.mxu0 0.0
        %3014 = vmatpush1.xpose.msra.mxu0 0.0
        %3015 = vmatprep.subr.mxu0 0.0
        %3016 = vmatpush1.xpose.msra.mxu0 0.0
        %3017 = vmatprep.subr.mxu0 0.0
        %3018 = vmatpush1.xpose.msra.mxu0 0.0
        %3019 = vmatprep.subr.mxu0 0.0
        %3020 = vmatpush1.xpose.msra.mxu0 0.0
        %3021 = vmatprep.subr.mxu0 0.0
        %3022 = vmatpush1.xpose.msra.mxu0 0.0
        %3023 = vmatprep.subr.mxu0 0.0
        %3024 = vmatpush1.xpose.msra.mxu0 0.0
        %3025 = vmatprep.subr.mxu0 0.0
        %v3026 = vand.u32 %v2145, 4294901760
        %3027 = vmatpush1.xpose.msra.mxu0 %v3026
        %3028 = vmatprep.subr.mxu0 0.0
        %v3029 = vand.u32 %v2142, 4294901760
        %3030 = vmatpush1.xpose.msra.mxu0 %v3029
        %3031 = vmatprep.subr.mxu0 0.0
        %v3032 = vand.u32 %v2139, 4294901760
        %3033 = vmatpush1.xpose.msra.mxu0 %v3032
        %3034 = vmatprep.subr.mxu0 0.0
        %v3035 = vand.u32 %v2136, 4294901760
        %3036 = vmatpush1.xpose.msra.mxu0 %v3035
        %3037 = vmatprep.subr.mxu0 0.0
        %v3038 = vand.u32 %v2133, 4294901760
        %3039 = vmatpush1.xpose.msra.mxu0 %v3038
        %3040 = vmatprep.subr.mxu0 0.0
        %v3041 = vand.u32 %v2130, 4294901760
        %3042 = vmatpush1.xpose.msra.mxu0 %v3041
        %3043 = vmatprep.subr.mxu0 0.0
        %v3044 = vand.u32 %v2127, 4294901760
        %3045 = vmatpush1.xpose.msra.mxu0 %v3044
        %3046 = vmatprep.subr.mxu0 0.0
        %v3047 = vand.u32 %v2124, 4294901760
        %3048 = vmatpush1.xpose.msra.mxu0 %v3047
        %3049 = vmatprep.subr.mxu0 0.0
        %3050 = vmatpush2.xpose.msra.mxu0 0.0
        %3051 = vmatprep.subr.mxu0 0.0
        %3052 = vmatpush2.xpose.msra.mxu0 0.0
        %3053 = vmatprep.subr.mxu0 0.0
        %3054 = vmatpush2.xpose.msra.mxu0 0.0
        %3055 = vmatprep.subr.mxu0 0.0
        %3056 = vmatpush2.xpose.msra.mxu0 0.0
        %3057 = vmatprep.subr.mxu0 0.0
        %3058 = vmatpush2.xpose.msra.mxu0 0.0
        %3059 = vmatprep.subr.mxu0 0.0
        %3060 = vmatpush2.xpose.msra.mxu0 0.0
        %3061 = vmatprep.subr.mxu0 0.0
        %3062 = vmatpush2.xpose.msra.mxu0 0.0
        %3063 = vmatprep.subr.mxu0 0.0
        %3064 = vmatpush2.xpose.msra.mxu0 0.0
        %3065 = vmatprep.subr.mxu0 0.0
        %3066 = vmatpush2.xpose.msra.mxu0 0.0
        %3067 = vmatprep.subr.mxu0 0.0
        %3068 = vmatpush2.xpose.msra.mxu0 0.0
        %3069 = vmatprep.subr.mxu0 0.0
        %3070 = vmatpush2.xpose.msra.mxu0 0.0
        %3071 = vmatprep.subr.mxu0 0.0
        %3072 = vmatpush2.xpose.msra.mxu0 0.0
        %3073 = vmatprep.subr.mxu0 0.0
        %3074 = vmatpush2.xpose.msra.mxu0 0.0
        %3075 = vmatprep.subr.mxu0 0.0
        %3076 = vmatpush2.xpose.msra.mxu0 0.0
        %3077 = vmatprep.subr.mxu0 0.0
        %3078 = vmatpush2.xpose.msra.mxu0 0.0
        %3079 = vmatprep.subr.mxu0 0.0
        %3080 = vmatpush2.xpose.msra.mxu0 0.0
        %3081 = vmatprep.mubr.f32.mxu0 0.0
        %v3082 = vand.u32 %v2986, 4294901760
        %v3083 = vsub.f32 %v2986, %v3082
        %v3084 = vand.u32 %v3083, 4294901760
        %v3085 = vsub.f32 %v3083, %v3084
        %v3086 = vand.u32 %v3085, 4294901760
        %3087 = vmatmul.mubr.f32.gmra.mxu0 %v3086
        %v3088 = vpop.f32.mrf.mxu0
        %v3089 = vadd.f32 0.0, %v3088
        %v3090 = vpop.f32.mrf.mxu0
        %3091 = vmatprep.mubr.f32.mxu0 0.0
        %v3092 = vand.u32 %v2989, 4294901760
        %v3093 = vsub.f32 %v2989, %v3092
        %v3094 = vand.u32 %v3093, 4294901760
        %v3095 = vsub.f32 %v3093, %v3094
        %v3096 = vand.u32 %v3095, 4294901760
        %3097 = vmatmul.mubr.f32.gmra.mxu0 %v3096
        %v3098 = vpop.f32.mrf.mxu0
        %v3099 = vadd.f32 0.0, %v3098
        %v3100 = vpop.f32.mrf.mxu0
        %3101 = vmatprep.mubr.f32.mxu0 0.0
        %v3102 = vand.u32 %v2992, 4294901760
        %v3103 = vsub.f32 %v2992, %v3102
        %v3104 = vand.u32 %v3103, 4294901760
        %v3105 = vsub.f32 %v3103, %v3104
        %v3106 = vand.u32 %v3105, 4294901760
        %3107 = vmatmul.mubr.f32.gmra.mxu0 %v3106
        %v3108 = vpop.f32.mrf.mxu0
        %v3109 = vadd.f32 0.0, %v3108
        %v3110 = vpop.f32.mrf.mxu0
        %3111 = vmatprep.mubr.f32.mxu0 0.0
        %v3112 = vand.u32 %v2995, 4294901760
        %v3113 = vsub.f32 %v2995, %v3112
        %v3114 = vand.u32 %v3113, 4294901760
        %v3115 = vsub.f32 %v3113, %v3114
        %v3116 = vand.u32 %v3115, 4294901760
        %3117 = vmatmul.mubr.f32.gmra.mxu0 %v3116
        %v3118 = vpop.f32.mrf.mxu0
        %v3119 = vadd.f32 0.0, %v3118
        %v3120 = vpop.f32.mrf.mxu0
        %3121 = vmatprep.mubr.f32.mxu0 0.0
        %v3122 = vand.u32 %v2998, 4294901760
        %v3123 = vsub.f32 %v2998, %v3122
        %v3124 = vand.u32 %v3123, 4294901760
        %v3125 = vsub.f32 %v3123, %v3124
        %v3126 = vand.u32 %v3125, 4294901760
        %3127 = vmatmul.mubr.f32.gmra.mxu0 %v3126
        %v3128 = vpop.f32.mrf.mxu0
        %v3129 = vadd.f32 0.0, %v3128
        %v3130 = vpop.f32.mrf.mxu0
        %3131 = vmatprep.mubr.f32.mxu0 0.0
        %v3132 = vand.u32 %v3001, 4294901760
        %v3133 = vsub.f32 %v3001, %v3132
        %v3134 = vand.u32 %v3133, 4294901760
        %v3135 = vsub.f32 %v3133, %v3134
        %v3136 = vand.u32 %v3135, 4294901760
        %3137 = vmatmul.mubr.f32.gmra.mxu0 %v3136
        %v3138 = vpop.f32.mrf.mxu0
        %v3139 = vadd.f32 0.0, %v3138
        %v3140 = vpop.f32.mrf.mxu0
        %3141 = vmatprep.mubr.f32.mxu0 0.0
        %v3142 = vand.u32 %v3004, 4294901760
        %v3143 = vsub.f32 %v3004, %v3142
        %v3144 = vand.u32 %v3143, 4294901760
        %v3145 = vsub.f32 %v3143, %v3144
        %v3146 = vand.u32 %v3145, 4294901760
        %3147 = vmatmul.mubr.f32.gmra.mxu0 %v3146
        %v3148 = vpop.f32.mrf.mxu0
        %v3149 = vadd.f32 0.0, %v3148
        %v3150 = vpop.f32.mrf.mxu0
        %3151 = vmatprep.mubr.f32.mxu0 0.0
        %v3152 = vand.u32 %v3007, 4294901760
        %v3153 = vsub.f32 %v3007, %v3152
        %v3154 = vand.u32 %v3153, 4294901760
        %v3155 = vsub.f32 %v3153, %v3154
        %v3156 = vand.u32 %v3155, 4294901760
        %3157 = vmatmul.mubr.f32.gmra.mxu0 %v3156
        %v3158 = vpop.f32.mrf.mxu0
        %v3159 = vadd.f32 0.0, %v3158
        %v3160 = vpop.f32.mrf.mxu0
        %3161 = vdwg.mxu0
        %3162 = vmatprep.subr.mxu0 0.0
        %3163 = vmatpush1.xpose.msra.mxu0 0.0
        %3164 = vmatprep.subr.mxu0 0.0
        %3165 = vmatpush1.xpose.msra.mxu0 0.0
        %3166 = vmatprep.subr.mxu0 0.0
        %3167 = vmatpush1.xpose.msra.mxu0 0.0
        %3168 = vmatprep.subr.mxu0 0.0
        %3169 = vmatpush1.xpose.msra.mxu0 0.0
        %3170 = vmatprep.subr.mxu0 0.0
        %3171 = vmatpush1.xpose.msra.mxu0 0.0
        %3172 = vmatprep.subr.mxu0 0.0
        %3173 = vmatpush1.xpose.msra.mxu0 0.0
        %3174 = vmatprep.subr.mxu0 0.0
        %3175 = vmatpush1.xpose.msra.mxu0 0.0
        %3176 = vmatprep.subr.mxu0 0.0
        %3177 = vmatpush1.xpose.msra.mxu0 0.0
        %3178 = vmatprep.subr.mxu0 0.0
        %v3179 = vand.u32 %v2145, 4294901760
        %v3180 = vsub.f32 %v2145, %v3179
        %v3181 = vand.u32 %v3180, 4294901760
        %v3182 = vsub.f32 %v3180, %v3181
        %v3183 = vand.u32 %v3182, 4294901760
        %3184 = vmatpush1.xpose.msra.mxu0 %v3183
        %3185 = vmatprep.subr.mxu0 0.0
        %v3186 = vand.u32 %v2142, 4294901760
        %v3187 = vsub.f32 %v2142, %v3186
        %v3188 = vand.u32 %v3187, 4294901760
        %v3189 = vsub.f32 %v3187, %v3188
        %v3190 = vand.u32 %v3189, 4294901760
        %3191 = vmatpush1.xpose.msra.mxu0 %v3190
        %3192 = vmatprep.subr.mxu0 0.0
        %v3193 = vand.u32 %v2139, 4294901760
        %v3194 = vsub.f32 %v2139, %v3193
        %v3195 = vand.u32 %v3194, 4294901760
        %v3196 = vsub.f32 %v3194, %v3195
        %v3197 = vand.u32 %v3196, 4294901760
        %3198 = vmatpush1.xpose.msra.mxu0 %v3197
        %3199 = vmatprep.subr.mxu0 0.0
        %v3200 = vand.u32 %v2136, 4294901760
        %v3201 = vsub.f32 %v2136, %v3200
        %v3202 = vand.u32 %v3201, 4294901760
        %v3203 = vsub.f32 %v3201, %v3202
        %v3204 = vand.u32 %v3203, 4294901760
        %3205 = vmatpush1.xpose.msra.mxu0 %v3204
        %3206 = vmatprep.subr.mxu0 0.0
        %v3207 = vand.u32 %v2133, 4294901760
        %v3208 = vsub.f32 %v2133, %v3207
        %v3209 = vand.u32 %v3208, 4294901760
        %v3210 = vsub.f32 %v3208, %v3209
        %v3211 = vand.u32 %v3210, 4294901760
        %3212 = vmatpush1.xpose.msra.mxu0 %v3211
        %3213 = vmatprep.subr.mxu0 0.0
        %v3214 = vand.u32 %v2130, 4294901760
        %v3215 = vsub.f32 %v2130, %v3214
        %v3216 = vand.u32 %v3215, 4294901760
        %v3217 = vsub.f32 %v3215, %v3216
        %v3218 = vand.u32 %v3217, 4294901760
        %3219 = vmatpush1.xpose.msra.mxu0 %v3218
        %3220 = vmatprep.subr.mxu0 0.0
        %v3221 = vand.u32 %v2127, 4294901760
        %v3222 = vsub.f32 %v2127, %v3221
        %v3223 = vand.u32 %v3222, 4294901760
        %v3224 = vsub.f32 %v3222, %v3223
        %v3225 = vand.u32 %v3224, 4294901760
        %3226 = vmatpush1.xpose.msra.mxu0 %v3225
        %3227 = vmatprep.subr.mxu0 0.0
        %v3228 = vand.u32 %v2124, 4294901760
        %v3229 = vsub.f32 %v2124, %v3228
        %v3230 = vand.u32 %v3229, 4294901760
        %v3231 = vsub.f32 %v3229, %v3230
        %v3232 = vand.u32 %v3231, 4294901760
        %3233 = vmatpush1.xpose.msra.mxu0 %v3232
        %3234 = vmatprep.subr.mxu0 0.0
        %3235 = vmatpush2.xpose.msra.mxu0 0.0
        %3236 = vmatprep.subr.mxu0 0.0
        %3237 = vmatpush2.xpose.msra.mxu0 0.0
        %3238 = vmatprep.subr.mxu0 0.0
        %3239 = vmatpush2.xpose.msra.mxu0 0.0
        %3240 = vmatprep.subr.mxu0 0.0
        %3241 = vmatpush2.xpose.msra.mxu0 0.0
        %3242 = vmatprep.subr.mxu0 0.0
        %3243 = vmatpush2.xpose.msra.mxu0 0.0
        %3244 = vmatprep.subr.mxu0 0.0
        %3245 = vmatpush2.xpose.msra.mxu0 0.0
        %3246 = vmatprep.subr.mxu0 0.0
        %3247 = vmatpush2.xpose.msra.mxu0 0.0
        %3248 = vmatprep.subr.mxu0 0.0
        %3249 = vmatpush2.xpose.msra.mxu0 0.0
        %3250 = vmatprep.subr.mxu0 0.0
        %3251 = vmatpush2.xpose.msra.mxu0 0.0
        %3252 = vmatprep.subr.mxu0 0.0
        %3253 = vmatpush2.xpose.msra.mxu0 0.0
        %3254 = vmatprep.subr.mxu0 0.0
        %3255 = vmatpush2.xpose.msra.mxu0 0.0
        %3256 = vmatprep.subr.mxu0 0.0
        %3257 = vmatpush2.xpose.msra.mxu0 0.0
        %3258 = vmatprep.subr.mxu0 0.0
        %3259 = vmatpush2.xpose.msra.mxu0 0.0
        %3260 = vmatprep.subr.mxu0 0.0
        %3261 = vmatpush2.xpose.msra.mxu0 0.0
        %3262 = vmatprep.subr.mxu0 0.0
        %3263 = vmatpush2.xpose.msra.mxu0 0.0
        %3264 = vmatprep.subr.mxu0 0.0
        %3265 = vmatpush2.xpose.msra.mxu0 0.0
        %3266 = vmatprep.mubr.f32.mxu0 0.0
        %v3267 = vand.u32 %v2986, 4294901760
        %3268 = vmatmul.mubr.f32.gmra.mxu0 %v3267
        %v3269 = vpop.f32.mrf.mxu0
        %v3270 = vadd.f32 %v3089, %v3269
        %v3271 = vpop.f32.mrf.mxu0
        %3272 = vmatprep.mubr.f32.mxu0 0.0
        %v3273 = vand.u32 %v2989, 4294901760
        %3274 = vmatmul.mubr.f32.gmra.mxu0 %v3273
        %v3275 = vpop.f32.mrf.mxu0
        %v3276 = vadd.f32 %v3099, %v3275
        %v3277 = vpop.f32.mrf.mxu0
        %3278 = vmatprep.mubr.f32.mxu0 0.0
        %v3279 = vand.u32 %v2992, 4294901760
        %3280 = vmatmul.mubr.f32.gmra.mxu0 %v3279
        %v3281 = vpop.f32.mrf.mxu0
        %v3282 = vadd.f32 %v3109, %v3281
        %v3283 = vpop.f32.mrf.mxu0
        %3284 = vmatprep.mubr.f32.mxu0 0.0
        %v3285 = vand.u32 %v2995, 4294901760
        %3286 = vmatmul.mubr.f32.gmra.mxu0 %v3285
        %v3287 = vpop.f32.mrf.mxu0
        %v3288 = vadd.f32 %v3119, %v3287
        %v3289 = vpop.f32.mrf.mxu0
        %3290 = vmatprep.mubr.f32.mxu0 0.0
        %v3291 = vand.u32 %v2998, 4294901760
        %3292 = vmatmul.mubr.f32.gmra.mxu0 %v3291
        %v3293 = vpop.f32.mrf.mxu0
        %v3294 = vadd.f32 %v3129, %v3293
        %v3295 = vpop.f32.mrf.mxu0
        %3296 = vmatprep.mubr.f32.mxu0 0.0
        %v3297 = vand.u32 %v3001, 4294901760
        %3298 = vmatmul.mubr.f32.gmra.mxu0 %v3297
        %v3299 = vpop.f32.mrf.mxu0
        %v3300 = vadd.f32 %v3139, %v3299
        %v3301 = vpop.f32.mrf.mxu0
        %3302 = vmatprep.mubr.f32.mxu0 0.0
        %v3303 = vand.u32 %v3004, 4294901760
        %3304 = vmatmul.mubr.f32.gmra.mxu0 %v3303
        %v3305 = vpop.f32.mrf.mxu0
        %v3306 = vadd.f32 %v3149, %v3305
        %v3307 = vpop.f32.mrf.mxu0
        %3308 = vmatprep.mubr.f32.mxu0 0.0
        %v3309 = vand.u32 %v3007, 4294901760
        %3310 = vmatmul.mubr.f32.gmra.mxu0 %v3309
        %v3311 = vpop.f32.mrf.mxu0
        %v3312 = vadd.f32 %v3159, %v3311
        %v3313 = vpop.f32.mrf.mxu0
        %3314 = vdwg.mxu0
        %3315 = vmatprep.subr.mxu0 0.0
        %3316 = vmatpush1.xpose.msra.mxu0 0.0
        %3317 = vmatprep.subr.mxu0 0.0
        %3318 = vmatpush1.xpose.msra.mxu0 0.0
        %3319 = vmatprep.subr.mxu0 0.0
        %3320 = vmatpush1.xpose.msra.mxu0 0.0
        %3321 = vmatprep.subr.mxu0 0.0
        %3322 = vmatpush1.xpose.msra.mxu0 0.0
        %3323 = vmatprep.subr.mxu0 0.0
        %3324 = vmatpush1.xpose.msra.mxu0 0.0
        %3325 = vmatprep.subr.mxu0 0.0
        %3326 = vmatpush1.xpose.msra.mxu0 0.0
        %3327 = vmatprep.subr.mxu0 0.0
        %3328 = vmatpush1.xpose.msra.mxu0 0.0
        %3329 = vmatprep.subr.mxu0 0.0
        %3330 = vmatpush1.xpose.msra.mxu0 0.0
        %3331 = vmatprep.subr.mxu0 0.0
        %v3332 = vand.u32 %v2145, 4294901760
        %v3333 = vsub.f32 %v2145, %v3332
        %3334 = vmatpush1.xpose.msra.mxu0 %v3333
        %3335 = vmatprep.subr.mxu0 0.0
        %v3336 = vand.u32 %v2142, 4294901760
        %v3337 = vsub.f32 %v2142, %v3336
        %3338 = vmatpush1.xpose.msra.mxu0 %v3337
        %3339 = vmatprep.subr.mxu0 0.0
        %v3340 = vand.u32 %v2139, 4294901760
        %v3341 = vsub.f32 %v2139, %v3340
        %3342 = vmatpush1.xpose.msra.mxu0 %v3341
        %3343 = vmatprep.subr.mxu0 0.0
        %v3344 = vand.u32 %v2136, 4294901760
        %v3345 = vsub.f32 %v2136, %v3344
        %3346 = vmatpush1.xpose.msra.mxu0 %v3345
        %3347 = vmatprep.subr.mxu0 0.0
        %v3348 = vand.u32 %v2133, 4294901760
        %v3349 = vsub.f32 %v2133, %v3348
        %3350 = vmatpush1.xpose.msra.mxu0 %v3349
        %3351 = vmatprep.subr.mxu0 0.0
        %v3352 = vand.u32 %v2130, 4294901760
        %v3353 = vsub.f32 %v2130, %v3352
        %3354 = vmatpush1.xpose.msra.mxu0 %v3353
        %3355 = vmatprep.subr.mxu0 0.0
        %v3356 = vand.u32 %v2127, 4294901760
        %v3357 = vsub.f32 %v2127, %v3356
        %3358 = vmatpush1.xpose.msra.mxu0 %v3357
        %3359 = vmatprep.subr.mxu0 0.0
        %v3360 = vand.u32 %v2124, 4294901760
        %v3361 = vsub.f32 %v2124, %v3360
        %3362 = vmatpush1.xpose.msra.mxu0 %v3361
        %3363 = vmatprep.subr.mxu0 0.0
        %3364 = vmatpush2.xpose.msra.mxu0 0.0
        %3365 = vmatprep.subr.mxu0 0.0
        %3366 = vmatpush2.xpose.msra.mxu0 0.0
        %3367 = vmatprep.subr.mxu0 0.0
        %3368 = vmatpush2.xpose.msra.mxu0 0.0
        %3369 = vmatprep.subr.mxu0 0.0
        %3370 = vmatpush2.xpose.msra.mxu0 0.0
        %3371 = vmatprep.subr.mxu0 0.0
        %3372 = vmatpush2.xpose.msra.mxu0 0.0
        %3373 = vmatprep.subr.mxu0 0.0
        %3374 = vmatpush2.xpose.msra.mxu0 0.0
        %3375 = vmatprep.subr.mxu0 0.0
        %3376 = vmatpush2.xpose.msra.mxu0 0.0
        %3377 = vmatprep.subr.mxu0 0.0
        %3378 = vmatpush2.xpose.msra.mxu0 0.0
        %3379 = vmatprep.subr.mxu0 0.0
        %3380 = vmatpush2.xpose.msra.mxu0 0.0
        %3381 = vmatprep.subr.mxu0 0.0
        %3382 = vmatpush2.xpose.msra.mxu0 0.0
        %3383 = vmatprep.subr.mxu0 0.0
        %3384 = vmatpush2.xpose.msra.mxu0 0.0
        %3385 = vmatprep.subr.mxu0 0.0
        %3386 = vmatpush2.xpose.msra.mxu0 0.0
        %3387 = vmatprep.subr.mxu0 0.0
        %3388 = vmatpush2.xpose.msra.mxu0 0.0
        %3389 = vmatprep.subr.mxu0 0.0
        %3390 = vmatpush2.xpose.msra.mxu0 0.0
        %3391 = vmatprep.subr.mxu0 0.0
        %3392 = vmatpush2.xpose.msra.mxu0 0.0
        %3393 = vmatprep.subr.mxu0 0.0
        %3394 = vmatpush2.xpose.msra.mxu0 0.0
        %3395 = vmatprep.mubr.f32.mxu0 0.0
        %v3396 = vand.u32 %v2986, 4294901760
        %v3397 = vsub.f32 %v2986, %v3396
        %3398 = vmatmul.mubr.f32.gmra.mxu0 %v3397
        %v3399 = vpop.f32.mrf.mxu0
        %v3400 = vadd.f32 %v3270, %v3399
        %v3401 = vpop.f32.mrf.mxu0
        %3402 = vmatprep.mubr.f32.mxu0 0.0
        %v3403 = vand.u32 %v2989, 4294901760
        %v3404 = vsub.f32 %v2989, %v3403
        %3405 = vmatmul.mubr.f32.gmra.mxu0 %v3404
        %v3406 = vpop.f32.mrf.mxu0
        %v3407 = vadd.f32 %v3276, %v3406
        %v3408 = vpop.f32.mrf.mxu0
        %3409 = vmatprep.mubr.f32.mxu0 0.0
        %v3410 = vand.u32 %v2992, 4294901760
        %v3411 = vsub.f32 %v2992, %v3410
        %3412 = vmatmul.mubr.f32.gmra.mxu0 %v3411
        %v3413 = vpop.f32.mrf.mxu0
        %v3414 = vadd.f32 %v3282, %v3413
        %v3415 = vpop.f32.mrf.mxu0
        %3416 = vmatprep.mubr.f32.mxu0 0.0
        %v3417 = vand.u32 %v2995, 4294901760
        %v3418 = vsub.f32 %v2995, %v3417
        %3419 = vmatmul.mubr.f32.gmra.mxu0 %v3418
        %v3420 = vpop.f32.mrf.mxu0
        %v3421 = vadd.f32 %v3288, %v3420
        %v3422 = vpop.f32.mrf.mxu0
        %3423 = vmatprep.mubr.f32.mxu0 0.0
        %v3424 = vand.u32 %v2998, 4294901760
        %v3425 = vsub.f32 %v2998, %v3424
        %3426 = vmatmul.mubr.f32.gmra.mxu0 %v3425
        %v3427 = vpop.f32.mrf.mxu0
        %v3428 = vadd.f32 %v3294, %v3427
        %v3429 = vpop.f32.mrf.mxu0
        %3430 = vmatprep.mubr.f32.mxu0 0.0
        %v3431 = vand.u32 %v3001, 4294901760
        %v3432 = vsub.f32 %v3001, %v3431
        %3433 = vmatmul.mubr.f32.gmra.mxu0 %v3432
        %v3434 = vpop.f32.mrf.mxu0
        %v3435 = vadd.f32 %v3300, %v3434
        %v3436 = vpop.f32.mrf.mxu0
        %3437 = vmatprep.mubr.f32.mxu0 0.0
        %v3438 = vand.u32 %v3004, 4294901760
        %v3439 = vsub.f32 %v3004, %v3438
        %3440 = vmatmul.mubr.f32.gmra.mxu0 %v3439
        %v3441 = vpop.f32.mrf.mxu0
        %v3442 = vadd.f32 %v3306, %v3441
        %v3443 = vpop.f32.mrf.mxu0
        %3444 = vmatprep.mubr.f32.mxu0 0.0
        %v3445 = vand.u32 %v3007, 4294901760
        %v3446 = vsub.f32 %v3007, %v3445
        %3447 = vmatmul.mubr.f32.gmra.mxu0 %v3446
        %v3448 = vpop.f32.mrf.mxu0
        %v3449 = vadd.f32 %v3312, %v3448
        %v3450 = vpop.f32.mrf.mxu0
        %3451 = vdwg.mxu0
        %3452 = vmatprep.subr.mxu0 0.0
        %3453 = vmatpush1.xpose.msra.mxu0 0.0
        %3454 = vmatprep.subr.mxu0 0.0
        %3455 = vmatpush1.xpose.msra.mxu0 0.0
        %3456 = vmatprep.subr.mxu0 0.0
        %3457 = vmatpush1.xpose.msra.mxu0 0.0
        %3458 = vmatprep.subr.mxu0 0.0
        %3459 = vmatpush1.xpose.msra.mxu0 0.0
        %3460 = vmatprep.subr.mxu0 0.0
        %3461 = vmatpush1.xpose.msra.mxu0 0.0
        %3462 = vmatprep.subr.mxu0 0.0
        %3463 = vmatpush1.xpose.msra.mxu0 0.0
        %3464 = vmatprep.subr.mxu0 0.0
        %3465 = vmatpush1.xpose.msra.mxu0 0.0
        %3466 = vmatprep.subr.mxu0 0.0
        %3467 = vmatpush1.xpose.msra.mxu0 0.0
        %3468 = vmatprep.subr.mxu0 0.0
        %v3469 = vand.u32 %v2145, 4294901760
        %3470 = vmatpush1.xpose.msra.mxu0 %v3469
        %3471 = vmatprep.subr.mxu0 0.0
        %v3472 = vand.u32 %v2142, 4294901760
        %3473 = vmatpush1.xpose.msra.mxu0 %v3472
        %3474 = vmatprep.subr.mxu0 0.0
        %v3475 = vand.u32 %v2139, 4294901760
        %3476 = vmatpush1.xpose.msra.mxu0 %v3475
        %3477 = vmatprep.subr.mxu0 0.0
        %v3478 = vand.u32 %v2136, 4294901760
        %3479 = vmatpush1.xpose.msra.mxu0 %v3478
        %3480 = vmatprep.subr.mxu0 0.0
        %v3481 = vand.u32 %v2133, 4294901760
        %3482 = vmatpush1.xpose.msra.mxu0 %v3481
        %3483 = vmatprep.subr.mxu0 0.0
        %v3484 = vand.u32 %v2130, 4294901760
        %3485 = vmatpush1.xpose.msra.mxu0 %v3484
        %3486 = vmatprep.subr.mxu0 0.0
        %v3487 = vand.u32 %v2127, 4294901760
        %3488 = vmatpush1.xpose.msra.mxu0 %v3487
        %3489 = vmatprep.subr.mxu0 0.0
        %v3490 = vand.u32 %v2124, 4294901760
        %3491 = vmatpush1.xpose.msra.mxu0 %v3490
        %3492 = vmatprep.subr.mxu0 0.0
        %3493 = vmatpush2.xpose.msra.mxu0 0.0
        %3494 = vmatprep.subr.mxu0 0.0
        %3495 = vmatpush2.xpose.msra.mxu0 0.0
        %3496 = vmatprep.subr.mxu0 0.0
        %3497 = vmatpush2.xpose.msra.mxu0 0.0
        %3498 = vmatprep.subr.mxu0 0.0
        %3499 = vmatpush2.xpose.msra.mxu0 0.0
        %3500 = vmatprep.subr.mxu0 0.0
        %3501 = vmatpush2.xpose.msra.mxu0 0.0
        %3502 = vmatprep.subr.mxu0 0.0
        %3503 = vmatpush2.xpose.msra.mxu0 0.0
        %3504 = vmatprep.subr.mxu0 0.0
        %3505 = vmatpush2.xpose.msra.mxu0 0.0
        %3506 = vmatprep.subr.mxu0 0.0
        %3507 = vmatpush2.xpose.msra.mxu0 0.0
        %3508 = vmatprep.subr.mxu0 0.0
        %3509 = vmatpush2.xpose.msra.mxu0 0.0
        %3510 = vmatprep.subr.mxu0 0.0
        %3511 = vmatpush2.xpose.msra.mxu0 0.0
        %3512 = vmatprep.subr.mxu0 0.0
        %3513 = vmatpush2.xpose.msra.mxu0 0.0
        %3514 = vmatprep.subr.mxu0 0.0
        %3515 = vmatpush2.xpose.msra.mxu0 0.0
        %3516 = vmatprep.subr.mxu0 0.0
        %3517 = vmatpush2.xpose.msra.mxu0 0.0
        %3518 = vmatprep.subr.mxu0 0.0
        %3519 = vmatpush2.xpose.msra.mxu0 0.0
        %3520 = vmatprep.subr.mxu0 0.0
        %3521 = vmatpush2.xpose.msra.mxu0 0.0
        %3522 = vmatprep.subr.mxu0 0.0
        %3523 = vmatpush2.xpose.msra.mxu0 0.0
        %3524 = vmatprep.mubr.f32.mxu0 0.0
        %v3525 = vand.u32 %v2986, 4294901760
        %v3526 = vsub.f32 %v2986, %v3525
        %v3527 = vand.u32 %v3526, 4294901760
        %3528 = vmatmul.mubr.f32.gmra.mxu0 %v3527
        %v3529 = vpop.f32.mrf.mxu0
        %v3530 = vadd.f32 %v3400, %v3529
        %v3531 = vpop.f32.mrf.mxu0
        %3532 = vmatprep.mubr.f32.mxu0 0.0
        %v3533 = vand.u32 %v2989, 4294901760
        %v3534 = vsub.f32 %v2989, %v3533
        %v3535 = vand.u32 %v3534, 4294901760
        %3536 = vmatmul.mubr.f32.gmra.mxu0 %v3535
        %v3537 = vpop.f32.mrf.mxu0
        %v3538 = vadd.f32 %v3407, %v3537
        %v3539 = vpop.f32.mrf.mxu0
        %3540 = vmatprep.mubr.f32.mxu0 0.0
        %v3541 = vand.u32 %v2992, 4294901760
        %v3542 = vsub.f32 %v2992, %v3541
        %v3543 = vand.u32 %v3542, 4294901760
        %3544 = vmatmul.mubr.f32.gmra.mxu0 %v3543
        %v3545 = vpop.f32.mrf.mxu0
        %v3546 = vadd.f32 %v3414, %v3545
        %v3547 = vpop.f32.mrf.mxu0
        %3548 = vmatprep.mubr.f32.mxu0 0.0
        %v3549 = vand.u32 %v2995, 4294901760
        %v3550 = vsub.f32 %v2995, %v3549
        %v3551 = vand.u32 %v3550, 4294901760
        %3552 = vmatmul.mubr.f32.gmra.mxu0 %v3551
        %v3553 = vpop.f32.mrf.mxu0
        %v3554 = vadd.f32 %v3421, %v3553
        %v3555 = vpop.f32.mrf.mxu0
        %3556 = vmatprep.mubr.f32.mxu0 0.0
        %v3557 = vand.u32 %v2998, 4294901760
        %v3558 = vsub.f32 %v2998, %v3557
        %v3559 = vand.u32 %v3558, 4294901760
        %3560 = vmatmul.mubr.f32.gmra.mxu0 %v3559
        %v3561 = vpop.f32.mrf.mxu0
        %v3562 = vadd.f32 %v3428, %v3561
        %v3563 = vpop.f32.mrf.mxu0
        %3564 = vmatprep.mubr.f32.mxu0 0.0
        %v3565 = vand.u32 %v3001, 4294901760
        %v3566 = vsub.f32 %v3001, %v3565
        %v3567 = vand.u32 %v3566, 4294901760
        %3568 = vmatmul.mubr.f32.gmra.mxu0 %v3567
        %v3569 = vpop.f32.mrf.mxu0
        %v3570 = vadd.f32 %v3435, %v3569
        %v3571 = vpop.f32.mrf.mxu0
        %3572 = vmatprep.mubr.f32.mxu0 0.0
        %v3573 = vand.u32 %v3004, 4294901760
        %v3574 = vsub.f32 %v3004, %v3573
        %v3575 = vand.u32 %v3574, 4294901760
        %3576 = vmatmul.mubr.f32.gmra.mxu0 %v3575
        %v3577 = vpop.f32.mrf.mxu0
        %v3578 = vadd.f32 %v3442, %v3577
        %v3579 = vpop.f32.mrf.mxu0
        %3580 = vmatprep.mubr.f32.mxu0 0.0
        %v3581 = vand.u32 %v3007, 4294901760
        %v3582 = vsub.f32 %v3007, %v3581
        %v3583 = vand.u32 %v3582, 4294901760
        %3584 = vmatmul.mubr.f32.gmra.mxu0 %v3583
        %v3585 = vpop.f32.mrf.mxu0
        %v3586 = vadd.f32 %v3449, %v3585
        %v3587 = vpop.f32.mrf.mxu0
        %3588 = vdwg.mxu0
        %3589 = vmatprep.subr.mxu0 0.0
        %3590 = vmatpush1.xpose.msra.mxu0 0.0
        %3591 = vmatprep.subr.mxu0 0.0
        %3592 = vmatpush1.xpose.msra.mxu0 0.0
        %3593 = vmatprep.subr.mxu0 0.0
        %3594 = vmatpush1.xpose.msra.mxu0 0.0
        %3595 = vmatprep.subr.mxu0 0.0
        %3596 = vmatpush1.xpose.msra.mxu0 0.0
        %3597 = vmatprep.subr.mxu0 0.0
        %3598 = vmatpush1.xpose.msra.mxu0 0.0
        %3599 = vmatprep.subr.mxu0 0.0
        %3600 = vmatpush1.xpose.msra.mxu0 0.0
        %3601 = vmatprep.subr.mxu0 0.0
        %3602 = vmatpush1.xpose.msra.mxu0 0.0
        %3603 = vmatprep.subr.mxu0 0.0
        %3604 = vmatpush1.xpose.msra.mxu0 0.0
        %3605 = vmatprep.subr.mxu0 0.0
        %v3606 = vand.u32 %v2145, 4294901760
        %v3607 = vsub.f32 %v2145, %v3606
        %v3608 = vand.u32 %v3607, 4294901760
        %3609 = vmatpush1.xpose.msra.mxu0 %v3608
        %3610 = vmatprep.subr.mxu0 0.0
        %v3611 = vand.u32 %v2142, 4294901760
        %v3612 = vsub.f32 %v2142, %v3611
        %v3613 = vand.u32 %v3612, 4294901760
        %3614 = vmatpush1.xpose.msra.mxu0 %v3613
        %3615 = vmatprep.subr.mxu0 0.0
        %v3616 = vand.u32 %v2139, 4294901760
        %v3617 = vsub.f32 %v2139, %v3616
        %v3618 = vand.u32 %v3617, 4294901760
        %3619 = vmatpush1.xpose.msra.mxu0 %v3618
        %3620 = vmatprep.subr.mxu0 0.0
        %v3621 = vand.u32 %v2136, 4294901760
        %v3622 = vsub.f32 %v2136, %v3621
        %v3623 = vand.u32 %v3622, 4294901760
        %3624 = vmatpush1.xpose.msra.mxu0 %v3623
        %3625 = vmatprep.subr.mxu0 0.0
        %v3626 = vand.u32 %v2133, 4294901760
        %v3627 = vsub.f32 %v2133, %v3626
        %v3628 = vand.u32 %v3627, 4294901760
        %3629 = vmatpush1.xpose.msra.mxu0 %v3628
        %3630 = vmatprep.subr.mxu0 0.0
        %v3631 = vand.u32 %v2130, 4294901760
        %v3632 = vsub.f32 %v2130, %v3631
        %v3633 = vand.u32 %v3632, 4294901760
        %3634 = vmatpush1.xpose.msra.mxu0 %v3633
        %3635 = vmatprep.subr.mxu0 0.0
        %v3636 = vand.u32 %v2127, 4294901760
        %v3637 = vsub.f32 %v2127, %v3636
        %v3638 = vand.u32 %v3637, 4294901760
        %3639 = vmatpush1.xpose.msra.mxu0 %v3638
        %3640 = vmatprep.subr.mxu0 0.0
        %v3641 = vand.u32 %v2124, 4294901760
        %v3642 = vsub.f32 %v2124, %v3641
        %v3643 = vand.u32 %v3642, 4294901760
        %3644 = vmatpush1.xpose.msra.mxu0 %v3643
        %3645 = vmatprep.subr.mxu0 0.0
        %3646 = vmatpush2.xpose.msra.mxu0 0.0
        %3647 = vmatprep.subr.mxu0 0.0
        %3648 = vmatpush2.xpose.msra.mxu0 0.0
        %3649 = vmatprep.subr.mxu0 0.0
        %3650 = vmatpush2.xpose.msra.mxu0 0.0
        %3651 = vmatprep.subr.mxu0 0.0
        %3652 = vmatpush2.xpose.msra.mxu0 0.0
        %3653 = vmatprep.subr.mxu0 0.0
        %3654 = vmatpush2.xpose.msra.mxu0 0.0
        %3655 = vmatprep.subr.mxu0 0.0
        %3656 = vmatpush2.xpose.msra.mxu0 0.0
        %3657 = vmatprep.subr.mxu0 0.0
        %3658 = vmatpush2.xpose.msra.mxu0 0.0
        %3659 = vmatprep.subr.mxu0 0.0
        %3660 = vmatpush2.xpose.msra.mxu0 0.0
        %3661 = vmatprep.subr.mxu0 0.0
        %3662 = vmatpush2.xpose.msra.mxu0 0.0
        %3663 = vmatprep.subr.mxu0 0.0
        %3664 = vmatpush2.xpose.msra.mxu0 0.0
        %3665 = vmatprep.subr.mxu0 0.0
        %3666 = vmatpush2.xpose.msra.mxu0 0.0
        %3667 = vmatprep.subr.mxu0 0.0
        %3668 = vmatpush2.xpose.msra.mxu0 0.0
        %3669 = vmatprep.subr.mxu0 0.0
        %3670 = vmatpush2.xpose.msra.mxu0 0.0
        %3671 = vmatprep.subr.mxu0 0.0
        %3672 = vmatpush2.xpose.msra.mxu0 0.0
        %3673 = vmatprep.subr.mxu0 0.0
        %3674 = vmatpush2.xpose.msra.mxu0 0.0
        %3675 = vmatprep.subr.mxu0 0.0
        %3676 = vmatpush2.xpose.msra.mxu0 0.0
        %3677 = vmatprep.mubr.f32.mxu0 0.0
        %v3678 = vand.u32 %v2986, 4294901760
        %3679 = vmatmul.mubr.f32.gmra.mxu0 %v3678
        %v3680 = vpop.f32.mrf.mxu0
        %v3681 = vadd.f32 %v3530, %v3680
        %v3682 = vpop.f32.mrf.mxu0
        %3683 = vmatprep.mubr.f32.mxu0 0.0
        %v3684 = vand.u32 %v2989, 4294901760
        %3685 = vmatmul.mubr.f32.gmra.mxu0 %v3684
        %v3686 = vpop.f32.mrf.mxu0
        %v3687 = vadd.f32 %v3538, %v3686
        %v3688 = vpop.f32.mrf.mxu0
        %3689 = vmatprep.mubr.f32.mxu0 0.0
        %v3690 = vand.u32 %v2992, 4294901760
        %3691 = vmatmul.mubr.f32.gmra.mxu0 %v3690
        %v3692 = vpop.f32.mrf.mxu0
        %v3693 = vadd.f32 %v3546, %v3692
        %v3694 = vpop.f32.mrf.mxu0
        %3695 = vmatprep.mubr.f32.mxu0 0.0
        %v3696 = vand.u32 %v2995, 4294901760
        %3697 = vmatmul.mubr.f32.gmra.mxu0 %v3696
        %v3698 = vpop.f32.mrf.mxu0
        %v3699 = vadd.f32 %v3554, %v3698
        %v3700 = vpop.f32.mrf.mxu0
        %3701 = vmatprep.mubr.f32.mxu0 0.0
        %v3702 = vand.u32 %v2998, 4294901760
        %3703 = vmatmul.mubr.f32.gmra.mxu0 %v3702
        %v3704 = vpop.f32.mrf.mxu0
        %v3705 = vadd.f32 %v3562, %v3704
        %v3706 = vpop.f32.mrf.mxu0
        %3707 = vmatprep.mubr.f32.mxu0 0.0
        %v3708 = vand.u32 %v3001, 4294901760
        %3709 = vmatmul.mubr.f32.gmra.mxu0 %v3708
        %v3710 = vpop.f32.mrf.mxu0
        %v3711 = vadd.f32 %v3570, %v3710
        %v3712 = vpop.f32.mrf.mxu0
        %3713 = vmatprep.mubr.f32.mxu0 0.0
        %v3714 = vand.u32 %v3004, 4294901760
        %3715 = vmatmul.mubr.f32.gmra.mxu0 %v3714
        %v3716 = vpop.f32.mrf.mxu0
        %v3717 = vadd.f32 %v3578, %v3716
        %v3718 = vpop.f32.mrf.mxu0
        %3719 = vmatprep.mubr.f32.mxu0 0.0
        %v3720 = vand.u32 %v3007, 4294901760
        %3721 = vmatmul.mubr.f32.gmra.mxu0 %v3720
        %v3722 = vpop.f32.mrf.mxu0
        %v3723 = vadd.f32 %v3586, %v3722
        %v3724 = vpop.f32.mrf.mxu0
        %3725 = vdwg.mxu0
        %3726 = vmatprep.subr.mxu0 0.0
        %3727 = vmatpush1.xpose.msra.mxu0 0.0
        %3728 = vmatprep.subr.mxu0 0.0
        %3729 = vmatpush1.xpose.msra.mxu0 0.0
        %3730 = vmatprep.subr.mxu0 0.0
        %3731 = vmatpush1.xpose.msra.mxu0 0.0
        %3732 = vmatprep.subr.mxu0 0.0
        %3733 = vmatpush1.xpose.msra.mxu0 0.0
        %3734 = vmatprep.subr.mxu0 0.0
        %3735 = vmatpush1.xpose.msra.mxu0 0.0
        %3736 = vmatprep.subr.mxu0 0.0
        %3737 = vmatpush1.xpose.msra.mxu0 0.0
        %3738 = vmatprep.subr.mxu0 0.0
        %3739 = vmatpush1.xpose.msra.mxu0 0.0
        %3740 = vmatprep.subr.mxu0 0.0
        %3741 = vmatpush1.xpose.msra.mxu0 0.0
        %3742 = vmatprep.subr.mxu0 0.0
        %v3743 = vand.u32 %v2145, 4294901760
        %3744 = vmatpush1.xpose.msra.mxu0 %v3743
        %3745 = vmatprep.subr.mxu0 0.0
        %v3746 = vand.u32 %v2142, 4294901760
        %3747 = vmatpush1.xpose.msra.mxu0 %v3746
        %3748 = vmatprep.subr.mxu0 0.0
        %v3749 = vand.u32 %v2139, 4294901760
        %3750 = vmatpush1.xpose.msra.mxu0 %v3749
        %3751 = vmatprep.subr.mxu0 0.0
        %v3752 = vand.u32 %v2136, 4294901760
        %3753 = vmatpush1.xpose.msra.mxu0 %v3752
        %3754 = vmatprep.subr.mxu0 0.0
        %v3755 = vand.u32 %v2133, 4294901760
        %3756 = vmatpush1.xpose.msra.mxu0 %v3755
        %3757 = vmatprep.subr.mxu0 0.0
        %v3758 = vand.u32 %v2130, 4294901760
        %3759 = vmatpush1.xpose.msra.mxu0 %v3758
        %3760 = vmatprep.subr.mxu0 0.0
        %v3761 = vand.u32 %v2127, 4294901760
        %3762 = vmatpush1.xpose.msra.mxu0 %v3761
        %3763 = vmatprep.subr.mxu0 0.0
        %v3764 = vand.u32 %v2124, 4294901760
        %3765 = vmatpush1.xpose.msra.mxu0 %v3764
        %3766 = vmatprep.subr.mxu0 0.0
        %3767 = vmatpush2.xpose.msra.mxu0 0.0
        %3768 = vmatprep.subr.mxu0 0.0
        %3769 = vmatpush2.xpose.msra.mxu0 0.0
        %3770 = vmatprep.subr.mxu0 0.0
        %3771 = vmatpush2.xpose.msra.mxu0 0.0
        %3772 = vmatprep.subr.mxu0 0.0
        %3773 = vmatpush2.xpose.msra.mxu0 0.0
        %3774 = vmatprep.subr.mxu0 0.0
        %3775 = vmatpush2.xpose.msra.mxu0 0.0
        %3776 = vmatprep.subr.mxu0 0.0
        %3777 = vmatpush2.xpose.msra.mxu0 0.0
        %3778 = vmatprep.subr.mxu0 0.0
        %3779 = vmatpush2.xpose.msra.mxu0 0.0
        %3780 = vmatprep.subr.mxu0 0.0
        %3781 = vmatpush2.xpose.msra.mxu0 0.0
        %3782 = vmatprep.subr.mxu0 0.0
        %3783 = vmatpush2.xpose.msra.mxu0 0.0
        %3784 = vmatprep.subr.mxu0 0.0
        %3785 = vmatpush2.xpose.msra.mxu0 0.0
        %3786 = vmatprep.subr.mxu0 0.0
        %3787 = vmatpush2.xpose.msra.mxu0 0.0
        %3788 = vmatprep.subr.mxu0 0.0
        %3789 = vmatpush2.xpose.msra.mxu0 0.0
        %3790 = vmatprep.subr.mxu0 0.0
        %3791 = vmatpush2.xpose.msra.mxu0 0.0
        %3792 = vmatprep.subr.mxu0 0.0
        %3793 = vmatpush2.xpose.msra.mxu0 0.0
        %3794 = vmatprep.subr.mxu0 0.0
        %3795 = vmatpush2.xpose.msra.mxu0 0.0
        %3796 = vmatprep.subr.mxu0 0.0
        %3797 = vmatpush2.xpose.msra.mxu0 0.0
        %3798 = vmatprep.mubr.f32.mxu0 0.0
        %v3799 = vand.u32 %v2986, 4294901760
        %3800 = vmatmul.mubr.f32.gmra.mxu0 %v3799
        %v3801 = vpop.f32.mrf.mxu0
        %v3802 = vadd.f32 %v3681, %v3801
        %v3803 = vpop.f32.mrf.mxu0
        %3804 = vmatprep.mubr.f32.mxu0 0.0
        %v3805 = vand.u32 %v2989, 4294901760
        %3806 = vmatmul.mubr.f32.gmra.mxu0 %v3805
        %v3807 = vpop.f32.mrf.mxu0
        %v3808 = vadd.f32 %v3687, %v3807
        %v3809 = vpop.f32.mrf.mxu0
        %3810 = vmatprep.mubr.f32.mxu0 0.0
        %v3811 = vand.u32 %v2992, 4294901760
        %3812 = vmatmul.mubr.f32.gmra.mxu0 %v3811
        %v3813 = vpop.f32.mrf.mxu0
        %v3814 = vadd.f32 %v3693, %v3813
        %v3815 = vpop.f32.mrf.mxu0
        %3816 = vmatprep.mubr.f32.mxu0 0.0
        %v3817 = vand.u32 %v2995, 4294901760
        %3818 = vmatmul.mubr.f32.gmra.mxu0 %v3817
        %v3819 = vpop.f32.mrf.mxu0
        %v3820 = vadd.f32 %v3699, %v3819
        %v3821 = vpop.f32.mrf.mxu0
        %3822 = vmatprep.mubr.f32.mxu0 0.0
        %v3823 = vand.u32 %v2998, 4294901760
        %3824 = vmatmul.mubr.f32.gmra.mxu0 %v3823
        %v3825 = vpop.f32.mrf.mxu0
        %v3826 = vadd.f32 %v3705, %v3825
        %v3827 = vpop.f32.mrf.mxu0
        %3828 = vmatprep.mubr.f32.mxu0 0.0
        %v3829 = vand.u32 %v3001, 4294901760
        %3830 = vmatmul.mubr.f32.gmra.mxu0 %v3829
        %v3831 = vpop.f32.mrf.mxu0
        %v3832 = vadd.f32 %v3711, %v3831
        %v3833 = vpop.f32.mrf.mxu0
        %3834 = vmatprep.mubr.f32.mxu0 0.0
        %v3835 = vand.u32 %v3004, 4294901760
        %3836 = vmatmul.mubr.f32.gmra.mxu0 %v3835
        %v3837 = vpop.f32.mrf.mxu0
        %v3838 = vadd.f32 %v3717, %v3837
        %v3839 = vpop.f32.mrf.mxu0
        %3840 = vmatprep.mubr.f32.mxu0 0.0
        %v3841 = vand.u32 %v3007, 4294901760
        %3842 = vmatmul.mubr.f32.gmra.mxu0 %v3841
        %v3843 = vpop.f32.mrf.mxu0
        %v3844 = vadd.f32 %v3723, %v3843
        %v3845 = vpop.f32.mrf.mxu0
        %3846 = vdwg.mxu0
        %3847 = vst.msk [vmem:[%s235] sm:$0xff] %vm318, %v3802
        %3848 = vst.msk [vmem:[%s235 + $0x8] sm:$0xff] %vm318, %v3808
        %3849 = vst.msk [vmem:[%s235 + $0x10] sm:$0xff] %vm318, %v3814
        %3850 = vst.msk [vmem:[%s235 + $0x18] sm:$0xff] %vm318, %v3820
        %3851 = vst.msk [vmem:[%s235 + $0x20] sm:$0xff] %vm318, %v3826
        %3852 = vst.msk [vmem:[%s235 + $0x28] sm:$0xff] %vm318, %v3832
        %3853 = vst.msk [vmem:[%s235 + $0x30] sm:$0xff] %vm318, %v3838
        %3854 = vst.msk [vmem:[%s235 + $0x38] sm:$0xff] %vm318, %v3844
        %s3855 = sand.u32 %s122, 1
        %s3856 = scalar_lea.sflag [#allocation4], %s3855
        %s3857 = sand.u32 %s122, 1
        %s3858 = smul.addr %s3857, 64
        %s3859 = scalar_lea.vmem [#allocation7], %s3858
        // Predicated region
        $region45: #{tpu_custom_call.1} parent=35 // pred_check
          %p3860 = pneg %p132
        $region46: #{tpu_custom_call.1} parent=35 // pred_check_branch
          %3862 = sbr.rel (%p3860) target = $region48
        $region47: #{tpu_custom_call.1} parent=35 // pred_region
          %s3864 = ssub.s32 1024, 1024
          %3865 = vsyncadd %s3856, %s3864
          %s3866 = smul.addr %s20, 8
          %s3867 = smul.addr %s3866, 128
          %s3868 = scalar_lea.hbm %s4, %s3867
          %s3869 = sshll.u32 %s3859, 4
          %s3870 = int_to_ptr.vmem [resolvable:$true] %s3869
          %3875 = dma.vmem_to_hbm [thread:$0]  %s3870, 1024, %s3868, %s3856, 128, 128, 8
        $region48: #{tpu_custom_call.1} parent=35 // pred_fallthru
          _
      $region36: #{tpu_custom_call.1} parent=5 // pred_fallthru
        _
      %p3876 = scmp.le.s32.totalorder 2, %s15
      // Predicated region
      $region49: #{tpu_custom_call.1} parent=5 // pred_check
        %p3877 = pneg %p3876
      $region50: #{tpu_custom_call.1} parent=5 // pred_check_branch
        %3879 = sbr.rel (%p3877) target = $region52
      $region51: #{tpu_custom_call.1} parent=5 // pred_region
        %s3880 = ssub.s32 %s15, 2
        // Predicated region
        $region53: #{tpu_custom_call.1} parent=51 // pred_check
          %p3881 = pneg %p138
        $region54: #{tpu_custom_call.1} parent=51 // pred_check_branch
          %3883 = sbr.rel (%p3881) target = $region56
        $region55: #{tpu_custom_call.1} parent=51 // pred_region
          %s3884 = sand.u32 %s123, 1
          %s3885 = scalar_lea.sflag [#allocation4], %s3884
          %s3886 = sand.u32 %s123, 1
          %s3887 = smul.addr %s3886, 64
          %s3888 = scalar_lea.vmem [#allocation7], %s3887
          %3889 = dma.done %s3885, 1024
        $region56: #{tpu_custom_call.1} parent=51 // pred_fallthru
          _
      $region52: #{tpu_custom_call.1} parent=5 // pred_fallthru
        _
    $region6: #{tpu_custom_call.1} parent=1 // loop_footer
      %s19 = sadd.s32 1, %s15
    $region7: #{tpu_custom_call.1} parent=1 // loop_footer_branch
      %14 = sbr.rel target = $region3
    $region8: #{tpu_custom_call.1} parent=1 // loop_exit
      _
    %3890 = vsyncpa [#allocation3], 1
    %s3891 = scalar_lea.sflag [#allocation3], 1
    %3892 = vsyncpa %s3891, 1
    %3893 = vsyncpa [#allocation6], 1
    %3894 = vsyncpa [#allocation4], 1
    %s3895 = scalar_lea.sflag [#allocation4], 1
    %3896 = vsyncpa %s3895, 1

</llo_original>
